<compile_context>
chip_gen: v7x
topology: tpu7x:2x2x1
jax: 0.10.0
libtpu: 0.0.40
codegen_flags: <defaults>
</compile_context>

<pallas_src>
import functools

import jax
import jax.numpy as jnp
import numpy as np
from jax.experimental import pallas as pl
from jax.experimental.pallas import tpu as pltpu

LAMBDA_FOR_MOR = 0.6  # `lambda_for_mor` global in the original script


def _cbow_kernel(emb_ref, emb_t_ref, in_idx_ref, mor_idx_ref, mask_ref,
                 neg_idx_ref, out_ref, *, max_mor, lam):
    # Block shapes (TB = batch tile on the lane axis):
    #   emb_ref    : (V, D)      embedding table (vocab zero-padded to mult. of 8)
    #   emb_t_ref  : (D, V)      its transpose
    #   in_idx_ref : (2W, TB)    int32 context-word ids
    #   mor_idx_ref: (2W*M, TB)  int32 morpheme ids
    #   mask_ref   : (2W*M, TB)  f32 morpheme mask
    #   neg_idx_ref: (N, TB)     int32 negative-sample ids
    #   out_ref    : (N, TB)     softmax probabilities (batch on lanes)
    v = emb_ref.shape[0]
    tb = out_ref.shape[1]
    w2 = in_idx_ref.shape[0]
    wm = mor_idx_ref.shape[0]
    n_neg = neg_idx_ref.shape[0]
    coef = (1.0 - lam) / max_mor

    vocab_iota = jax.lax.broadcasted_iota(jnp.int32, (v, tb), 0)     # (V, TB)

    in_idx = in_idx_ref[...]
    mor_idx = mor_idx_ref[...]
    msk = mask_ref[...]

    # Weighted one-hot scatter (VPU selects, accumulation on sublanes):
    #   C[v, b] = lam * #{j : in_idx[j,b] == v}
    #           + (1-lam)/M * sum_j mask[j,b] * (mor_idx[j,b] == v)
    c = jnp.zeros((v, tb), jnp.float32)
    for j in range(w2):
        c = c + jnp.where(vocab_iota == in_idx[j:j + 1, :], lam, 0.0)
    for j in range(wm):
        c = c + jnp.where(vocab_iota == mor_idx[j:j + 1, :],
                          coef * msk[j:j + 1, :], 0.0)

    # ivs[d, b] = sum_v emb[v, d] * C[v, b]   -- blended context sum, (D, TB)
    ivs = jnp.dot(emb_t_ref[...], c, preferred_element_type=jnp.float32)
    # S[v, b]   = <emb[v, :], ivs[:, b]>      -- score vs every vocab row
    s = jnp.dot(emb_ref[...], ivs, preferred_element_type=jnp.float32)

    # logits[n, b] = S[neg_idx[n, b], b]  (one-hot select + sublane reduce)
    neg_idx = neg_idx_ref[...]
    rows = []
    for n in range(n_neg):
        sel = jnp.where(vocab_iota == neg_idx[n:n + 1, :], s, 0.0)
        rows.append(jnp.sum(sel, axis=0, keepdims=True))              # (1, TB)
    logits = jnp.concatenate(rows, axis=0)                            # (N, TB)

    # Numerically-stable softmax over the negative-sample (sublane) axis.
    m = jnp.max(logits, axis=0, keepdims=True)
    e = jnp.exp(logits - m)
    denom = jnp.sum(e, axis=0, keepdims=True)
    out_ref[...] = e * pl.reciprocal(denom, approx=True)


def word2vec_cbow_forward(embedding, input_words, negative_samples, mor_words,
                          mor_mask, *, window, max_mor,
                          lam=LAMBDA_FOR_MOR, batch_tile=512):
    B = input_words.shape[0]
    V, D = embedding.shape
    W2 = 2 * window
    WM = W2 * max_mor
    N = negative_samples.shape[1]

    # Embedding table: pad vocab rows to a sublane multiple (zeros), keep both
    # orientations (both tiny; avoids an in-kernel transpose).
    # TODO(synk): for a large vocab, keep the table HBM-resident
    # (memory_space=pl.ANY) and gather rows via scalar-prefetched indices +
    # manual DMA instead of the in-VMEM one-hot matmul used here.
    V_pad = ((V + 7) // 8) * 8
    emb = jnp.pad(embedding.astype(jnp.float32), ((0, V_pad - V), (0, 0)))
    emb_t = emb.T                                                    # (D, V_pad)

    # Transpose only the small int32 index / f32 mask arrays so the batch axis
    # is minormost (lane axis) inside the kernel; no gathered-f32 transposes.
    in_idx = input_words.astype(jnp.int32).T                         # (2W, B)
    mor_idx = mor_words.astype(jnp.int32).T                          # (2W*M, B)
    msk = mor_mask.astype(jnp.float32).T                             # (2W*M, B)
    neg_idx = negative_samples.astype(jnp.int32).T                   # (N, B)

    # Batch tile on the lane axis: multiple of 128, large when B allows it.
    if B >= batch_tile:
        TB = batch_tile
    else:
        TB = max(128, ((B + 127) // 128) * 128)
    B_pad = pl.cdiv(B, TB) * TB
    if B_pad != B:
        pad = B_pad - B
        in_idx = jnp.pad(in_idx, ((0, 0), (0, pad)))
        mor_idx = jnp.pad(mor_idx, ((0, 0), (0, pad)))
        msk = jnp.pad(msk, ((0, 0), (0, pad)))
        neg_idx = jnp.pad(neg_idx, ((0, 0), (0, pad)))

    kernel = functools.partial(_cbow_kernel, max_mor=max_mor, lam=lam)

    out_t = pl.pallas_call(
        kernel,
        out_shape=jax.ShapeDtypeStruct((N, B_pad), jnp.float32),
        grid_spec=pltpu.PrefetchScalarGridSpec(
            num_scalar_prefetch=0,
            grid=(B_pad // TB,),
            in_specs=[
                pl.BlockSpec((V_pad, D), lambda b: (0, 0)),   # emb
                pl.BlockSpec((D, V_pad), lambda b: (0, 0)),   # emb^T
                pl.BlockSpec((W2, TB), lambda b: (0, b)),     # context ids
                pl.BlockSpec((WM, TB), lambda b: (0, b)),     # morpheme ids
                pl.BlockSpec((WM, TB), lambda b: (0, b)),     # morpheme mask
                pl.BlockSpec((N, TB), lambda b: (0, b)),      # negative ids
            ],
            out_specs=pl.BlockSpec((N, TB), lambda b: (0, b)),
        ),
        compiler_params=pltpu.CompilerParams(
            dimension_semantics=("parallel",)),
    )(emb, emb_t, in_idx, mor_idx, msk, neg_idx)

    return out_t.T[:B]                                               # (B, N)


def reference_forward(embedding, input_words, negative_samples, mor_words,
                      mor_mask, *, window, max_mor):
    """Pure-JAX mirror of the PyTorch forward, for correctness checking."""
    input_vecs = embedding[input_words]
    B = input_vecs.shape[0]
    mor_vecs = embedding[mor_words].reshape(B, 2 * window, max_mor, -1)
    mask = mor_mask.reshape(B, 2 * window, max_mor, 1)
    mor_sum = jnp.sum(mor_vecs * mask, axis=2) / max_mor
    input_vecs = input_vecs * LAMBDA_FOR_MOR + mor_sum * (1 - LAMBDA_FOR_MOR)
    ivs = jnp.sum(input_vecs, axis=1)
    neg_vecs = embedding[negative_samples]
    out = jnp.einsum("bnd,bd->bn", neg_vecs, ivs,
                     precision=jax.lax.Precision.HIGHEST)
    return jax.nn.softmax(out, axis=-1)


if __name__ == "__main__":
    # Module hyper-parameters (small, deterministic).
    window = 2            # -> context length 2W = 4
    max_mor = 3
    embedding_dim = 32
    nb_negative = 7       # negative_samples has nb_negative + 1 columns
    n_id2word = 40
    n_mor2idx = 9
    num_embeddings = n_id2word + n_mor2idx + 1   # len(id2word)+len(mor2idx)+1
    B = 1024              # grid=(2,) at batch_tile=512 (even split on v7x)
    W2 = 2 * window
    N = nb_negative + 1

    key = jax.random.PRNGKey(0)
    k_emb, k_in, k_neg, k_mor, k_mask = jax.random.split(key, 5)

    embedding = 0.5 * jax.random.normal(k_emb, (num_embeddings, embedding_dim),
                                        dtype=jnp.float32)
    input_words = jax.random.randint(k_in, (B, W2), 0, num_embeddings,
                                     dtype=jnp.int32)
    negative_samples = jax.random.randint(k_neg, (B, N), 0, num_embeddings,
                                          dtype=jnp.int32)
    mor_words = jax.random.randint(k_mor, (B, W2 * max_mor), 0, num_embeddings,
                                   dtype=jnp.int32)
    mor_mask = jax.random.bernoulli(k_mask, 0.7, (B, W2 * max_mor)).astype(
        jnp.float32)

    out = word2vec_cbow_forward(embedding, input_words, negative_samples,
                                mor_words, mor_mask,
                                window=window, max_mor=max_mor,
                                batch_tile=512)
    out = jax.block_until_ready(out)

    ref = reference_forward(embedding, input_words, negative_samples,
                            mor_words, mor_mask,
                            window=window, max_mor=max_mor)
    ref = jax.block_until_ready(ref)

    assert out.shape == (B, N), out.shape
    # Tolerance covers MXU f32 rounding-path differences vs. the XLA reference
    # and the approx EUP reciprocal in the softmax epilogue.
    np.testing.assert_allclose(np.asarray(out), np.asarray(ref),
                               rtol=2e-2, atol=2e-2)
    print("KERNEL_OK")
</pallas_src>

<mosaic_0001>
module attributes {stable_mosaic.version = 11 : i64} {
  func.func @_cbow_kernel(%arg0: i32, %arg1: memref<56x32xf32, #tpu.memory_space<vmem>>, %arg2: memref<32x56xf32, #tpu.memory_space<vmem>>, %arg3: memref<4x512xi32, #tpu.memory_space<vmem>>, %arg4: memref<12x512xi32, #tpu.memory_space<vmem>>, %arg5: memref<12x512xf32, #tpu.memory_space<vmem>>, %arg6: memref<8x512xi32, #tpu.memory_space<vmem>>, %arg7: memref<8x512xf32, #tpu.memory_space<vmem>>) attributes {dimension_semantics = [#tpu.dimension_semantics<parallel>], iteration_bounds = array<i64: 2>, scalar_prefetch = 0 : i64, scratch_operands = 0 : i64, tpu.core_type = #tpu.core_type<tc>, window_params = [{pipeline_mode = #tpu.pipeline_mode<synchronous>, transform_indices = @transform_0, window_bounds = array<i64: 56, 32>}, {pipeline_mode = #tpu.pipeline_mode<synchronous>, transform_indices = @transform_1, window_bounds = array<i64: 32, 56>}, {transform_indices = @transform_2, window_bounds = array<i64: 4, 512>}, {transform_indices = @transform_3, window_bounds = array<i64: 12, 512>}, {transform_indices = @transform_4, window_bounds = array<i64: 12, 512>}, {transform_indices = @transform_5, window_bounds = array<i64: 8, 512>}, {transform_indices = @transform_6, window_bounds = array<i64: 8, 512>}]} {
    %0 = tpu.iota {dimensions = array<i32: 0>} : vector<56x512xi32>
    %c0 = arith.constant 0 : index
    %c0_0 = arith.constant 0 : index
    %1 = vector.load %arg3[%c0, %c0_0] : memref<4x512xi32, #tpu.memory_space<vmem>>, vector<4x512xi32>
    %c0_1 = arith.constant 0 : index
    %c0_2 = arith.constant 0 : index
    %2 = vector.load %arg4[%c0_1, %c0_2] : memref<12x512xi32, #tpu.memory_space<vmem>>, vector<12x512xi32>
    %c0_3 = arith.constant 0 : index
    %c0_4 = arith.constant 0 : index
    %3 = vector.load %arg5[%c0_3, %c0_4] : memref<12x512xf32, #tpu.memory_space<vmem>>, vector<12x512xf32>
    %cst = arith.constant 0.000000e+00 : f32
    %4 = vector.broadcast %cst : f32 to vector<56x512xf32>
    %5 = vector.extract_strided_slice %1 {offsets = [0, 0], sizes = [1, 512], strides = [1, 1]} : vector<4x512xi32> to vector<1x512xi32>
    %6 = vector.broadcast %5 : vector<1x512xi32> to vector<56x512xi32>
    %7 = arith.cmpi eq, %0, %6 : vector<56x512xi32>
    %cst_5 = arith.constant 6.000000e-01 : f32
    %cst_6 = arith.constant 0.000000e+00 : f32
    %8 = vector.broadcast %cst_5 : f32 to vector<56x512xf32>
    %9 = vector.broadcast %cst_6 : f32 to vector<56x512xf32>
    %10 = arith.select %7, %8, %9 : vector<56x512xi1>, vector<56x512xf32>
    %11 = arith.addf %4, %10 : vector<56x512xf32>
    %12 = vector.extract_strided_slice %1 {offsets = [1, 0], sizes = [1, 512], strides = [1, 1]} : vector<4x512xi32> to vector<1x512xi32>
    %13 = vector.broadcast %12 : vector<1x512xi32> to vector<56x512xi32>
    %14 = arith.cmpi eq, %0, %13 : vector<56x512xi32>
    %cst_7 = arith.constant 6.000000e-01 : f32
    %cst_8 = arith.constant 0.000000e+00 : f32
    %15 = vector.broadcast %cst_7 : f32 to vector<56x512xf32>
    %16 = vector.broadcast %cst_8 : f32 to vector<56x512xf32>
    %17 = arith.select %14, %15, %16 : vector<56x512xi1>, vector<56x512xf32>
    %18 = arith.addf %11, %17 : vector<56x512xf32>
    %19 = vector.extract_strided_slice %1 {offsets = [2, 0], sizes = [1, 512], strides = [1, 1]} : vector<4x512xi32> to vector<1x512xi32>
    %20 = vector.broadcast %19 : vector<1x512xi32> to vector<56x512xi32>
    %21 = arith.cmpi eq, %0, %20 : vector<56x512xi32>
    %cst_9 = arith.constant 6.000000e-01 : f32
    %cst_10 = arith.constant 0.000000e+00 : f32
    %22 = vector.broadcast %cst_9 : f32 to vector<56x512xf32>
    %23 = vector.broadcast %cst_10 : f32 to vector<56x512xf32>
    %24 = arith.select %21, %22, %23 : vector<56x512xi1>, vector<56x512xf32>
    %25 = arith.addf %18, %24 : vector<56x512xf32>
    %26 = vector.extract_strided_slice %1 {offsets = [3, 0], sizes = [1, 512], strides = [1, 1]} : vector<4x512xi32> to vector<1x512xi32>
    %27 = vector.broadcast %26 : vector<1x512xi32> to vector<56x512xi32>
    %28 = arith.cmpi eq, %0, %27 : vector<56x512xi32>
    %cst_11 = arith.constant 6.000000e-01 : f32
    %cst_12 = arith.constant 0.000000e+00 : f32
    %29 = vector.broadcast %cst_11 : f32 to vector<56x512xf32>
    %30 = vector.broadcast %cst_12 : f32 to vector<56x512xf32>
    %31 = arith.select %28, %29, %30 : vector<56x512xi1>, vector<56x512xf32>
    %32 = arith.addf %25, %31 : vector<56x512xf32>
    %33 = vector.extract_strided_slice %2 {offsets = [0, 0], sizes = [1, 512], strides = [1, 1]} : vector<12x512xi32> to vector<1x512xi32>
    %34 = vector.broadcast %33 : vector<1x512xi32> to vector<56x512xi32>
    %35 = arith.cmpi eq, %0, %34 : vector<56x512xi32>
    %36 = vector.extract_strided_slice %3 {offsets = [0, 0], sizes = [1, 512], strides = [1, 1]} : vector<12x512xf32> to vector<1x512xf32>
    %cst_13 = arith.constant 0.13333334 : f32
    %37 = vector.broadcast %cst_13 : f32 to vector<1x512xf32>
    %38 = arith.mulf %37, %36 : vector<1x512xf32>
    %cst_14 = arith.constant 0.000000e+00 : f32
    %39 = vector.shape_cast %38 : vector<1x512xf32> to vector<1x512xf32>
    %40 = vector.broadcast %39 : vector<1x512xf32> to vector<56x512xf32>
    %41 = vector.broadcast %cst_14 : f32 to vector<56x512xf32>
    %42 = arith.select %35, %40, %41 : vector<56x512xi1>, vector<56x512xf32>
    %43 = arith.addf %32, %42 : vector<56x512xf32>
    %44 = vector.extract_strided_slice %2 {offsets = [1, 0], sizes = [1, 512], strides = [1, 1]} : vector<12x512xi32> to vector<1x512xi32>
    %45 = vector.broadcast %44 : vector<1x512xi32> to vector<56x512xi32>
    %46 = arith.cmpi eq, %0, %45 : vector<56x512xi32>
    %47 = vector.extract_strided_slice %3 {offsets = [1, 0], sizes = [1, 512], strides = [1, 1]} : vector<12x512xf32> to vector<1x512xf32>
    %cst_15 = arith.constant 0.13333334 : f32
    %48 = vector.broadcast %cst_15 : f32 to vector<1x512xf32>
    %49 = arith.mulf %48, %47 : vector<1x512xf32>
    %cst_16 = arith.constant 0.000000e+00 : f32
    %50 = vector.shape_cast %49 : vector<1x512xf32> to vector<1x512xf32>
    %51 = vector.broadcast %50 : vector<1x512xf32> to vector<56x512xf32>
    %52 = vector.broadcast %cst_16 : f32 to vector<56x512xf32>
    %53 = arith.select %46, %51, %52 : vector<56x512xi1>, vector<56x512xf32>
    %54 = arith.addf %43, %53 : vector<56x512xf32>
    %55 = vector.extract_strided_slice %2 {offsets = [2, 0], sizes = [1, 512], strides = [1, 1]} : vector<12x512xi32> to vector<1x512xi32>
    %56 = vector.broadcast %55 : vector<1x512xi32> to vector<56x512xi32>
    %57 = arith.cmpi eq, %0, %56 : vector<56x512xi32>
    %58 = vector.extract_strided_slice %3 {offsets = [2, 0], sizes = [1, 512], strides = [1, 1]} : vector<12x512xf32> to vector<1x512xf32>
    %cst_17 = arith.constant 0.13333334 : f32
    %59 = vector.broadcast %cst_17 : f32 to vector<1x512xf32>
    %60 = arith.mulf %59, %58 : vector<1x512xf32>
    %cst_18 = arith.constant 0.000000e+00 : f32
    %61 = vector.shape_cast %60 : vector<1x512xf32> to vector<1x512xf32>
    %62 = vector.broadcast %61 : vector<1x512xf32> to vector<56x512xf32>
    %63 = vector.broadcast %cst_18 : f32 to vector<56x512xf32>
    %64 = arith.select %57, %62, %63 : vector<56x512xi1>, vector<56x512xf32>
    %65 = arith.addf %54, %64 : vector<56x512xf32>
    %66 = vector.extract_strided_slice %2 {offsets = [3, 0], sizes = [1, 512], strides = [1, 1]} : vector<12x512xi32> to vector<1x512xi32>
    %67 = vector.broadcast %66 : vector<1x512xi32> to vector<56x512xi32>
    %68 = arith.cmpi eq, %0, %67 : vector<56x512xi32>
    %69 = vector.extract_strided_slice %3 {offsets = [3, 0], sizes = [1, 512], strides = [1, 1]} : vector<12x512xf32> to vector<1x512xf32>
    %cst_19 = arith.constant 0.13333334 : f32
    %70 = vector.broadcast %cst_19 : f32 to vector<1x512xf32>
    %71 = arith.mulf %70, %69 : vector<1x512xf32>
    %cst_20 = arith.constant 0.000000e+00 : f32
    %72 = vector.shape_cast %71 : vector<1x512xf32> to vector<1x512xf32>
    %73 = vector.broadcast %72 : vector<1x512xf32> to vector<56x512xf32>
    %74 = vector.broadcast %cst_20 : f32 to vector<56x512xf32>
    %75 = arith.select %68, %73, %74 : vector<56x512xi1>, vector<56x512xf32>
    %76 = arith.addf %65, %75 : vector<56x512xf32>
    %77 = vector.extract_strided_slice %2 {offsets = [4, 0], sizes = [1, 512], strides = [1, 1]} : vector<12x512xi32> to vector<1x512xi32>
    %78 = vector.broadcast %77 : vector<1x512xi32> to vector<56x512xi32>
    %79 = arith.cmpi eq, %0, %78 : vector<56x512xi32>
    %80 = vector.extract_strided_slice %3 {offsets = [4, 0], sizes = [1, 512], strides = [1, 1]} : vector<12x512xf32> to vector<1x512xf32>
    %cst_21 = arith.constant 0.13333334 : f32
    %81 = vector.broadcast %cst_21 : f32 to vector<1x512xf32>
    %82 = arith.mulf %81, %80 : vector<1x512xf32>
    %cst_22 = arith.constant 0.000000e+00 : f32
    %83 = vector.shape_cast %82 : vector<1x512xf32> to vector<1x512xf32>
    %84 = vector.broadcast %83 : vector<1x512xf32> to vector<56x512xf32>
    %85 = vector.broadcast %cst_22 : f32 to vector<56x512xf32>
    %86 = arith.select %79, %84, %85 : vector<56x512xi1>, vector<56x512xf32>
    %87 = arith.addf %76, %86 : vector<56x512xf32>
    %88 = vector.extract_strided_slice %2 {offsets = [5, 0], sizes = [1, 512], strides = [1, 1]} : vector<12x512xi32> to vector<1x512xi32>
    %89 = vector.broadcast %88 : vector<1x512xi32> to vector<56x512xi32>
    %90 = arith.cmpi eq, %0, %89 : vector<56x512xi32>
    %91 = vector.extract_strided_slice %3 {offsets = [5, 0], sizes = [1, 512], strides = [1, 1]} : vector<12x512xf32> to vector<1x512xf32>
    %cst_23 = arith.constant 0.13333334 : f32
    %92 = vector.broadcast %cst_23 : f32 to vector<1x512xf32>
    %93 = arith.mulf %92, %91 : vector<1x512xf32>
    %cst_24 = arith.constant 0.000000e+00 : f32
    %94 = vector.shape_cast %93 : vector<1x512xf32> to vector<1x512xf32>
    %95 = vector.broadcast %94 : vector<1x512xf32> to vector<56x512xf32>
    %96 = vector.broadcast %cst_24 : f32 to vector<56x512xf32>
    %97 = arith.select %90, %95, %96 : vector<56x512xi1>, vector<56x512xf32>
    %98 = arith.addf %87, %97 : vector<56x512xf32>
    %99 = vector.extract_strided_slice %2 {offsets = [6, 0], sizes = [1, 512], strides = [1, 1]} : vector<12x512xi32> to vector<1x512xi32>
    %100 = vector.broadcast %99 : vector<1x512xi32> to vector<56x512xi32>
    %101 = arith.cmpi eq, %0, %100 : vector<56x512xi32>
    %102 = vector.extract_strided_slice %3 {offsets = [6, 0], sizes = [1, 512], strides = [1, 1]} : vector<12x512xf32> to vector<1x512xf32>
    %cst_25 = arith.constant 0.13333334 : f32
    %103 = vector.broadcast %cst_25 : f32 to vector<1x512xf32>
    %104 = arith.mulf %103, %102 : vector<1x512xf32>
    %cst_26 = arith.constant 0.000000e+00 : f32
    %105 = vector.shape_cast %104 : vector<1x512xf32> to vector<1x512xf32>
    %106 = vector.broadcast %105 : vector<1x512xf32> to vector<56x512xf32>
    %107 = vector.broadcast %cst_26 : f32 to vector<56x512xf32>
    %108 = arith.select %101, %106, %107 : vector<56x512xi1>, vector<56x512xf32>
    %109 = arith.addf %98, %108 : vector<56x512xf32>
    %110 = vector.extract_strided_slice %2 {offsets = [7, 0], sizes = [1, 512], strides = [1, 1]} : vector<12x512xi32> to vector<1x512xi32>
    %111 = vector.broadcast %110 : vector<1x512xi32> to vector<56x512xi32>
    %112 = arith.cmpi eq, %0, %111 : vector<56x512xi32>
    %113 = vector.extract_strided_slice %3 {offsets = [7, 0], sizes = [1, 512], strides = [1, 1]} : vector<12x512xf32> to vector<1x512xf32>
    %cst_27 = arith.constant 0.13333334 : f32
    %114 = vector.broadcast %cst_27 : f32 to vector<1x512xf32>
    %115 = arith.mulf %114, %113 : vector<1x512xf32>
    %cst_28 = arith.constant 0.000000e+00 : f32
    %116 = vector.shape_cast %115 : vector<1x512xf32> to vector<1x512xf32>
    %117 = vector.broadcast %116 : vector<1x512xf32> to vector<56x512xf32>
    %118 = vector.broadcast %cst_28 : f32 to vector<56x512xf32>
    %119 = arith.select %112, %117, %118 : vector<56x512xi1>, vector<56x512xf32>
    %120 = arith.addf %109, %119 : vector<56x512xf32>
    %121 = vector.extract_strided_slice %2 {offsets = [8, 0], sizes = [1, 512], strides = [1, 1]} : vector<12x512xi32> to vector<1x512xi32>
    %122 = vector.broadcast %121 : vector<1x512xi32> to vector<56x512xi32>
    %123 = arith.cmpi eq, %0, %122 : vector<56x512xi32>
    %124 = vector.extract_strided_slice %3 {offsets = [8, 0], sizes = [1, 512], strides = [1, 1]} : vector<12x512xf32> to vector<1x512xf32>
    %cst_29 = arith.constant 0.13333334 : f32
    %125 = vector.broadcast %cst_29 : f32 to vector<1x512xf32>
    %126 = arith.mulf %125, %124 : vector<1x512xf32>
    %cst_30 = arith.constant 0.000000e+00 : f32
    %127 = vector.shape_cast %126 : vector<1x512xf32> to vector<1x512xf32>
    %128 = vector.broadcast %127 : vector<1x512xf32> to vector<56x512xf32>
    %129 = vector.broadcast %cst_30 : f32 to vector<56x512xf32>
    %130 = arith.select %123, %128, %129 : vector<56x512xi1>, vector<56x512xf32>
    %131 = arith.addf %120, %130 : vector<56x512xf32>
    %132 = vector.extract_strided_slice %2 {offsets = [9, 0], sizes = [1, 512], strides = [1, 1]} : vector<12x512xi32> to vector<1x512xi32>
    %133 = vector.broadcast %132 : vector<1x512xi32> to vector<56x512xi32>
    %134 = arith.cmpi eq, %0, %133 : vector<56x512xi32>
    %135 = vector.extract_strided_slice %3 {offsets = [9, 0], sizes = [1, 512], strides = [1, 1]} : vector<12x512xf32> to vector<1x512xf32>
    %cst_31 = arith.constant 0.13333334 : f32
    %136 = vector.broadcast %cst_31 : f32 to vector<1x512xf32>
    %137 = arith.mulf %136, %135 : vector<1x512xf32>
    %cst_32 = arith.constant 0.000000e+00 : f32
    %138 = vector.shape_cast %137 : vector<1x512xf32> to vector<1x512xf32>
    %139 = vector.broadcast %138 : vector<1x512xf32> to vector<56x512xf32>
    %140 = vector.broadcast %cst_32 : f32 to vector<56x512xf32>
    %141 = arith.select %134, %139, %140 : vector<56x512xi1>, vector<56x512xf32>
    %142 = arith.addf %131, %141 : vector<56x512xf32>
    %143 = vector.extract_strided_slice %2 {offsets = [10, 0], sizes = [1, 512], strides = [1, 1]} : vector<12x512xi32> to vector<1x512xi32>
    %144 = vector.broadcast %143 : vector<1x512xi32> to vector<56x512xi32>
    %145 = arith.cmpi eq, %0, %144 : vector<56x512xi32>
    %146 = vector.extract_strided_slice %3 {offsets = [10, 0], sizes = [1, 512], strides = [1, 1]} : vector<12x512xf32> to vector<1x512xf32>
    %cst_33 = arith.constant 0.13333334 : f32
    %147 = vector.broadcast %cst_33 : f32 to vector<1x512xf32>
    %148 = arith.mulf %147, %146 : vector<1x512xf32>
    %cst_34 = arith.constant 0.000000e+00 : f32
    %149 = vector.shape_cast %148 : vector<1x512xf32> to vector<1x512xf32>
    %150 = vector.broadcast %149 : vector<1x512xf32> to vector<56x512xf32>
    %151 = vector.broadcast %cst_34 : f32 to vector<56x512xf32>
    %152 = arith.select %145, %150, %151 : vector<56x512xi1>, vector<56x512xf32>
    %153 = arith.addf %142, %152 : vector<56x512xf32>
    %154 = vector.extract_strided_slice %2 {offsets = [11, 0], sizes = [1, 512], strides = [1, 1]} : vector<12x512xi32> to vector<1x512xi32>
    %155 = vector.broadcast %154 : vector<1x512xi32> to vector<56x512xi32>
    %156 = arith.cmpi eq, %0, %155 : vector<56x512xi32>
    %157 = vector.extract_strided_slice %3 {offsets = [11, 0], sizes = [1, 512], strides = [1, 1]} : vector<12x512xf32> to vector<1x512xf32>
    %cst_35 = arith.constant 0.13333334 : f32
    %158 = vector.broadcast %cst_35 : f32 to vector<1x512xf32>
    %159 = arith.mulf %158, %157 : vector<1x512xf32>
    %cst_36 = arith.constant 0.000000e+00 : f32
    %160 = vector.shape_cast %159 : vector<1x512xf32> to vector<1x512xf32>
    %161 = vector.broadcast %160 : vector<1x512xf32> to vector<56x512xf32>
    %162 = vector.broadcast %cst_36 : f32 to vector<56x512xf32>
    %163 = arith.select %156, %161, %162 : vector<56x512xi1>, vector<56x512xf32>
    %164 = arith.addf %153, %163 : vector<56x512xf32>
    %c0_37 = arith.constant 0 : index
    %c0_38 = arith.constant 0 : index
    %165 = vector.load %arg2[%c0_37, %c0_38] : memref<32x56xf32, #tpu.memory_space<vmem>>, vector<32x56xf32>
    %cst_39 = arith.constant dense<0.000000e+00> : vector<32x512xf32>
    %166 = tpu.matmul %165, %164, %cst_39 {dimension_numbers = #tpu.dot_dimension_numbers<[1], [0], [0], [1], [0, 0, 1, 1], [], []>} : vector<32x56xf32>, vector<56x512xf32>, vector<32x512xf32> -> vector<32x512xf32>
    %c0_40 = arith.constant 0 : index
    %c0_41 = arith.constant 0 : index
    %167 = vector.load %arg1[%c0_40, %c0_41] : memref<56x32xf32, #tpu.memory_space<vmem>>, vector<56x32xf32>
    %cst_42 = arith.constant dense<0.000000e+00> : vector<56x512xf32>
    %168 = tpu.matmul %167, %166, %cst_42 {dimension_numbers = #tpu.dot_dimension_numbers<[1], [0], [0], [1], [0, 0, 1, 1], [], []>} : vector<56x32xf32>, vector<32x512xf32>, vector<56x512xf32> -> vector<56x512xf32>
    %c0_43 = arith.constant 0 : index
    %c0_44 = arith.constant 0 : index
    %169 = vector.load %arg6[%c0_43, %c0_44] : memref<8x512xi32, #tpu.memory_space<vmem>>, vector<8x512xi32>
    %170 = vector.extract_strided_slice %169 {offsets = [0, 0], sizes = [1, 512], strides = [1, 1]} : vector<8x512xi32> to vector<1x512xi32>
    %171 = vector.broadcast %170 : vector<1x512xi32> to vector<56x512xi32>
    %172 = arith.cmpi eq, %0, %171 : vector<56x512xi32>
    %cst_45 = arith.constant 0.000000e+00 : f32
    %173 = vector.broadcast %cst_45 : f32 to vector<56x512xf32>
    %174 = arith.select %172, %168, %173 : vector<56x512xi1>, vector<56x512xf32>
    %cst_46 = arith.constant dense<0.000000e+00> : vector<512xf32>
    %175 = vector.multi_reduction <add>, %174, %cst_46 [0] : vector<56x512xf32> to vector<512xf32>
    %176 = vector.shape_cast %175 : vector<512xf32> to vector<1x512xf32>
    %177 = vector.extract_strided_slice %169 {offsets = [1, 0], sizes = [1, 512], strides = [1, 1]} : vector<8x512xi32> to vector<1x512xi32>
    %178 = vector.broadcast %177 : vector<1x512xi32> to vector<56x512xi32>
    %179 = arith.cmpi eq, %0, %178 : vector<56x512xi32>
    %cst_47 = arith.constant 0.000000e+00 : f32
    %180 = vector.broadcast %cst_47 : f32 to vector<56x512xf32>
    %181 = arith.select %179, %168, %180 : vector<56x512xi1>, vector<56x512xf32>
    %cst_48 = arith.constant dense<0.000000e+00> : vector<512xf32>
    %182 = vector.multi_reduction <add>, %181, %cst_48 [0] : vector<56x512xf32> to vector<512xf32>
    %183 = vector.shape_cast %182 : vector<512xf32> to vector<1x512xf32>
    %184 = vector.extract_strided_slice %169 {offsets = [2, 0], sizes = [1, 512], strides = [1, 1]} : vector<8x512xi32> to vector<1x512xi32>
    %185 = vector.broadcast %184 : vector<1x512xi32> to vector<56x512xi32>
    %186 = arith.cmpi eq, %0, %185 : vector<56x512xi32>
    %cst_49 = arith.constant 0.000000e+00 : f32
    %187 = vector.broadcast %cst_49 : f32 to vector<56x512xf32>
    %188 = arith.select %186, %168, %187 : vector<56x512xi1>, vector<56x512xf32>
    %cst_50 = arith.constant dense<0.000000e+00> : vector<512xf32>
    %189 = vector.multi_reduction <add>, %188, %cst_50 [0] : vector<56x512xf32> to vector<512xf32>
    %190 = vector.shape_cast %189 : vector<512xf32> to vector<1x512xf32>
    %191 = vector.extract_strided_slice %169 {offsets = [3, 0], sizes = [1, 512], strides = [1, 1]} : vector<8x512xi32> to vector<1x512xi32>
    %192 = vector.broadcast %191 : vector<1x512xi32> to vector<56x512xi32>
    %193 = arith.cmpi eq, %0, %192 : vector<56x512xi32>
    %cst_51 = arith.constant 0.000000e+00 : f32
    %194 = vector.broadcast %cst_51 : f32 to vector<56x512xf32>
    %195 = arith.select %193, %168, %194 : vector<56x512xi1>, vector<56x512xf32>
    %cst_52 = arith.constant dense<0.000000e+00> : vector<512xf32>
    %196 = vector.multi_reduction <add>, %195, %cst_52 [0] : vector<56x512xf32> to vector<512xf32>
    %197 = vector.shape_cast %196 : vector<512xf32> to vector<1x512xf32>
    %198 = vector.extract_strided_slice %169 {offsets = [4, 0], sizes = [1, 512], strides = [1, 1]} : vector<8x512xi32> to vector<1x512xi32>
    %199 = vector.broadcast %198 : vector<1x512xi32> to vector<56x512xi32>
    %200 = arith.cmpi eq, %0, %199 : vector<56x512xi32>
    %cst_53 = arith.constant 0.000000e+00 : f32
    %201 = vector.broadcast %cst_53 : f32 to vector<56x512xf32>
    %202 = arith.select %200, %168, %201 : vector<56x512xi1>, vector<56x512xf32>
    %cst_54 = arith.constant dense<0.000000e+00> : vector<512xf32>
    %203 = vector.multi_reduction <add>, %202, %cst_54 [0] : vector<56x512xf32> to vector<512xf32>
    %204 = vector.shape_cast %203 : vector<512xf32> to vector<1x512xf32>
    %205 = vector.extract_strided_slice %169 {offsets = [5, 0], sizes = [1, 512], strides = [1, 1]} : vector<8x512xi32> to vector<1x512xi32>
    %206 = vector.broadcast %205 : vector<1x512xi32> to vector<56x512xi32>
    %207 = arith.cmpi eq, %0, %206 : vector<56x512xi32>
    %cst_55 = arith.constant 0.000000e+00 : f32
    %208 = vector.broadcast %cst_55 : f32 to vector<56x512xf32>
    %209 = arith.select %207, %168, %208 : vector<56x512xi1>, vector<56x512xf32>
    %cst_56 = arith.constant dense<0.000000e+00> : vector<512xf32>
    %210 = vector.multi_reduction <add>, %209, %cst_56 [0] : vector<56x512xf32> to vector<512xf32>
    %211 = vector.shape_cast %210 : vector<512xf32> to vector<1x512xf32>
    %212 = vector.extract_strided_slice %169 {offsets = [6, 0], sizes = [1, 512], strides = [1, 1]} : vector<8x512xi32> to vector<1x512xi32>
    %213 = vector.broadcast %212 : vector<1x512xi32> to vector<56x512xi32>
    %214 = arith.cmpi eq, %0, %213 : vector<56x512xi32>
    %cst_57 = arith.constant 0.000000e+00 : f32
    %215 = vector.broadcast %cst_57 : f32 to vector<56x512xf32>
    %216 = arith.select %214, %168, %215 : vector<56x512xi1>, vector<56x512xf32>
    %cst_58 = arith.constant dense<0.000000e+00> : vector<512xf32>
    %217 = vector.multi_reduction <add>, %216, %cst_58 [0] : vector<56x512xf32> to vector<512xf32>
    %218 = vector.shape_cast %217 : vector<512xf32> to vector<1x512xf32>
    %219 = vector.extract_strided_slice %169 {offsets = [7, 0], sizes = [1, 512], strides = [1, 1]} : vector<8x512xi32> to vector<1x512xi32>
    %220 = vector.broadcast %219 : vector<1x512xi32> to vector<56x512xi32>
    %221 = arith.cmpi eq, %0, %220 : vector<56x512xi32>
    %cst_59 = arith.constant 0.000000e+00 : f32
    %222 = vector.broadcast %cst_59 : f32 to vector<56x512xf32>
    %223 = arith.select %221, %168, %222 : vector<56x512xi1>, vector<56x512xf32>
    %cst_60 = arith.constant dense<0.000000e+00> : vector<512xf32>
    %224 = vector.multi_reduction <add>, %223, %cst_60 [0] : vector<56x512xf32> to vector<512xf32>
    %225 = vector.shape_cast %224 : vector<512xf32> to vector<1x512xf32>
    %226 = tpu.concatenate %176, %183, %190, %197, %204, %211, %218, %225 in 0 : vector<1x512xf32>, vector<1x512xf32>, vector<1x512xf32>, vector<1x512xf32>, vector<1x512xf32>, vector<1x512xf32>, vector<1x512xf32>, vector<1x512xf32> -> vector<8x512xf32>
    %cst_61 = arith.constant dense<0xFF800000> : vector<512xf32>
    %227 = vector.multi_reduction <maximumf>, %226, %cst_61 [0] : vector<8x512xf32> to vector<512xf32>
    %228 = vector.shape_cast %227 : vector<512xf32> to vector<1x512xf32>
    %229 = vector.broadcast %228 : vector<1x512xf32> to vector<8x512xf32>
    %230 = arith.subf %226, %229 : vector<8x512xf32>
    %231 = math.exp %230 : vector<8x512xf32>
    %cst_62 = arith.constant dense<0.000000e+00> : vector<512xf32>
    %232 = vector.multi_reduction <add>, %231, %cst_62 [0] : vector<8x512xf32> to vector<512xf32>
    %233 = vector.shape_cast %232 : vector<512xf32> to vector<1x512xf32>
    %234 = tpu.reciprocal %233 {approx = true} : vector<1x512xf32> -> vector<1x512xf32>
    %235 = vector.broadcast %234 : vector<1x512xf32> to vector<8x512xf32>
    %236 = arith.mulf %231, %235 : vector<8x512xf32>
    %c0_63 = arith.constant 0 : index
    %c0_64 = arith.constant 0 : index
    %237 = vector.load %arg7[%c0_63, %c0_64] : memref<8x512xf32, #tpu.memory_space<vmem>>, vector<8x512xf32>
    tpu.vector_store %arg7[%c0_63, %c0_64], %236 {strides = array<i32>} : memref<8x512xf32, #tpu.memory_space<vmem>>, vector<8x512xf32>,
    return
  }
  func.func @transform_0(%arg0: i32) -> (i32, i32) {
    %c0_i32 = arith.constant 0 : i32
    %c0_i32_0 = arith.constant 0 : i32
    %c0_i32_1 = arith.constant 0 : i32
    return %c0_i32, %c0_i32_0 : i32, i32
  }
  func.func @transform_1(%arg0: i32) -> (i32, i32) {
    %c0_i32 = arith.constant 0 : i32
    %c0_i32_0 = arith.constant 0 : i32
    %c0_i32_1 = arith.constant 0 : i32
    return %c0_i32, %c0_i32_0 : i32, i32
  }
  func.func @transform_2(%arg0: i32) -> (i32, i32) {
    %c0_i32 = arith.constant 0 : i32
    %c0_i32_0 = arith.constant 0 : i32
    return %c0_i32, %arg0 : i32, i32
  }
  func.func @transform_3(%arg0: i32) -> (i32, i32) {
    %c0_i32 = arith.constant 0 : i32
    %c0_i32_0 = arith.constant 0 : i32
    return %c0_i32, %arg0 : i32, i32
  }
  func.func @transform_4(%arg0: i32) -> (i32, i32) {
    %c0_i32 = arith.constant 0 : i32
    %c0_i32_0 = arith.constant 0 : i32
    return %c0_i32, %arg0 : i32, i32
  }
  func.func @transform_5(%arg0: i32) -> (i32, i32) {
    %c0_i32 = arith.constant 0 : i32
    %c0_i32_0 = arith.constant 0 : i32
    return %c0_i32, %arg0 : i32, i32
  }
  func.func @transform_6(%arg0: i32) -> (i32, i32) {
    %c0_i32 = arith.constant 0 : i32
    %c0_i32_0 = arith.constant 0 : i32
    return %c0_i32, %arg0 : i32, i32
  }
}

</mosaic_0001>

<llo_original>
// kernel: tpu_custom_call.1
$region0: #{tpu_custom_call.1}
  #allocation0 [shape = 'u32[]', space=smem, size = 0x4, offset = 0x4, fixed_abs, tag = 'smem constant byte address 0x4 - core index']
  #allocation1 [shape = 'u32[144,128]{1,0:T(1,128)}', space=vmem, size = 0x12000, scoped, tag = 'internal scratch']
  %s0 = inlined_call_operand.vmem [shape: f32[56,32], index: 0, kind: input, shape index: {}]
  %s1 = inlined_call_operand.vmem [shape: f32[32,56], index: 1, kind: input, shape index: {}]
  %s2 = inlined_call_operand.hbm [shape: s32[4,1024], index: 2, kind: input, shape index: {}]
  %s3 = inlined_call_operand.hbm [shape: s32[12,1024], index: 3, kind: input, shape index: {}]
  %s4 = inlined_call_operand.hbm [shape: f32[12,1024], index: 4, kind: input, shape index: {}]
  %s5 = inlined_call_operand.vmem [shape: s32[8,1024], index: 5, kind: input, shape index: {}]
  %s6 = inlined_call_operand.hbm [shape: f32[8,1024], index: 6, kind: output, shape index: {}]
  %s7 = sld [smem:[#allocation0]]
  $region69: #{tpu_custom_call.1} parent=0
    _
  %s9 = ssub.s32 1, %s7
  %s10 = scalar_select 0, %s9, %s7
  $region1: #{tpu_custom_call.1} parent=0
    #allocation2 [shape = 'u8[16384]{0}', space=vmem, size = 0x4000, scoped, tag = 'input window, operand 2']
    #allocation3 [shape = 's32[2]{0}', space=sflag, size = 0x8, scoped, tag = 'scoped memory for tpu_custom_call.1']
    #allocation4 [shape = 's32[2]{0}', space=sflag, size = 0x8, scoped, tag = 'scoped memory for tpu_custom_call.1']
    #allocation5 [shape = 'u8[65536]{0}', space=vmem, size = 0x10000, scoped, tag = 'input window, operand 3']
    #allocation6 [shape = 's32[2]{0}', space=sflag, size = 0x8, scoped, tag = 'scoped memory for tpu_custom_call.1']
    #allocation7 [shape = 'u8[65536]{0}', space=vmem, size = 0x10000, scoped, tag = 'input window, operand 4']
    #allocation8 [shape = 'u8[32768]{0}', space=vmem, size = 0x8000, scoped, tag = 'output window, operand 0']
    %11 = vsyncpa [#allocation3], 0
    %s12 = scalar_lea.sflag [#allocation3], 1
    %13 = vsyncpa %s12, 0
    %14 = vsyncpa [#allocation6], 0
    %s15 = scalar_lea.sflag [#allocation6], 1
    %16 = vsyncpa %s15, 0
    %17 = vsyncpa [#allocation4], 0
    %s18 = scalar_lea.sflag [#allocation4], 1
    %19 = vsyncpa %s18, 0
    loop: start=0, step=1, limit=4
    $region2: #{tpu_custom_call.1} parent=1 // loop_pre_header
      _
    $region3: #{tpu_custom_call.1} parent=1 // loop_header
      %s21 = sphi 0, %s25
      %p22 = scmp.ge.s32.totalorder %s21, 4
      %s29 = sphi 0, %s29
      %s31 = sphi 0, %s29
      %s32 = sphi 0, %s31
      %s46 = sphi 0, %s32
      %s50 = sphi 0, %s50
      %s52 = sphi 0, %s50
      %s53 = sphi 0, %s52
      %s67 = sphi 0, %s53
      %s73 = sphi 0, %s75
      %s76 = sphi 0, %s73
      %s77 = sphi 0, %s76
      %s93 = sphi 0, %s77
      %s99 = sphi 0, %s101
      %s102 = sphi 0, %s99
      %s103 = sphi 0, %s102
      %s119 = sphi 0, %s103
      %s125 = sphi 0, %s127
      %s128 = sphi 0, %s125
      %s129 = sphi 0, %s128
      %s145 = sphi 0, %s129
      %s151 = sphi 0, %s153
      %s154 = sphi 0, %s151
      %s155 = sphi 0, %s154
      %s171 = sphi 0, %s155
      %s177 = sphi 0, %s179
      %s180 = sphi 0, %s177
      %s181 = sphi 0, %s180
      %s197 = sphi 0, %s181
    $region4: #{tpu_custom_call.1} parent=1 // loop_header_branch
      %24 = sbr.rel (%p22) target = $region8
    $region5: #{tpu_custom_call.1} parent=1 // loop_body
      %s26 = ssub.s32 %s21, 1
      %s27 = ssub.s32 %s21, 2
      %s28 = sadd.s32 %s21, 1
      %s30 = sadd.s32 %s29, 1
      %p33 = scmp.eq.s32.totalorder %s21, 1
      %p34 = scmp.ne.s32.totalorder %s29, %s31
      %p35 = scmp.eq.s32.totalorder %s21, 0
      %p36 = por %p34, %p35
      %p37 = scmp.ne.s32.totalorder %s29, %s31
      %p38 = scmp.eq.s32.totalorder %s26, 1
      %p39 = por %p37, %p38
      %p40 = scmp.ne.s32.totalorder %s31, %s32
      %p41 = scmp.eq.s32.totalorder %s26, 0
      %p42 = por %p40, %p41
      %p43 = scmp.ne.s32.totalorder %s31, %s32
      %p44 = scmp.eq.s32.totalorder %s27, 1
      %p45 = por %p43, %p44
      %p47 = scmp.ne.s32.totalorder %s32, %s46
      %p48 = scmp.eq.s32.totalorder %s27, 0
      %p49 = por %p47, %p48
      %s51 = sadd.s32 %s50, 1
      %p54 = scmp.eq.s32.totalorder %s21, 1
      %p55 = scmp.ne.s32.totalorder %s50, %s52
      %p56 = scmp.eq.s32.totalorder %s21, 0
      %p57 = por %p55, %p56
      %p58 = scmp.ne.s32.totalorder %s50, %s52
      %p59 = scmp.eq.s32.totalorder %s26, 1
      %p60 = por %p58, %p59
      %p61 = scmp.ne.s32.totalorder %s52, %s53
      %p62 = scmp.eq.s32.totalorder %s26, 0
      %p63 = por %p61, %p62
      %p64 = scmp.ne.s32.totalorder %s52, %s53
      %p65 = scmp.eq.s32.totalorder %s27, 1
      %p66 = por %p64, %p65
      %p68 = scmp.ne.s32.totalorder %s53, %s67
      %p69 = scmp.eq.s32.totalorder %s27, 0
      %p70 = por %p68, %p69
      %s71 = ssub.s32 %s21, %s28
      %p72 = scmp.eq.s32.totalorder %s71, 0
      %s74 = sadd.s32 %s73, 1
      %s75 = scalar_select %p72, %s73, %s74
      %p78 = pneg %p72
      %p79 = scmp.eq.s32.totalorder %s21, 1
      %p80 = por %p78, %p79
      %p81 = scmp.ne.s32.totalorder %s73, %s76
      %p82 = scmp.eq.s32.totalorder %s21, 0
      %p83 = por %p81, %p82
      %p84 = scmp.ne.s32.totalorder %s73, %s76
      %p85 = scmp.eq.s32.totalorder %s26, 1
      %p86 = por %p84, %p85
      %p87 = scmp.ne.s32.totalorder %s76, %s77
      %p88 = scmp.eq.s32.totalorder %s26, 0
      %p89 = por %p87, %p88
      %p90 = scmp.ne.s32.totalorder %s76, %s77
      %p91 = scmp.eq.s32.totalorder %s27, 1
      %p92 = por %p90, %p91
      %p94 = scmp.ne.s32.totalorder %s77, %s93
      %p95 = scmp.eq.s32.totalorder %s27, 0
      %p96 = por %p94, %p95
      %s97 = ssub.s32 %s21, %s28
      %p98 = scmp.eq.s32.totalorder %s97, 0
      %s100 = sadd.s32 %s99, 1
      %s101 = scalar_select %p98, %s99, %s100
      %p104 = pneg %p98
      %p105 = scmp.eq.s32.totalorder %s21, 1
      %p106 = por %p104, %p105
      %p107 = scmp.ne.s32.totalorder %s99, %s102
      %p108 = scmp.eq.s32.totalorder %s21, 0
      %p109 = por %p107, %p108
      %p110 = scmp.ne.s32.totalorder %s99, %s102
      %p111 = scmp.eq.s32.totalorder %s26, 1
      %p112 = por %p110, %p111
      %p113 = scmp.ne.s32.totalorder %s102, %s103
      %p114 = scmp.eq.s32.totalorder %s26, 0
      %p115 = por %p113, %p114
      %p116 = scmp.ne.s32.totalorder %s102, %s103
      %p117 = scmp.eq.s32.totalorder %s27, 1
      %p118 = por %p116, %p117
      %p120 = scmp.ne.s32.totalorder %s103, %s119
      %p121 = scmp.eq.s32.totalorder %s27, 0
      %p122 = por %p120, %p121
      %s123 = ssub.s32 %s21, %s28
      %p124 = scmp.eq.s32.totalorder %s123, 0
      %s126 = sadd.s32 %s125, 1
      %s127 = scalar_select %p124, %s125, %s126
      %p130 = pneg %p124
      %p131 = scmp.eq.s32.totalorder %s21, 1
      %p132 = por %p130, %p131
      %p133 = scmp.ne.s32.totalorder %s125, %s128
      %p134 = scmp.eq.s32.totalorder %s21, 0
      %p135 = por %p133, %p134
      %p136 = scmp.ne.s32.totalorder %s125, %s128
      %p137 = scmp.eq.s32.totalorder %s26, 1
      %p138 = por %p136, %p137
      %p139 = scmp.ne.s32.totalorder %s128, %s129
      %p140 = scmp.eq.s32.totalorder %s26, 0
      %p141 = por %p139, %p140
      %p142 = scmp.ne.s32.totalorder %s128, %s129
      %p143 = scmp.eq.s32.totalorder %s27, 1
      %p144 = por %p142, %p143
      %p146 = scmp.ne.s32.totalorder %s129, %s145
      %p147 = scmp.eq.s32.totalorder %s27, 0
      %p148 = por %p146, %p147
      %s149 = ssub.s32 %s21, %s28
      %p150 = scmp.eq.s32.totalorder %s149, 0
      %s152 = sadd.s32 %s151, 1
      %s153 = scalar_select %p150, %s151, %s152
      %p156 = pneg %p150
      %p157 = scmp.eq.s32.totalorder %s21, 1
      %p158 = por %p156, %p157
      %p159 = scmp.ne.s32.totalorder %s151, %s154
      %p160 = scmp.eq.s32.totalorder %s21, 0
      %p161 = por %p159, %p160
      %p162 = scmp.ne.s32.totalorder %s151, %s154
      %p163 = scmp.eq.s32.totalorder %s26, 1
      %p164 = por %p162, %p163
      %p165 = scmp.ne.s32.totalorder %s154, %s155
      %p166 = scmp.eq.s32.totalorder %s26, 0
      %p167 = por %p165, %p166
      %p168 = scmp.ne.s32.totalorder %s154, %s155
      %p169 = scmp.eq.s32.totalorder %s27, 1
      %p170 = por %p168, %p169
      %p172 = scmp.ne.s32.totalorder %s155, %s171
      %p173 = scmp.eq.s32.totalorder %s27, 0
      %p174 = por %p172, %p173
      %s175 = ssub.s32 %s21, %s28
      %p176 = scmp.eq.s32.totalorder %s175, 0
      %s178 = sadd.s32 %s177, 1
      %s179 = scalar_select %p176, %s177, %s178
      %p182 = pneg %p176
      %p183 = scmp.eq.s32.totalorder %s21, 1
      %p184 = por %p182, %p183
      %p185 = scmp.ne.s32.totalorder %s177, %s180
      %p186 = scmp.eq.s32.totalorder %s21, 0
      %p187 = por %p185, %p186
      %p188 = scmp.ne.s32.totalorder %s177, %s180
      %p189 = scmp.eq.s32.totalorder %s26, 1
      %p190 = por %p188, %p189
      %p191 = scmp.ne.s32.totalorder %s180, %s181
      %p192 = scmp.eq.s32.totalorder %s26, 0
      %p193 = por %p191, %p192
      %p194 = scmp.ne.s32.totalorder %s180, %s181
      %p195 = scmp.eq.s32.totalorder %s27, 1
      %p196 = por %p194, %p195
      %p198 = scmp.ne.s32.totalorder %s181, %s197
      %p199 = scmp.eq.s32.totalorder %s27, 0
      %p200 = por %p198, %p199
      %p201 = scmp.le.s32.totalorder 1, %s21
      %p202 = scmp.lt.s32.totalorder %s21, 3
      %p203 = pnand %p201, %p202
      %p204 = pneg %p203
      // Predicated region
      $region9: #{tpu_custom_call.1} parent=5 // pred_check
        _
      $region10: #{tpu_custom_call.1} parent=5 // pred_check_branch
        %206 = sbr.rel (%p203) target = $region12
      $region11: #{tpu_custom_call.1} parent=5 // pred_region
        %s207 = ssub.s32 %s21, 1
        // Predicated region
        $region13: #{tpu_custom_call.1} parent=11 // pred_check
          %p208 = pneg %p42
        $region14: #{tpu_custom_call.1} parent=11 // pred_check_branch
          %210 = sbr.rel (%p208) target = $region16
        $region15: #{tpu_custom_call.1} parent=11 // pred_region
          _
        $region16: #{tpu_custom_call.1} parent=11 // pred_fallthru
          _
        // Predicated region
        $region17: #{tpu_custom_call.1} parent=11 // pred_check
          %p211 = pneg %p63
        $region18: #{tpu_custom_call.1} parent=11 // pred_check_branch
          %213 = sbr.rel (%p211) target = $region20
        $region19: #{tpu_custom_call.1} parent=11 // pred_region
          _
        $region20: #{tpu_custom_call.1} parent=11 // pred_fallthru
          _
      $region12: #{tpu_custom_call.1} parent=5 // pred_fallthru
        _
      %p214 = scmp.lt.s32.totalorder %s21, 2
      // Predicated region
      $region21: #{tpu_custom_call.1} parent=5 // pred_check
        %p215 = pneg %p214
      $region22: #{tpu_custom_call.1} parent=5 // pred_check_branch
        %217 = sbr.rel (%p215) target = $region24
      $region23: #{tpu_custom_call.1} parent=5 // pred_region
        // Predicated region
        $region25: #{tpu_custom_call.1} parent=23 // pred_check
          %p218 = pneg %p83
        $region26: #{tpu_custom_call.1} parent=23 // pred_check_branch
          %220 = sbr.rel (%p218) target = $region28
        $region27: #{tpu_custom_call.1} parent=23 // pred_region
          %s221 = sand.u32 %s73, 1
          %s222 = scalar_lea.sflag [#allocation3], %s221
          %s223 = sand.u32 %s73, 1
          %s224 = smul.addr %s223, 16
          %s225 = scalar_lea.vmem [#allocation2], %s224
          %s226 = smul.u32 4, %s21
          %s228 = ssub.s32 256, 256
          %229 = vsyncadd %s222, %s228
          %s230 = smul.addr %s226, 64
          %s231 = scalar_lea.hbm %s2, %s230
          %s233 = sshll.u32 %s225, 4
          %s234 = int_to_ptr.vmem [resolvable:$true] %s233
          %236 = dma.hbm_to_vmem [thread:$0]  %s231, 256, %s234, %s222
        $region28: #{tpu_custom_call.1} parent=23 // pred_fallthru
          _
        // Predicated region
        $region29: #{tpu_custom_call.1} parent=23 // pred_check
          %p237 = pneg %p109
        $region30: #{tpu_custom_call.1} parent=23 // pred_check_branch
          %239 = sbr.rel (%p237) target = $region32
        $region31: #{tpu_custom_call.1} parent=23 // pred_region
          %s240 = sand.u32 %s21, 1
          %s241 = scalar_lea.sflag [#allocation6], %s240
          %s242 = sand.u32 %s99, 1
          %s243 = smul.addr %s242, 64
          %s244 = scalar_lea.vmem [#allocation5], %s243
          %s245 = smul.u32 4, %s21
          %s247 = ssub.s32 1024, 1024
          %248 = vsyncadd %s241, %s247
          %s249 = smul.addr %s245, 128
          %s250 = scalar_lea.hbm %s3, %s249
          %s251 = sshll.u32 %s244, 4
          %s252 = int_to_ptr.vmem [resolvable:$true] %s251
          %257 = dma.hbm_to_vmem [thread:$0]  %s250, 1024, %s252, %s241, 1024, 512, 32
        $region32: #{tpu_custom_call.1} parent=23 // pred_fallthru
          _
        // Predicated region
        $region33: #{tpu_custom_call.1} parent=23 // pred_check
          %p258 = pneg %p135
        $region34: #{tpu_custom_call.1} parent=23 // pred_check_branch
          %260 = sbr.rel (%p258) target = $region36
        $region35: #{tpu_custom_call.1} parent=23 // pred_region
          %s261 = sand.u32 %s21, 1
          %s262 = scalar_lea.sflag [#allocation6], %s261
          %s263 = sand.u32 %s125, 1
          %s264 = smul.addr %s263, 64
          %s265 = scalar_lea.vmem [#allocation7], %s264
          %s266 = smul.u32 4, %s21
          %s268 = ssub.s32 1024, 1024
          %269 = vsyncadd %s262, %s268
          %s270 = smul.addr %s266, 128
          %s271 = scalar_lea.hbm %s4, %s270
          %s272 = sshll.u32 %s265, 4
          %s273 = int_to_ptr.vmem [resolvable:$true] %s272
          %278 = dma.hbm_to_vmem [thread:$0]  %s271, 1024, %s273, %s262, 1024, 512, 32
        $region36: #{tpu_custom_call.1} parent=23 // pred_fallthru
          _
        // Predicated region
        $region37: #{tpu_custom_call.1} parent=23 // pred_check
          %p279 = pneg %p161
        $region38: #{tpu_custom_call.1} parent=23 // pred_check_branch
          %281 = sbr.rel (%p279) target = $region40
        $region39: #{tpu_custom_call.1} parent=23 // pred_region
          %s282 = smul.u32 4, %s21
          %p283 = scmp.lt.s32.totalorder %s282, 7
          %s284 = scalar_select %p283, %s282, 7
          %s285 = smul.addr %s284, 8
          %s286 = scalar_lea.vmem %s5, %s285
          %s287 = smul.u32 4, %s21
        $region40: #{tpu_custom_call.1} parent=23 // pred_fallthru
          _
      $region24: #{tpu_custom_call.1} parent=5 // pred_fallthru
        _
      %p288 = scmp.le.s32.totalorder 1, %s21
      %p289 = scmp.lt.s32.totalorder %s21, 3
      %p290 = pnand %p288, %p289
      %p291 = pneg %p290
      // Predicated region
      $region41: #{tpu_custom_call.1} parent=5 // pred_check
        _
      $region42: #{tpu_custom_call.1} parent=5 // pred_check_branch
        %293 = sbr.rel (%p290) target = $region44
      $region43: #{tpu_custom_call.1} parent=5 // pred_region
        %s294 = ssub.s32 %s21, 1
        %s295 = sand.u32 %s76, 1
        %s296 = scalar_lea.sflag [#allocation3], %s295
        %s297 = sand.u32 %s76, 1
        %s298 = smul.addr %s297, 16
        %s299 = scalar_lea.vmem [#allocation2], %s298
        // Predicated region
        $region45: #{tpu_custom_call.1} parent=43 // pred_check
          %p300 = pneg %p89
        $region46: #{tpu_custom_call.1} parent=43 // pred_check_branch
          %302 = sbr.rel (%p300) target = $region48
        $region47: #{tpu_custom_call.1} parent=43 // pred_region
          %303 = dma.done %s296, 256
        $region48: #{tpu_custom_call.1} parent=43 // pred_fallthru
          _
        %s304 = sand.u32 %s26, 1
        %s305 = scalar_lea.sflag [#allocation6], %s304
        %s306 = sand.u32 %s102, 1
        %s307 = smul.addr %s306, 64
        %s308 = scalar_lea.vmem [#allocation5], %s307
        // Predicated region
        $region49: #{tpu_custom_call.1} parent=43 // pred_check
          %p309 = pneg %p115
        $region50: #{tpu_custom_call.1} parent=43 // pred_check_branch
          %311 = sbr.rel (%p309) target = $region52
        $region51: #{tpu_custom_call.1} parent=43 // pred_region
          %312 = dma.done %s305, 1024
        $region52: #{tpu_custom_call.1} parent=43 // pred_fallthru
          _
        %s313 = sand.u32 %s26, 1
        %s314 = scalar_lea.sflag [#allocation6], %s313
        %s315 = sand.u32 %s128, 1
        %s316 = smul.addr %s315, 64
        %s317 = scalar_lea.vmem [#allocation7], %s316
        // Predicated region
        $region53: #{tpu_custom_call.1} parent=43 // pred_check
          %p318 = pneg %p141
        $region54: #{tpu_custom_call.1} parent=43 // pred_check_branch
          %320 = sbr.rel (%p318) target = $region56
        $region55: #{tpu_custom_call.1} parent=43 // pred_region
          %321 = dma.done %s314, 1024
        $region56: #{tpu_custom_call.1} parent=43 // pred_fallthru
          _
        %p322 = pneg %p42
        %p323 = pneg %p39
        %p324 = pneg %p63
        %p325 = pneg %p60
        %s326 = sand.u32 %s76, 1
        %s327 = scalar_lea.sflag [#allocation3], %s326
        %s328 = sand.u32 %s76, 1
        %s329 = smul.addr %s328, 16
        %s330 = scalar_lea.vmem [#allocation2], %s329
        %p331 = pneg %p89
        %p332 = pneg %p86
        %s333 = sand.u32 %s26, 1
        %s334 = scalar_lea.sflag [#allocation6], %s333
        %s335 = sand.u32 %s102, 1
        %s336 = smul.addr %s335, 64
        %s337 = scalar_lea.vmem [#allocation5], %s336
        %p338 = pneg %p115
        %p339 = pneg %p112
        %s340 = sand.u32 %s26, 1
        %s341 = scalar_lea.sflag [#allocation6], %s340
        %s342 = sand.u32 %s128, 1
        %s343 = smul.addr %s342, 64
        %s344 = scalar_lea.vmem [#allocation7], %s343
        %p345 = pneg %p141
        %p346 = pneg %p138
        %s347 = smul.u32 4, %s26
        %p348 = scmp.lt.s32.totalorder %s347, 7
        %s349 = scalar_select %p348, %s347, 7
        %s350 = smul.addr %s349, 8
        %s351 = scalar_lea.vmem %s5, %s350
        %p352 = pneg %p167
        %p353 = pneg %p164
        %p354 = pneg %p193
        %p355 = pneg %p190
        %s356 = sand.u32 %s180, 1
        %s357 = scalar_lea.sflag [#allocation4], %s356
        %s358 = sand.u32 %s180, 1
        %s359 = smul.addr %s358, 32
        %s360 = scalar_lea.vmem [#allocation8], %s359
        %s361 = smul.u32 4, %s26
        %s362 = smul.u32 4, %s26
        %s363 = smul.u32 4, %s26
        %s364 = smul.u32 4, %s26
        %p365 = scmp.lt.s32.totalorder %s364, 7
        %s366 = scalar_select %p365, %s364, 7
        %s367 = smul.addr %s366, 8
        %s368 = scalar_lea.vmem %s5, %s367
        %s369 = smul.u32 4, %s26
        %s370 = smul.u32 4, %s26
        %v371 = vlaneseq
        %v372 = vshrl.u32 %v371, 7
        %v373 = vadd.s32 %v372, 8
        %v374 = vadd.s32 %v372, 16
        %v375 = vadd.s32 %v372, 24
        %v376 = vadd.s32 %v372, 32
        %v377 = vadd.s32 %v372, 40
        %v378 = vadd.s32 %v372, 48
        %v379 = vld [vmem:[%s299] sm:$0xff]
        %v380 = vld [vmem:[%s299 + $0x8] sm:$0xff]
        %v381 = vld [vmem:[%s308] sm:$0xff]
        %v382 = vld [vmem:[%s308 + $0x8] sm:$0xff]
        %v383 = vld [vmem:[%s308 + $0x10] sm:$0xff]
        %v384 = vld [vmem:[%s308 + $0x18] sm:$0xff]
        %v385 = vld [vmem:[%s308 + $0x20] sm:$0xf]
        %v386 = vld [vmem:[%s308 + $0x28] sm:$0xf]
        %v387 = vld [vmem:[%s308 + $0x30] sm:$0xf]
        %v388 = vld [vmem:[%s308 + $0x38] sm:$0xf]
        %v389 = vld [vmem:[%s317] sm:$0xff]
        %v390 = vld [vmem:[%s317 + $0x8] sm:$0xff]
        %v391 = vld [vmem:[%s317 + $0x10] sm:$0xff]
        %v392 = vld [vmem:[%s317 + $0x18] sm:$0xff]
        %v393 = vld [vmem:[%s317 + $0x20] sm:$0xf]
        %v394 = vld [vmem:[%s317 + $0x28] sm:$0xf]
        %v395 = vld [vmem:[%s317 + $0x30] sm:$0xf]
        %v396 = vld [vmem:[%s317 + $0x38] sm:$0xf]
        %v397 = vlaneseq
        %v398 = vshrl.u32 %v397, 7
        %v399 = vsub.s32 0, %v398
        %v400 = vrot.slane %v379, %v399
        %v401 = vlaneseq
        %v402 = vshrl.u32 %v401, 7
        %v403 = vsub.s32 4, %v402
        %v404 = vrot.slane %v379, %v403
        %v405 = vlaneseq
        %v406 = vshrl.u32 %v405, 7
        %v407 = vsub.s32 0, %v406
        %v408 = vrot.slane %v380, %v407
        %v409 = vlaneseq
        %v410 = vshrl.u32 %v409, 7
        %v411 = vsub.s32 4, %v410
        %v412 = vrot.slane %v380, %v411
        %v413 = vlaneseq
        %v414 = vshrl.u32 %v413, 7
        %v415 = vsub.s32 0, %v414
        %v416 = vrot.slane %v400, %v415
        %v417 = vlaneseq
        %v418 = vshrl.u32 %v417, 7
        %v419 = vsub.s32 0, %v418
        %v420 = vrot.slane %v404, %v419
        %v421 = vlaneseq
        %v422 = vshrl.u32 %v421, 7
        %v423 = vsub.s32 0, %v422
        %v424 = vrot.slane %v408, %v423
        %v425 = vlaneseq
        %v426 = vshrl.u32 %v425, 7
        %v427 = vsub.s32 0, %v426
        %v428 = vrot.slane %v412, %v427
        %vm429 = vcmp.eq.s32.totalorder %v372, %v416
        %vm430 = vcmp.eq.s32.totalorder %v372, %v420
        %vm431 = vcmp.eq.s32.totalorder %v372, %v424
        %vm432 = vcmp.eq.s32.totalorder %v372, %v428
        %vm433 = vcmp.eq.s32.totalorder %v373, %v416
        %vm434 = vcmp.eq.s32.totalorder %v373, %v420
        %vm435 = vcmp.eq.s32.totalorder %v373, %v424
        %vm436 = vcmp.eq.s32.totalorder %v373, %v428
        %vm437 = vcmp.eq.s32.totalorder %v374, %v416
        %vm438 = vcmp.eq.s32.totalorder %v374, %v420
        %vm439 = vcmp.eq.s32.totalorder %v374, %v424
        %vm440 = vcmp.eq.s32.totalorder %v374, %v428
        %vm441 = vcmp.eq.s32.totalorder %v375, %v416
        %vm442 = vcmp.eq.s32.totalorder %v375, %v420
        %vm443 = vcmp.eq.s32.totalorder %v375, %v424
        %vm444 = vcmp.eq.s32.totalorder %v375, %v428
        %vm445 = vcmp.eq.s32.totalorder %v376, %v416
        %vm446 = vcmp.eq.s32.totalorder %v376, %v420
        %vm447 = vcmp.eq.s32.totalorder %v376, %v424
        %vm448 = vcmp.eq.s32.totalorder %v376, %v428
        %vm449 = vcmp.eq.s32.totalorder %v377, %v416
        %vm450 = vcmp.eq.s32.totalorder %v377, %v420
        %vm451 = vcmp.eq.s32.totalorder %v377, %v424
        %vm452 = vcmp.eq.s32.totalorder %v377, %v428
        %vm453 = vcmp.eq.s32.totalorder %v378, %v416
        %vm454 = vcmp.eq.s32.totalorder %v378, %v420
        %vm455 = vcmp.eq.s32.totalorder %v378, %v424
        %vm456 = vcmp.eq.s32.totalorder %v378, %v428
        %v457 = vsel %vm429, 0.6, 0.0
        %v458 = vsel %vm430, 0.6, 0.0
        %v459 = vsel %vm431, 0.6, 0.0
        %v460 = vsel %vm432, 0.6, 0.0
        %v461 = vsel %vm433, 0.6, 0.0
        %v462 = vsel %vm434, 0.6, 0.0
        %v463 = vsel %vm435, 0.6, 0.0
        %v464 = vsel %vm436, 0.6, 0.0
        %v465 = vsel %vm437, 0.6, 0.0
        %v466 = vsel %vm438, 0.6, 0.0
        %v467 = vsel %vm439, 0.6, 0.0
        %v468 = vsel %vm440, 0.6, 0.0
        %v469 = vsel %vm441, 0.6, 0.0
        %v470 = vsel %vm442, 0.6, 0.0
        %v471 = vsel %vm443, 0.6, 0.0
        %v472 = vsel %vm444, 0.6, 0.0
        %v473 = vsel %vm445, 0.6, 0.0
        %v474 = vsel %vm446, 0.6, 0.0
        %v475 = vsel %vm447, 0.6, 0.0
        %v476 = vsel %vm448, 0.6, 0.0
        %v477 = vsel %vm449, 0.6, 0.0
        %v478 = vsel %vm450, 0.6, 0.0
        %v479 = vsel %vm451, 0.6, 0.0
        %v480 = vsel %vm452, 0.6, 0.0
        %v481 = vsel %vm453, 0.6, 0.0
        %v482 = vsel %vm454, 0.6, 0.0
        %v483 = vsel %vm455, 0.6, 0.0
        %v484 = vsel %vm456, 0.6, 0.0
        %v485 = vadd.f32 %v457, 0.0
        %v486 = vadd.f32 %v458, 0.0
        %v487 = vadd.f32 %v459, 0.0
        %v488 = vadd.f32 %v460, 0.0
        %v489 = vadd.f32 %v461, 0.0
        %v490 = vadd.f32 %v462, 0.0
        %v491 = vadd.f32 %v463, 0.0
        %v492 = vadd.f32 %v464, 0.0
        %v493 = vadd.f32 %v465, 0.0
        %v494 = vadd.f32 %v466, 0.0
        %v495 = vadd.f32 %v467, 0.0
        %v496 = vadd.f32 %v468, 0.0
        %v497 = vadd.f32 %v469, 0.0
        %v498 = vadd.f32 %v470, 0.0
        %v499 = vadd.f32 %v471, 0.0
        %v500 = vadd.f32 %v472, 0.0
        %v501 = vadd.f32 %v473, 0.0
        %v502 = vadd.f32 %v474, 0.0
        %v503 = vadd.f32 %v475, 0.0
        %v504 = vadd.f32 %v476, 0.0
        %v505 = vadd.f32 %v477, 0.0
        %v506 = vadd.f32 %v478, 0.0
        %v507 = vadd.f32 %v479, 0.0
        %v508 = vadd.f32 %v480, 0.0
        %v509 = vadd.f32 %v481, 0.0
        %v510 = vadd.f32 %v482, 0.0
        %v511 = vadd.f32 %v483, 0.0
        %v512 = vadd.f32 %v484, 0.0
        %v513 = vlaneseq
        %v514 = vshrl.u32 %v513, 7
        %v515 = vsub.s32 1, %v514
        %v516 = vrot.slane %v379, %v515
        %v517 = vlaneseq
        %v518 = vshrl.u32 %v517, 7
        %v519 = vsub.s32 5, %v518
        %v520 = vrot.slane %v379, %v519
        %v521 = vlaneseq
        %v522 = vshrl.u32 %v521, 7
        %v523 = vsub.s32 1, %v522
        %v524 = vrot.slane %v380, %v523
        %v525 = vlaneseq
        %v526 = vshrl.u32 %v525, 7
        %v527 = vsub.s32 5, %v526
        %v528 = vrot.slane %v380, %v527
        %v529 = vlaneseq
        %v530 = vshrl.u32 %v529, 7
        %v531 = vsub.s32 1, %v530
        %v532 = vrot.slane %v516, %v531
        %v533 = vlaneseq
        %v534 = vshrl.u32 %v533, 7
        %v535 = vsub.s32 1, %v534
        %v536 = vrot.slane %v520, %v535
        %v537 = vlaneseq
        %v538 = vshrl.u32 %v537, 7
        %v539 = vsub.s32 1, %v538
        %v540 = vrot.slane %v524, %v539
        %v541 = vlaneseq
        %v542 = vshrl.u32 %v541, 7
        %v543 = vsub.s32 1, %v542
        %v544 = vrot.slane %v528, %v543
        %vm545 = vcmp.eq.s32.totalorder %v372, %v532
        %vm546 = vcmp.eq.s32.totalorder %v372, %v536
        %vm547 = vcmp.eq.s32.totalorder %v372, %v540
        %vm548 = vcmp.eq.s32.totalorder %v372, %v544
        %vm549 = vcmp.eq.s32.totalorder %v373, %v532
        %vm550 = vcmp.eq.s32.totalorder %v373, %v536
        %vm551 = vcmp.eq.s32.totalorder %v373, %v540
        %vm552 = vcmp.eq.s32.totalorder %v373, %v544
        %vm553 = vcmp.eq.s32.totalorder %v374, %v532
        %vm554 = vcmp.eq.s32.totalorder %v374, %v536
        %vm555 = vcmp.eq.s32.totalorder %v374, %v540
        %vm556 = vcmp.eq.s32.totalorder %v374, %v544
        %vm557 = vcmp.eq.s32.totalorder %v375, %v532
        %vm558 = vcmp.eq.s32.totalorder %v375, %v536
        %vm559 = vcmp.eq.s32.totalorder %v375, %v540
        %vm560 = vcmp.eq.s32.totalorder %v375, %v544
        %vm561 = vcmp.eq.s32.totalorder %v376, %v532
        %vm562 = vcmp.eq.s32.totalorder %v376, %v536
        %vm563 = vcmp.eq.s32.totalorder %v376, %v540
        %vm564 = vcmp.eq.s32.totalorder %v376, %v544
        %vm565 = vcmp.eq.s32.totalorder %v377, %v532
        %vm566 = vcmp.eq.s32.totalorder %v377, %v536
        %vm567 = vcmp.eq.s32.totalorder %v377, %v540
        %vm568 = vcmp.eq.s32.totalorder %v377, %v544
        %vm569 = vcmp.eq.s32.totalorder %v378, %v532
        %vm570 = vcmp.eq.s32.totalorder %v378, %v536
        %vm571 = vcmp.eq.s32.totalorder %v378, %v540
        %vm572 = vcmp.eq.s32.totalorder %v378, %v544
        %v573 = vsel %vm545, 0.6, 0.0
        %v574 = vsel %vm546, 0.6, 0.0
        %v575 = vsel %vm547, 0.6, 0.0
        %v576 = vsel %vm548, 0.6, 0.0
        %v577 = vsel %vm549, 0.6, 0.0
        %v578 = vsel %vm550, 0.6, 0.0
        %v579 = vsel %vm551, 0.6, 0.0
        %v580 = vsel %vm552, 0.6, 0.0
        %v581 = vsel %vm553, 0.6, 0.0
        %v582 = vsel %vm554, 0.6, 0.0
        %v583 = vsel %vm555, 0.6, 0.0
        %v584 = vsel %vm556, 0.6, 0.0
        %v585 = vsel %vm557, 0.6, 0.0
        %v586 = vsel %vm558, 0.6, 0.0
        %v587 = vsel %vm559, 0.6, 0.0
        %v588 = vsel %vm560, 0.6, 0.0
        %v589 = vsel %vm561, 0.6, 0.0
        %v590 = vsel %vm562, 0.6, 0.0
        %v591 = vsel %vm563, 0.6, 0.0
        %v592 = vsel %vm564, 0.6, 0.0
        %v593 = vsel %vm565, 0.6, 0.0
        %v594 = vsel %vm566, 0.6, 0.0
        %v595 = vsel %vm567, 0.6, 0.0
        %v596 = vsel %vm568, 0.6, 0.0
        %v597 = vsel %vm569, 0.6, 0.0
        %v598 = vsel %vm570, 0.6, 0.0
        %v599 = vsel %vm571, 0.6, 0.0
        %v600 = vsel %vm572, 0.6, 0.0
        %v601 = vadd.f32 %v485, %v573
        %v602 = vadd.f32 %v486, %v574
        %v603 = vadd.f32 %v487, %v575
        %v604 = vadd.f32 %v488, %v576
        %v605 = vadd.f32 %v489, %v577
        %v606 = vadd.f32 %v490, %v578
        %v607 = vadd.f32 %v491, %v579
        %v608 = vadd.f32 %v492, %v580
        %v609 = vadd.f32 %v493, %v581
        %v610 = vadd.f32 %v494, %v582
        %v611 = vadd.f32 %v495, %v583
        %v612 = vadd.f32 %v496, %v584
        %v613 = vadd.f32 %v497, %v585
        %v614 = vadd.f32 %v498, %v586
        %v615 = vadd.f32 %v499, %v587
        %v616 = vadd.f32 %v500, %v588
        %v617 = vadd.f32 %v501, %v589
        %v618 = vadd.f32 %v502, %v590
        %v619 = vadd.f32 %v503, %v591
        %v620 = vadd.f32 %v504, %v592
        %v621 = vadd.f32 %v505, %v593
        %v622 = vadd.f32 %v506, %v594
        %v623 = vadd.f32 %v507, %v595
        %v624 = vadd.f32 %v508, %v596
        %v625 = vadd.f32 %v509, %v597
        %v626 = vadd.f32 %v510, %v598
        %v627 = vadd.f32 %v511, %v599
        %v628 = vadd.f32 %v512, %v600
        %v629 = vlaneseq
        %v630 = vshrl.u32 %v629, 7
        %v631 = vsub.s32 2, %v630
        %v632 = vrot.slane %v379, %v631
        %v633 = vlaneseq
        %v634 = vshrl.u32 %v633, 7
        %v635 = vsub.s32 6, %v634
        %v636 = vrot.slane %v379, %v635
        %v637 = vlaneseq
        %v638 = vshrl.u32 %v637, 7
        %v639 = vsub.s32 2, %v638
        %v640 = vrot.slane %v380, %v639
        %v641 = vlaneseq
        %v642 = vshrl.u32 %v641, 7
        %v643 = vsub.s32 6, %v642
        %v644 = vrot.slane %v380, %v643
        %v645 = vlaneseq
        %v646 = vshrl.u32 %v645, 7
        %v647 = vsub.s32 2, %v646
        %v648 = vrot.slane %v632, %v647
        %v649 = vlaneseq
        %v650 = vshrl.u32 %v649, 7
        %v651 = vsub.s32 2, %v650
        %v652 = vrot.slane %v636, %v651
        %v653 = vlaneseq
        %v654 = vshrl.u32 %v653, 7
        %v655 = vsub.s32 2, %v654
        %v656 = vrot.slane %v640, %v655
        %v657 = vlaneseq
        %v658 = vshrl.u32 %v657, 7
        %v659 = vsub.s32 2, %v658
        %v660 = vrot.slane %v644, %v659
        %vm661 = vcmp.eq.s32.totalorder %v372, %v648
        %vm662 = vcmp.eq.s32.totalorder %v372, %v652
        %vm663 = vcmp.eq.s32.totalorder %v372, %v656
        %vm664 = vcmp.eq.s32.totalorder %v372, %v660
        %vm665 = vcmp.eq.s32.totalorder %v373, %v648
        %vm666 = vcmp.eq.s32.totalorder %v373, %v652
        %vm667 = vcmp.eq.s32.totalorder %v373, %v656
        %vm668 = vcmp.eq.s32.totalorder %v373, %v660
        %vm669 = vcmp.eq.s32.totalorder %v374, %v648
        %vm670 = vcmp.eq.s32.totalorder %v374, %v652
        %vm671 = vcmp.eq.s32.totalorder %v374, %v656
        %vm672 = vcmp.eq.s32.totalorder %v374, %v660
        %vm673 = vcmp.eq.s32.totalorder %v375, %v648
        %vm674 = vcmp.eq.s32.totalorder %v375, %v652
        %vm675 = vcmp.eq.s32.totalorder %v375, %v656
        %vm676 = vcmp.eq.s32.totalorder %v375, %v660
        %vm677 = vcmp.eq.s32.totalorder %v376, %v648
        %vm678 = vcmp.eq.s32.totalorder %v376, %v652
        %vm679 = vcmp.eq.s32.totalorder %v376, %v656
        %vm680 = vcmp.eq.s32.totalorder %v376, %v660
        %vm681 = vcmp.eq.s32.totalorder %v377, %v648
        %vm682 = vcmp.eq.s32.totalorder %v377, %v652
        %vm683 = vcmp.eq.s32.totalorder %v377, %v656
        %vm684 = vcmp.eq.s32.totalorder %v377, %v660
        %vm685 = vcmp.eq.s32.totalorder %v378, %v648
        %vm686 = vcmp.eq.s32.totalorder %v378, %v652
        %vm687 = vcmp.eq.s32.totalorder %v378, %v656
        %vm688 = vcmp.eq.s32.totalorder %v378, %v660
        %v689 = vsel %vm661, 0.6, 0.0
        %v690 = vsel %vm662, 0.6, 0.0
        %v691 = vsel %vm663, 0.6, 0.0
        %v692 = vsel %vm664, 0.6, 0.0
        %v693 = vsel %vm665, 0.6, 0.0
        %v694 = vsel %vm666, 0.6, 0.0
        %v695 = vsel %vm667, 0.6, 0.0
        %v696 = vsel %vm668, 0.6, 0.0
        %v697 = vsel %vm669, 0.6, 0.0
        %v698 = vsel %vm670, 0.6, 0.0
        %v699 = vsel %vm671, 0.6, 0.0
        %v700 = vsel %vm672, 0.6, 0.0
        %v701 = vsel %vm673, 0.6, 0.0
        %v702 = vsel %vm674, 0.6, 0.0
        %v703 = vsel %vm675, 0.6, 0.0
        %v704 = vsel %vm676, 0.6, 0.0
        %v705 = vsel %vm677, 0.6, 0.0
        %v706 = vsel %vm678, 0.6, 0.0
        %v707 = vsel %vm679, 0.6, 0.0
        %v708 = vsel %vm680, 0.6, 0.0
        %v709 = vsel %vm681, 0.6, 0.0
        %v710 = vsel %vm682, 0.6, 0.0
        %v711 = vsel %vm683, 0.6, 0.0
        %v712 = vsel %vm684, 0.6, 0.0
        %v713 = vsel %vm685, 0.6, 0.0
        %v714 = vsel %vm686, 0.6, 0.0
        %v715 = vsel %vm687, 0.6, 0.0
        %v716 = vsel %vm688, 0.6, 0.0
        %v717 = vadd.f32 %v601, %v689
        %v718 = vadd.f32 %v602, %v690
        %v719 = vadd.f32 %v603, %v691
        %v720 = vadd.f32 %v604, %v692
        %v721 = vadd.f32 %v605, %v693
        %v722 = vadd.f32 %v606, %v694
        %v723 = vadd.f32 %v607, %v695
        %v724 = vadd.f32 %v608, %v696
        %v725 = vadd.f32 %v609, %v697
        %v726 = vadd.f32 %v610, %v698
        %v727 = vadd.f32 %v611, %v699
        %v728 = vadd.f32 %v612, %v700
        %v729 = vadd.f32 %v613, %v701
        %v730 = vadd.f32 %v614, %v702
        %v731 = vadd.f32 %v615, %v703
        %v732 = vadd.f32 %v616, %v704
        %v733 = vadd.f32 %v617, %v705
        %v734 = vadd.f32 %v618, %v706
        %v735 = vadd.f32 %v619, %v707
        %v736 = vadd.f32 %v620, %v708
        %v737 = vadd.f32 %v621, %v709
        %v738 = vadd.f32 %v622, %v710
        %v739 = vadd.f32 %v623, %v711
        %v740 = vadd.f32 %v624, %v712
        %v741 = vadd.f32 %v625, %v713
        %v742 = vadd.f32 %v626, %v714
        %v743 = vadd.f32 %v627, %v715
        %v744 = vadd.f32 %v628, %v716
        %v745 = vlaneseq
        %v746 = vshrl.u32 %v745, 7
        %v747 = vsub.s32 3, %v746
        %v748 = vrot.slane %v379, %v747
        %v749 = vlaneseq
        %v750 = vshrl.u32 %v749, 7
        %v751 = vsub.s32 7, %v750
        %v752 = vrot.slane %v379, %v751
        %v753 = vlaneseq
        %v754 = vshrl.u32 %v753, 7
        %v755 = vsub.s32 3, %v754
        %v756 = vrot.slane %v380, %v755
        %v757 = vlaneseq
        %v758 = vshrl.u32 %v757, 7
        %v759 = vsub.s32 7, %v758
        %v760 = vrot.slane %v380, %v759
        %v761 = vlaneseq
        %v762 = vshrl.u32 %v761, 7
        %v763 = vsub.s32 3, %v762
        %v764 = vrot.slane %v748, %v763
        %v765 = vlaneseq
        %v766 = vshrl.u32 %v765, 7
        %v767 = vsub.s32 3, %v766
        %v768 = vrot.slane %v752, %v767
        %v769 = vlaneseq
        %v770 = vshrl.u32 %v769, 7
        %v771 = vsub.s32 3, %v770
        %v772 = vrot.slane %v756, %v771
        %v773 = vlaneseq
        %v774 = vshrl.u32 %v773, 7
        %v775 = vsub.s32 3, %v774
        %v776 = vrot.slane %v760, %v775
        %vm777 = vcmp.eq.s32.totalorder %v372, %v764
        %vm778 = vcmp.eq.s32.totalorder %v372, %v768
        %vm779 = vcmp.eq.s32.totalorder %v372, %v772
        %vm780 = vcmp.eq.s32.totalorder %v372, %v776
        %vm781 = vcmp.eq.s32.totalorder %v373, %v764
        %vm782 = vcmp.eq.s32.totalorder %v373, %v768
        %vm783 = vcmp.eq.s32.totalorder %v373, %v772
        %vm784 = vcmp.eq.s32.totalorder %v373, %v776
        %vm785 = vcmp.eq.s32.totalorder %v374, %v764
        %vm786 = vcmp.eq.s32.totalorder %v374, %v768
        %vm787 = vcmp.eq.s32.totalorder %v374, %v772
        %vm788 = vcmp.eq.s32.totalorder %v374, %v776
        %vm789 = vcmp.eq.s32.totalorder %v375, %v764
        %vm790 = vcmp.eq.s32.totalorder %v375, %v768
        %vm791 = vcmp.eq.s32.totalorder %v375, %v772
        %vm792 = vcmp.eq.s32.totalorder %v375, %v776
        %vm793 = vcmp.eq.s32.totalorder %v376, %v764
        %vm794 = vcmp.eq.s32.totalorder %v376, %v768
        %vm795 = vcmp.eq.s32.totalorder %v376, %v772
        %vm796 = vcmp.eq.s32.totalorder %v376, %v776
        %vm797 = vcmp.eq.s32.totalorder %v377, %v764
        %vm798 = vcmp.eq.s32.totalorder %v377, %v768
        %vm799 = vcmp.eq.s32.totalorder %v377, %v772
        %vm800 = vcmp.eq.s32.totalorder %v377, %v776
        %vm801 = vcmp.eq.s32.totalorder %v378, %v764
        %vm802 = vcmp.eq.s32.totalorder %v378, %v768
        %vm803 = vcmp.eq.s32.totalorder %v378, %v772
        %vm804 = vcmp.eq.s32.totalorder %v378, %v776
        %v805 = vsel %vm777, 0.6, 0.0
        %v806 = vsel %vm778, 0.6, 0.0
        %v807 = vsel %vm779, 0.6, 0.0
        %v808 = vsel %vm780, 0.6, 0.0
        %v809 = vsel %vm781, 0.6, 0.0
        %v810 = vsel %vm782, 0.6, 0.0
        %v811 = vsel %vm783, 0.6, 0.0
        %v812 = vsel %vm784, 0.6, 0.0
        %v813 = vsel %vm785, 0.6, 0.0
        %v814 = vsel %vm786, 0.6, 0.0
        %v815 = vsel %vm787, 0.6, 0.0
        %v816 = vsel %vm788, 0.6, 0.0
        %v817 = vsel %vm789, 0.6, 0.0
        %v818 = vsel %vm790, 0.6, 0.0
        %v819 = vsel %vm791, 0.6, 0.0
        %v820 = vsel %vm792, 0.6, 0.0
        %v821 = vsel %vm793, 0.6, 0.0
        %v822 = vsel %vm794, 0.6, 0.0
        %v823 = vsel %vm795, 0.6, 0.0
        %v824 = vsel %vm796, 0.6, 0.0
        %v825 = vsel %vm797, 0.6, 0.0
        %v826 = vsel %vm798, 0.6, 0.0
        %v827 = vsel %vm799, 0.6, 0.0
        %v828 = vsel %vm800, 0.6, 0.0
        %v829 = vsel %vm801, 0.6, 0.0
        %v830 = vsel %vm802, 0.6, 0.0
        %v831 = vsel %vm803, 0.6, 0.0
        %v832 = vsel %vm804, 0.6, 0.0
        %v833 = vadd.f32 %v717, %v805
        %v834 = vadd.f32 %v718, %v806
        %v835 = vadd.f32 %v719, %v807
        %v836 = vadd.f32 %v720, %v808
        %v837 = vadd.f32 %v721, %v809
        %v838 = vadd.f32 %v722, %v810
        %v839 = vadd.f32 %v723, %v811
        %v840 = vadd.f32 %v724, %v812
        %v841 = vadd.f32 %v725, %v813
        %v842 = vadd.f32 %v726, %v814
        %v843 = vadd.f32 %v727, %v815
        %v844 = vadd.f32 %v728, %v816
        %v845 = vadd.f32 %v729, %v817
        %v846 = vadd.f32 %v730, %v818
        %v847 = vadd.f32 %v731, %v819
        %v848 = vadd.f32 %v732, %v820
        %v849 = vadd.f32 %v733, %v821
        %v850 = vadd.f32 %v734, %v822
        %v851 = vadd.f32 %v735, %v823
        %v852 = vadd.f32 %v736, %v824
        %v853 = vadd.f32 %v737, %v825
        %v854 = vadd.f32 %v738, %v826
        %v855 = vadd.f32 %v739, %v827
        %v856 = vadd.f32 %v740, %v828
        %v857 = vadd.f32 %v741, %v829
        %v858 = vadd.f32 %v742, %v830
        %v859 = vadd.f32 %v743, %v831
        %v860 = vadd.f32 %v744, %v832
        %v861 = vlaneseq
        %v862 = vshrl.u32 %v861, 7
        %v863 = vsub.s32 0, %v862
        %v864 = vrot.slane %v381, %v863
        %v865 = vlaneseq
        %v866 = vshrl.u32 %v865, 7
        %v867 = vsub.s32 0, %v866
        %v868 = vrot.slane %v382, %v867
        %v869 = vlaneseq
        %v870 = vshrl.u32 %v869, 7
        %v871 = vsub.s32 0, %v870
        %v872 = vrot.slane %v383, %v871
        %v873 = vlaneseq
        %v874 = vshrl.u32 %v873, 7
        %v875 = vsub.s32 0, %v874
        %v876 = vrot.slane %v384, %v875
        %vm877 = vcmp.eq.s32.totalorder %v372, %v864
        %vm878 = vcmp.eq.s32.totalorder %v372, %v868
        %vm879 = vcmp.eq.s32.totalorder %v372, %v872
        %vm880 = vcmp.eq.s32.totalorder %v372, %v876
        %vm881 = vcmp.eq.s32.totalorder %v373, %v864
        %vm882 = vcmp.eq.s32.totalorder %v373, %v868
        %vm883 = vcmp.eq.s32.totalorder %v373, %v872
        %vm884 = vcmp.eq.s32.totalorder %v373, %v876
        %vm885 = vcmp.eq.s32.totalorder %v374, %v864
        %vm886 = vcmp.eq.s32.totalorder %v374, %v868
        %vm887 = vcmp.eq.s32.totalorder %v374, %v872
        %vm888 = vcmp.eq.s32.totalorder %v374, %v876
        %vm889 = vcmp.eq.s32.totalorder %v375, %v864
        %vm890 = vcmp.eq.s32.totalorder %v375, %v868
        %vm891 = vcmp.eq.s32.totalorder %v375, %v872
        %vm892 = vcmp.eq.s32.totalorder %v375, %v876
        %vm893 = vcmp.eq.s32.totalorder %v376, %v864
        %vm894 = vcmp.eq.s32.totalorder %v376, %v868
        %vm895 = vcmp.eq.s32.totalorder %v376, %v872
        %vm896 = vcmp.eq.s32.totalorder %v376, %v876
        %vm897 = vcmp.eq.s32.totalorder %v377, %v864
        %vm898 = vcmp.eq.s32.totalorder %v377, %v868
        %vm899 = vcmp.eq.s32.totalorder %v377, %v872
        %vm900 = vcmp.eq.s32.totalorder %v377, %v876
        %vm901 = vcmp.eq.s32.totalorder %v378, %v864
        %vm902 = vcmp.eq.s32.totalorder %v378, %v868
        %vm903 = vcmp.eq.s32.totalorder %v378, %v872
        %vm904 = vcmp.eq.s32.totalorder %v378, %v876
        %v905 = vmul.f32 %v389, 0.13333334
        %v906 = vmul.f32 %v390, 0.13333334
        %v907 = vmul.f32 %v391, 0.13333334
        %v908 = vmul.f32 %v392, 0.13333334
        %v909 = vlaneseq
        %v910 = vshrl.u32 %v909, 7
        %v911 = vsub.s32 0, %v910
        %v912 = vrot.slane %v905, %v911
        %v913 = vlaneseq
        %v914 = vshrl.u32 %v913, 7
        %v915 = vsub.s32 0, %v914
        %v916 = vrot.slane %v906, %v915
        %v917 = vlaneseq
        %v918 = vshrl.u32 %v917, 7
        %v919 = vsub.s32 0, %v918
        %v920 = vrot.slane %v907, %v919
        %v921 = vlaneseq
        %v922 = vshrl.u32 %v921, 7
        %v923 = vsub.s32 0, %v922
        %v924 = vrot.slane %v908, %v923
        %v925 = vsel %vm877, %v912, 0.0
        %v926 = vsel %vm878, %v916, 0.0
        %v927 = vsel %vm879, %v920, 0.0
        %v928 = vsel %vm880, %v924, 0.0
        %v929 = vsel %vm881, %v912, 0.0
        %v930 = vsel %vm882, %v916, 0.0
        %v931 = vsel %vm883, %v920, 0.0
        %v932 = vsel %vm884, %v924, 0.0
        %v933 = vsel %vm885, %v912, 0.0
        %v934 = vsel %vm886, %v916, 0.0
        %v935 = vsel %vm887, %v920, 0.0
        %v936 = vsel %vm888, %v924, 0.0
        %v937 = vsel %vm889, %v912, 0.0
        %v938 = vsel %vm890, %v916, 0.0
        %v939 = vsel %vm891, %v920, 0.0
        %v940 = vsel %vm892, %v924, 0.0
        %v941 = vsel %vm893, %v912, 0.0
        %v942 = vsel %vm894, %v916, 0.0
        %v943 = vsel %vm895, %v920, 0.0
        %v944 = vsel %vm896, %v924, 0.0
        %v945 = vsel %vm897, %v912, 0.0
        %v946 = vsel %vm898, %v916, 0.0
        %v947 = vsel %vm899, %v920, 0.0
        %v948 = vsel %vm900, %v924, 0.0
        %v949 = vsel %vm901, %v912, 0.0
        %v950 = vsel %vm902, %v916, 0.0
        %v951 = vsel %vm903, %v920, 0.0
        %v952 = vsel %vm904, %v924, 0.0
        %v953 = vadd.f32 %v833, %v925
        %v954 = vadd.f32 %v834, %v926
        %v955 = vadd.f32 %v835, %v927
        %v956 = vadd.f32 %v836, %v928
        %v957 = vadd.f32 %v837, %v929
        %v958 = vadd.f32 %v838, %v930
        %v959 = vadd.f32 %v839, %v931
        %v960 = vadd.f32 %v840, %v932
        %v961 = vadd.f32 %v841, %v933
        %v962 = vadd.f32 %v842, %v934
        %v963 = vadd.f32 %v843, %v935
        %v964 = vadd.f32 %v844, %v936
        %v965 = vadd.f32 %v845, %v937
        %v966 = vadd.f32 %v846, %v938
        %v967 = vadd.f32 %v847, %v939
        %v968 = vadd.f32 %v848, %v940
        %v969 = vadd.f32 %v849, %v941
        %v970 = vadd.f32 %v850, %v942
        %v971 = vadd.f32 %v851, %v943
        %v972 = vadd.f32 %v852, %v944
        %v973 = vadd.f32 %v853, %v945
        %v974 = vadd.f32 %v854, %v946
        %v975 = vadd.f32 %v855, %v947
        %v976 = vadd.f32 %v856, %v948
        %v977 = vadd.f32 %v857, %v949
        %v978 = vadd.f32 %v858, %v950
        %v979 = vadd.f32 %v859, %v951
        %v980 = vadd.f32 %v860, %v952
        %v981 = vlaneseq
        %v982 = vshrl.u32 %v981, 7
        %v983 = vsub.s32 1, %v982
        %v984 = vrot.slane %v381, %v983
        %v985 = vlaneseq
        %v986 = vshrl.u32 %v985, 7
        %v987 = vsub.s32 1, %v986
        %v988 = vrot.slane %v382, %v987
        %v989 = vlaneseq
        %v990 = vshrl.u32 %v989, 7
        %v991 = vsub.s32 1, %v990
        %v992 = vrot.slane %v383, %v991
        %v993 = vlaneseq
        %v994 = vshrl.u32 %v993, 7
        %v995 = vsub.s32 1, %v994
        %v996 = vrot.slane %v384, %v995
        %vm997 = vcmp.eq.s32.totalorder %v372, %v984
        %vm998 = vcmp.eq.s32.totalorder %v372, %v988
        %vm999 = vcmp.eq.s32.totalorder %v372, %v992
        %vm1000 = vcmp.eq.s32.totalorder %v372, %v996
        %vm1001 = vcmp.eq.s32.totalorder %v373, %v984
        %vm1002 = vcmp.eq.s32.totalorder %v373, %v988
        %vm1003 = vcmp.eq.s32.totalorder %v373, %v992
        %vm1004 = vcmp.eq.s32.totalorder %v373, %v996
        %vm1005 = vcmp.eq.s32.totalorder %v374, %v984
        %vm1006 = vcmp.eq.s32.totalorder %v374, %v988
        %vm1007 = vcmp.eq.s32.totalorder %v374, %v992
        %vm1008 = vcmp.eq.s32.totalorder %v374, %v996
        %vm1009 = vcmp.eq.s32.totalorder %v375, %v984
        %vm1010 = vcmp.eq.s32.totalorder %v375, %v988
        %vm1011 = vcmp.eq.s32.totalorder %v375, %v992
        %vm1012 = vcmp.eq.s32.totalorder %v375, %v996
        %vm1013 = vcmp.eq.s32.totalorder %v376, %v984
        %vm1014 = vcmp.eq.s32.totalorder %v376, %v988
        %vm1015 = vcmp.eq.s32.totalorder %v376, %v992
        %vm1016 = vcmp.eq.s32.totalorder %v376, %v996
        %vm1017 = vcmp.eq.s32.totalorder %v377, %v984
        %vm1018 = vcmp.eq.s32.totalorder %v377, %v988
        %vm1019 = vcmp.eq.s32.totalorder %v377, %v992
        %vm1020 = vcmp.eq.s32.totalorder %v377, %v996
        %vm1021 = vcmp.eq.s32.totalorder %v378, %v984
        %vm1022 = vcmp.eq.s32.totalorder %v378, %v988
        %vm1023 = vcmp.eq.s32.totalorder %v378, %v992
        %vm1024 = vcmp.eq.s32.totalorder %v378, %v996
        %v1025 = vlaneseq
        %v1026 = vshrl.u32 %v1025, 7
        %v1027 = vsub.s32 1, %v1026
        %v1028 = vrot.slane %v905, %v1027
        %v1029 = vlaneseq
        %v1030 = vshrl.u32 %v1029, 7
        %v1031 = vsub.s32 1, %v1030
        %v1032 = vrot.slane %v906, %v1031
        %v1033 = vlaneseq
        %v1034 = vshrl.u32 %v1033, 7
        %v1035 = vsub.s32 1, %v1034
        %v1036 = vrot.slane %v907, %v1035
        %v1037 = vlaneseq
        %v1038 = vshrl.u32 %v1037, 7
        %v1039 = vsub.s32 1, %v1038
        %v1040 = vrot.slane %v908, %v1039
        %v1041 = vsel %vm997, %v1028, 0.0
        %v1042 = vsel %vm998, %v1032, 0.0
        %v1043 = vsel %vm999, %v1036, 0.0
        %v1044 = vsel %vm1000, %v1040, 0.0
        %v1045 = vsel %vm1001, %v1028, 0.0
        %v1046 = vsel %vm1002, %v1032, 0.0
        %v1047 = vsel %vm1003, %v1036, 0.0
        %v1048 = vsel %vm1004, %v1040, 0.0
        %v1049 = vsel %vm1005, %v1028, 0.0
        %v1050 = vsel %vm1006, %v1032, 0.0
        %v1051 = vsel %vm1007, %v1036, 0.0
        %v1052 = vsel %vm1008, %v1040, 0.0
        %v1053 = vsel %vm1009, %v1028, 0.0
        %v1054 = vsel %vm1010, %v1032, 0.0
        %v1055 = vsel %vm1011, %v1036, 0.0
        %v1056 = vsel %vm1012, %v1040, 0.0
        %v1057 = vsel %vm1013, %v1028, 0.0
        %v1058 = vsel %vm1014, %v1032, 0.0
        %v1059 = vsel %vm1015, %v1036, 0.0
        %v1060 = vsel %vm1016, %v1040, 0.0
        %v1061 = vsel %vm1017, %v1028, 0.0
        %v1062 = vsel %vm1018, %v1032, 0.0
        %v1063 = vsel %vm1019, %v1036, 0.0
        %v1064 = vsel %vm1020, %v1040, 0.0
        %v1065 = vsel %vm1021, %v1028, 0.0
        %v1066 = vsel %vm1022, %v1032, 0.0
        %v1067 = vsel %vm1023, %v1036, 0.0
        %v1068 = vsel %vm1024, %v1040, 0.0
        %v1069 = vadd.f32 %v953, %v1041
        %v1070 = vadd.f32 %v954, %v1042
        %v1071 = vadd.f32 %v955, %v1043
        %v1072 = vadd.f32 %v956, %v1044
        %v1073 = vadd.f32 %v957, %v1045
        %v1074 = vadd.f32 %v958, %v1046
        %v1075 = vadd.f32 %v959, %v1047
        %v1076 = vadd.f32 %v960, %v1048
        %v1077 = vadd.f32 %v961, %v1049
        %v1078 = vadd.f32 %v962, %v1050
        %v1079 = vadd.f32 %v963, %v1051
        %v1080 = vadd.f32 %v964, %v1052
        %v1081 = vadd.f32 %v965, %v1053
        %v1082 = vadd.f32 %v966, %v1054
        %v1083 = vadd.f32 %v967, %v1055
        %v1084 = vadd.f32 %v968, %v1056
        %v1085 = vadd.f32 %v969, %v1057
        %v1086 = vadd.f32 %v970, %v1058
        %v1087 = vadd.f32 %v971, %v1059
        %v1088 = vadd.f32 %v972, %v1060
        %v1089 = vadd.f32 %v973, %v1061
        %v1090 = vadd.f32 %v974, %v1062
        %v1091 = vadd.f32 %v975, %v1063
        %v1092 = vadd.f32 %v976, %v1064
        %v1093 = vadd.f32 %v977, %v1065
        %v1094 = vadd.f32 %v978, %v1066
        %v1095 = vadd.f32 %v979, %v1067
        %v1096 = vadd.f32 %v980, %v1068
        %v1097 = vlaneseq
        %v1098 = vshrl.u32 %v1097, 7
        %v1099 = vsub.s32 2, %v1098
        %v1100 = vrot.slane %v381, %v1099
        %v1101 = vlaneseq
        %v1102 = vshrl.u32 %v1101, 7
        %v1103 = vsub.s32 2, %v1102
        %v1104 = vrot.slane %v382, %v1103
        %v1105 = vlaneseq
        %v1106 = vshrl.u32 %v1105, 7
        %v1107 = vsub.s32 2, %v1106
        %v1108 = vrot.slane %v383, %v1107
        %v1109 = vlaneseq
        %v1110 = vshrl.u32 %v1109, 7
        %v1111 = vsub.s32 2, %v1110
        %v1112 = vrot.slane %v384, %v1111
        %vm1113 = vcmp.eq.s32.totalorder %v372, %v1100
        %vm1114 = vcmp.eq.s32.totalorder %v372, %v1104
        %vm1115 = vcmp.eq.s32.totalorder %v372, %v1108
        %vm1116 = vcmp.eq.s32.totalorder %v372, %v1112
        %vm1117 = vcmp.eq.s32.totalorder %v373, %v1100
        %vm1118 = vcmp.eq.s32.totalorder %v373, %v1104
        %vm1119 = vcmp.eq.s32.totalorder %v373, %v1108
        %vm1120 = vcmp.eq.s32.totalorder %v373, %v1112
        %vm1121 = vcmp.eq.s32.totalorder %v374, %v1100
        %vm1122 = vcmp.eq.s32.totalorder %v374, %v1104
        %vm1123 = vcmp.eq.s32.totalorder %v374, %v1108
        %vm1124 = vcmp.eq.s32.totalorder %v374, %v1112
        %vm1125 = vcmp.eq.s32.totalorder %v375, %v1100
        %vm1126 = vcmp.eq.s32.totalorder %v375, %v1104
        %vm1127 = vcmp.eq.s32.totalorder %v375, %v1108
        %vm1128 = vcmp.eq.s32.totalorder %v375, %v1112
        %vm1129 = vcmp.eq.s32.totalorder %v376, %v1100
        %vm1130 = vcmp.eq.s32.totalorder %v376, %v1104
        %vm1131 = vcmp.eq.s32.totalorder %v376, %v1108
        %vm1132 = vcmp.eq.s32.totalorder %v376, %v1112
        %vm1133 = vcmp.eq.s32.totalorder %v377, %v1100
        %vm1134 = vcmp.eq.s32.totalorder %v377, %v1104
        %vm1135 = vcmp.eq.s32.totalorder %v377, %v1108
        %vm1136 = vcmp.eq.s32.totalorder %v377, %v1112
        %vm1137 = vcmp.eq.s32.totalorder %v378, %v1100
        %vm1138 = vcmp.eq.s32.totalorder %v378, %v1104
        %vm1139 = vcmp.eq.s32.totalorder %v378, %v1108
        %vm1140 = vcmp.eq.s32.totalorder %v378, %v1112
        %v1141 = vlaneseq
        %v1142 = vshrl.u32 %v1141, 7
        %v1143 = vsub.s32 2, %v1142
        %v1144 = vrot.slane %v905, %v1143
        %v1145 = vlaneseq
        %v1146 = vshrl.u32 %v1145, 7
        %v1147 = vsub.s32 2, %v1146
        %v1148 = vrot.slane %v906, %v1147
        %v1149 = vlaneseq
        %v1150 = vshrl.u32 %v1149, 7
        %v1151 = vsub.s32 2, %v1150
        %v1152 = vrot.slane %v907, %v1151
        %v1153 = vlaneseq
        %v1154 = vshrl.u32 %v1153, 7
        %v1155 = vsub.s32 2, %v1154
        %v1156 = vrot.slane %v908, %v1155
        %v1157 = vsel %vm1113, %v1144, 0.0
        %v1158 = vsel %vm1114, %v1148, 0.0
        %v1159 = vsel %vm1115, %v1152, 0.0
        %v1160 = vsel %vm1116, %v1156, 0.0
        %v1161 = vsel %vm1117, %v1144, 0.0
        %v1162 = vsel %vm1118, %v1148, 0.0
        %v1163 = vsel %vm1119, %v1152, 0.0
        %v1164 = vsel %vm1120, %v1156, 0.0
        %v1165 = vsel %vm1121, %v1144, 0.0
        %v1166 = vsel %vm1122, %v1148, 0.0
        %v1167 = vsel %vm1123, %v1152, 0.0
        %v1168 = vsel %vm1124, %v1156, 0.0
        %v1169 = vsel %vm1125, %v1144, 0.0
        %v1170 = vsel %vm1126, %v1148, 0.0
        %v1171 = vsel %vm1127, %v1152, 0.0
        %v1172 = vsel %vm1128, %v1156, 0.0
        %v1173 = vsel %vm1129, %v1144, 0.0
        %v1174 = vsel %vm1130, %v1148, 0.0
        %v1175 = vsel %vm1131, %v1152, 0.0
        %v1176 = vsel %vm1132, %v1156, 0.0
        %v1177 = vsel %vm1133, %v1144, 0.0
        %v1178 = vsel %vm1134, %v1148, 0.0
        %v1179 = vsel %vm1135, %v1152, 0.0
        %v1180 = vsel %vm1136, %v1156, 0.0
        %v1181 = vsel %vm1137, %v1144, 0.0
        %v1182 = vsel %vm1138, %v1148, 0.0
        %v1183 = vsel %vm1139, %v1152, 0.0
        %v1184 = vsel %vm1140, %v1156, 0.0
        %v1185 = vadd.f32 %v1069, %v1157
        %v1186 = vadd.f32 %v1070, %v1158
        %v1187 = vadd.f32 %v1071, %v1159
        %v1188 = vadd.f32 %v1072, %v1160
        %v1189 = vadd.f32 %v1073, %v1161
        %v1190 = vadd.f32 %v1074, %v1162
        %v1191 = vadd.f32 %v1075, %v1163
        %v1192 = vadd.f32 %v1076, %v1164
        %v1193 = vadd.f32 %v1077, %v1165
        %v1194 = vadd.f32 %v1078, %v1166
        %v1195 = vadd.f32 %v1079, %v1167
        %v1196 = vadd.f32 %v1080, %v1168
        %v1197 = vadd.f32 %v1081, %v1169
        %v1198 = vadd.f32 %v1082, %v1170
        %v1199 = vadd.f32 %v1083, %v1171
        %v1200 = vadd.f32 %v1084, %v1172
        %v1201 = vadd.f32 %v1085, %v1173
        %v1202 = vadd.f32 %v1086, %v1174
        %v1203 = vadd.f32 %v1087, %v1175
        %v1204 = vadd.f32 %v1088, %v1176
        %v1205 = vadd.f32 %v1089, %v1177
        %v1206 = vadd.f32 %v1090, %v1178
        %v1207 = vadd.f32 %v1091, %v1179
        %v1208 = vadd.f32 %v1092, %v1180
        %v1209 = vadd.f32 %v1093, %v1181
        %v1210 = vadd.f32 %v1094, %v1182
        %v1211 = vadd.f32 %v1095, %v1183
        %v1212 = vadd.f32 %v1096, %v1184
        %v1213 = vlaneseq
        %v1214 = vshrl.u32 %v1213, 7
        %v1215 = vsub.s32 3, %v1214
        %v1216 = vrot.slane %v381, %v1215
        %v1217 = vlaneseq
        %v1218 = vshrl.u32 %v1217, 7
        %v1219 = vsub.s32 3, %v1218
        %v1220 = vrot.slane %v382, %v1219
        %v1221 = vlaneseq
        %v1222 = vshrl.u32 %v1221, 7
        %v1223 = vsub.s32 3, %v1222
        %v1224 = vrot.slane %v383, %v1223
        %v1225 = vlaneseq
        %v1226 = vshrl.u32 %v1225, 7
        %v1227 = vsub.s32 3, %v1226
        %v1228 = vrot.slane %v384, %v1227
        %vm1229 = vcmp.eq.s32.totalorder %v372, %v1216
        %vm1230 = vcmp.eq.s32.totalorder %v372, %v1220
        %vm1231 = vcmp.eq.s32.totalorder %v372, %v1224
        %vm1232 = vcmp.eq.s32.totalorder %v372, %v1228
        %vm1233 = vcmp.eq.s32.totalorder %v373, %v1216
        %vm1234 = vcmp.eq.s32.totalorder %v373, %v1220
        %vm1235 = vcmp.eq.s32.totalorder %v373, %v1224
        %vm1236 = vcmp.eq.s32.totalorder %v373, %v1228
        %vm1237 = vcmp.eq.s32.totalorder %v374, %v1216
        %vm1238 = vcmp.eq.s32.totalorder %v374, %v1220
        %vm1239 = vcmp.eq.s32.totalorder %v374, %v1224
        %vm1240 = vcmp.eq.s32.totalorder %v374, %v1228
        %vm1241 = vcmp.eq.s32.totalorder %v375, %v1216
        %vm1242 = vcmp.eq.s32.totalorder %v375, %v1220
        %vm1243 = vcmp.eq.s32.totalorder %v375, %v1224
        %vm1244 = vcmp.eq.s32.totalorder %v375, %v1228
        %vm1245 = vcmp.eq.s32.totalorder %v376, %v1216
        %vm1246 = vcmp.eq.s32.totalorder %v376, %v1220
        %vm1247 = vcmp.eq.s32.totalorder %v376, %v1224
        %vm1248 = vcmp.eq.s32.totalorder %v376, %v1228
        %vm1249 = vcmp.eq.s32.totalorder %v377, %v1216
        %vm1250 = vcmp.eq.s32.totalorder %v377, %v1220
        %vm1251 = vcmp.eq.s32.totalorder %v377, %v1224
        %vm1252 = vcmp.eq.s32.totalorder %v377, %v1228
        %vm1253 = vcmp.eq.s32.totalorder %v378, %v1216
        %vm1254 = vcmp.eq.s32.totalorder %v378, %v1220
        %vm1255 = vcmp.eq.s32.totalorder %v378, %v1224
        %vm1256 = vcmp.eq.s32.totalorder %v378, %v1228
        %v1257 = vlaneseq
        %v1258 = vshrl.u32 %v1257, 7
        %v1259 = vsub.s32 3, %v1258
        %v1260 = vrot.slane %v905, %v1259
        %v1261 = vlaneseq
        %v1262 = vshrl.u32 %v1261, 7
        %v1263 = vsub.s32 3, %v1262
        %v1264 = vrot.slane %v906, %v1263
        %v1265 = vlaneseq
        %v1266 = vshrl.u32 %v1265, 7
        %v1267 = vsub.s32 3, %v1266
        %v1268 = vrot.slane %v907, %v1267
        %v1269 = vlaneseq
        %v1270 = vshrl.u32 %v1269, 7
        %v1271 = vsub.s32 3, %v1270
        %v1272 = vrot.slane %v908, %v1271
        %v1273 = vsel %vm1229, %v1260, 0.0
        %v1274 = vsel %vm1230, %v1264, 0.0
        %v1275 = vsel %vm1231, %v1268, 0.0
        %v1276 = vsel %vm1232, %v1272, 0.0
        %v1277 = vsel %vm1233, %v1260, 0.0
        %v1278 = vsel %vm1234, %v1264, 0.0
        %v1279 = vsel %vm1235, %v1268, 0.0
        %v1280 = vsel %vm1236, %v1272, 0.0
        %v1281 = vsel %vm1237, %v1260, 0.0
        %v1282 = vsel %vm1238, %v1264, 0.0
        %v1283 = vsel %vm1239, %v1268, 0.0
        %v1284 = vsel %vm1240, %v1272, 0.0
        %v1285 = vsel %vm1241, %v1260, 0.0
        %v1286 = vsel %vm1242, %v1264, 0.0
        %v1287 = vsel %vm1243, %v1268, 0.0
        %v1288 = vsel %vm1244, %v1272, 0.0
        %v1289 = vsel %vm1245, %v1260, 0.0
        %v1290 = vsel %vm1246, %v1264, 0.0
        %v1291 = vsel %vm1247, %v1268, 0.0
        %v1292 = vsel %vm1248, %v1272, 0.0
        %v1293 = vsel %vm1249, %v1260, 0.0
        %v1294 = vsel %vm1250, %v1264, 0.0
        %v1295 = vsel %vm1251, %v1268, 0.0
        %v1296 = vsel %vm1252, %v1272, 0.0
        %v1297 = vsel %vm1253, %v1260, 0.0
        %v1298 = vsel %vm1254, %v1264, 0.0
        %v1299 = vsel %vm1255, %v1268, 0.0
        %v1300 = vsel %vm1256, %v1272, 0.0
        %v1301 = vadd.f32 %v1185, %v1273
        %v1302 = vadd.f32 %v1186, %v1274
        %v1303 = vadd.f32 %v1187, %v1275
        %v1304 = vadd.f32 %v1188, %v1276
        %v1305 = vadd.f32 %v1189, %v1277
        %v1306 = vadd.f32 %v1190, %v1278
        %v1307 = vadd.f32 %v1191, %v1279
        %v1308 = vadd.f32 %v1192, %v1280
        %v1309 = vadd.f32 %v1193, %v1281
        %v1310 = vadd.f32 %v1194, %v1282
        %v1311 = vadd.f32 %v1195, %v1283
        %v1312 = vadd.f32 %v1196, %v1284
        %v1313 = vadd.f32 %v1197, %v1285
        %v1314 = vadd.f32 %v1198, %v1286
        %v1315 = vadd.f32 %v1199, %v1287
        %v1316 = vadd.f32 %v1200, %v1288
        %v1317 = vadd.f32 %v1201, %v1289
        %v1318 = vadd.f32 %v1202, %v1290
        %v1319 = vadd.f32 %v1203, %v1291
        %v1320 = vadd.f32 %v1204, %v1292
        %v1321 = vadd.f32 %v1205, %v1293
        %v1322 = vadd.f32 %v1206, %v1294
        %v1323 = vadd.f32 %v1207, %v1295
        %v1324 = vadd.f32 %v1208, %v1296
        %v1325 = vadd.f32 %v1209, %v1297
        %v1326 = vadd.f32 %v1210, %v1298
        %v1327 = vadd.f32 %v1211, %v1299
        %v1328 = vadd.f32 %v1212, %v1300
        %v1329 = vlaneseq
        %v1330 = vshrl.u32 %v1329, 7
        %v1331 = vsub.s32 4, %v1330
        %v1332 = vrot.slane %v381, %v1331
        %v1333 = vlaneseq
        %v1334 = vshrl.u32 %v1333, 7
        %v1335 = vsub.s32 4, %v1334
        %v1336 = vrot.slane %v382, %v1335
        %v1337 = vlaneseq
        %v1338 = vshrl.u32 %v1337, 7
        %v1339 = vsub.s32 4, %v1338
        %v1340 = vrot.slane %v383, %v1339
        %v1341 = vlaneseq
        %v1342 = vshrl.u32 %v1341, 7
        %v1343 = vsub.s32 4, %v1342
        %v1344 = vrot.slane %v384, %v1343
        %vm1345 = vcmp.eq.s32.totalorder %v372, %v1332
        %vm1346 = vcmp.eq.s32.totalorder %v372, %v1336
        %vm1347 = vcmp.eq.s32.totalorder %v372, %v1340
        %vm1348 = vcmp.eq.s32.totalorder %v372, %v1344
        %vm1349 = vcmp.eq.s32.totalorder %v373, %v1332
        %vm1350 = vcmp.eq.s32.totalorder %v373, %v1336
        %vm1351 = vcmp.eq.s32.totalorder %v373, %v1340
        %vm1352 = vcmp.eq.s32.totalorder %v373, %v1344
        %vm1353 = vcmp.eq.s32.totalorder %v374, %v1332
        %vm1354 = vcmp.eq.s32.totalorder %v374, %v1336
        %vm1355 = vcmp.eq.s32.totalorder %v374, %v1340
        %vm1356 = vcmp.eq.s32.totalorder %v374, %v1344
        %vm1357 = vcmp.eq.s32.totalorder %v375, %v1332
        %vm1358 = vcmp.eq.s32.totalorder %v375, %v1336
        %vm1359 = vcmp.eq.s32.totalorder %v375, %v1340
        %vm1360 = vcmp.eq.s32.totalorder %v375, %v1344
        %vm1361 = vcmp.eq.s32.totalorder %v376, %v1332
        %vm1362 = vcmp.eq.s32.totalorder %v376, %v1336
        %vm1363 = vcmp.eq.s32.totalorder %v376, %v1340
        %vm1364 = vcmp.eq.s32.totalorder %v376, %v1344
        %vm1365 = vcmp.eq.s32.totalorder %v377, %v1332
        %vm1366 = vcmp.eq.s32.totalorder %v377, %v1336
        %vm1367 = vcmp.eq.s32.totalorder %v377, %v1340
        %vm1368 = vcmp.eq.s32.totalorder %v377, %v1344
        %vm1369 = vcmp.eq.s32.totalorder %v378, %v1332
        %vm1370 = vcmp.eq.s32.totalorder %v378, %v1336
        %vm1371 = vcmp.eq.s32.totalorder %v378, %v1340
        %vm1372 = vcmp.eq.s32.totalorder %v378, %v1344
        %v1373 = vlaneseq
        %v1374 = vshrl.u32 %v1373, 7
        %v1375 = vsub.s32 4, %v1374
        %v1376 = vrot.slane %v905, %v1375
        %v1377 = vlaneseq
        %v1378 = vshrl.u32 %v1377, 7
        %v1379 = vsub.s32 4, %v1378
        %v1380 = vrot.slane %v906, %v1379
        %v1381 = vlaneseq
        %v1382 = vshrl.u32 %v1381, 7
        %v1383 = vsub.s32 4, %v1382
        %v1384 = vrot.slane %v907, %v1383
        %v1385 = vlaneseq
        %v1386 = vshrl.u32 %v1385, 7
        %v1387 = vsub.s32 4, %v1386
        %v1388 = vrot.slane %v908, %v1387
        %v1389 = vsel %vm1345, %v1376, 0.0
        %v1390 = vsel %vm1346, %v1380, 0.0
        %v1391 = vsel %vm1347, %v1384, 0.0
        %v1392 = vsel %vm1348, %v1388, 0.0
        %v1393 = vsel %vm1349, %v1376, 0.0
        %v1394 = vsel %vm1350, %v1380, 0.0
        %v1395 = vsel %vm1351, %v1384, 0.0
        %v1396 = vsel %vm1352, %v1388, 0.0
        %v1397 = vsel %vm1353, %v1376, 0.0
        %v1398 = vsel %vm1354, %v1380, 0.0
        %v1399 = vsel %vm1355, %v1384, 0.0
        %v1400 = vsel %vm1356, %v1388, 0.0
        %v1401 = vsel %vm1357, %v1376, 0.0
        %v1402 = vsel %vm1358, %v1380, 0.0
        %v1403 = vsel %vm1359, %v1384, 0.0
        %v1404 = vsel %vm1360, %v1388, 0.0
        %v1405 = vsel %vm1361, %v1376, 0.0
        %v1406 = vsel %vm1362, %v1380, 0.0
        %v1407 = vsel %vm1363, %v1384, 0.0
        %v1408 = vsel %vm1364, %v1388, 0.0
        %v1409 = vsel %vm1365, %v1376, 0.0
        %v1410 = vsel %vm1366, %v1380, 0.0
        %v1411 = vsel %vm1367, %v1384, 0.0
        %v1412 = vsel %vm1368, %v1388, 0.0
        %v1413 = vsel %vm1369, %v1376, 0.0
        %v1414 = vsel %vm1370, %v1380, 0.0
        %v1415 = vsel %vm1371, %v1384, 0.0
        %v1416 = vsel %vm1372, %v1388, 0.0
        %v1417 = vadd.f32 %v1301, %v1389
        %v1418 = vadd.f32 %v1302, %v1390
        %v1419 = vadd.f32 %v1303, %v1391
        %v1420 = vadd.f32 %v1304, %v1392
        %v1421 = vadd.f32 %v1305, %v1393
        %v1422 = vadd.f32 %v1306, %v1394
        %v1423 = vadd.f32 %v1307, %v1395
        %v1424 = vadd.f32 %v1308, %v1396
        %v1425 = vadd.f32 %v1309, %v1397
        %v1426 = vadd.f32 %v1310, %v1398
        %v1427 = vadd.f32 %v1311, %v1399
        %v1428 = vadd.f32 %v1312, %v1400
        %v1429 = vadd.f32 %v1313, %v1401
        %v1430 = vadd.f32 %v1314, %v1402
        %v1431 = vadd.f32 %v1315, %v1403
        %v1432 = vadd.f32 %v1316, %v1404
        %v1433 = vadd.f32 %v1317, %v1405
        %v1434 = vadd.f32 %v1318, %v1406
        %v1435 = vadd.f32 %v1319, %v1407
        %v1436 = vadd.f32 %v1320, %v1408
        %v1437 = vadd.f32 %v1321, %v1409
        %v1438 = vadd.f32 %v1322, %v1410
        %v1439 = vadd.f32 %v1323, %v1411
        %v1440 = vadd.f32 %v1324, %v1412
        %v1441 = vadd.f32 %v1325, %v1413
        %v1442 = vadd.f32 %v1326, %v1414
        %v1443 = vadd.f32 %v1327, %v1415
        %v1444 = vadd.f32 %v1328, %v1416
        %v1445 = vlaneseq
        %v1446 = vshrl.u32 %v1445, 7
        %v1447 = vsub.s32 5, %v1446
        %v1448 = vrot.slane %v381, %v1447
        %v1449 = vlaneseq
        %v1450 = vshrl.u32 %v1449, 7
        %v1451 = vsub.s32 5, %v1450
        %v1452 = vrot.slane %v382, %v1451
        %v1453 = vlaneseq
        %v1454 = vshrl.u32 %v1453, 7
        %v1455 = vsub.s32 5, %v1454
        %v1456 = vrot.slane %v383, %v1455
        %v1457 = vlaneseq
        %v1458 = vshrl.u32 %v1457, 7
        %v1459 = vsub.s32 5, %v1458
        %v1460 = vrot.slane %v384, %v1459
        %vm1461 = vcmp.eq.s32.totalorder %v372, %v1448
        %vm1462 = vcmp.eq.s32.totalorder %v372, %v1452
        %vm1463 = vcmp.eq.s32.totalorder %v372, %v1456
        %vm1464 = vcmp.eq.s32.totalorder %v372, %v1460
        %vm1465 = vcmp.eq.s32.totalorder %v373, %v1448
        %vm1466 = vcmp.eq.s32.totalorder %v373, %v1452
        %vm1467 = vcmp.eq.s32.totalorder %v373, %v1456
        %vm1468 = vcmp.eq.s32.totalorder %v373, %v1460
        %vm1469 = vcmp.eq.s32.totalorder %v374, %v1448
        %vm1470 = vcmp.eq.s32.totalorder %v374, %v1452
        %vm1471 = vcmp.eq.s32.totalorder %v374, %v1456
        %vm1472 = vcmp.eq.s32.totalorder %v374, %v1460
        %vm1473 = vcmp.eq.s32.totalorder %v375, %v1448
        %vm1474 = vcmp.eq.s32.totalorder %v375, %v1452
        %vm1475 = vcmp.eq.s32.totalorder %v375, %v1456
        %vm1476 = vcmp.eq.s32.totalorder %v375, %v1460
        %vm1477 = vcmp.eq.s32.totalorder %v376, %v1448
        %vm1478 = vcmp.eq.s32.totalorder %v376, %v1452
        %vm1479 = vcmp.eq.s32.totalorder %v376, %v1456
        %vm1480 = vcmp.eq.s32.totalorder %v376, %v1460
        %vm1481 = vcmp.eq.s32.totalorder %v377, %v1448
        %vm1482 = vcmp.eq.s32.totalorder %v377, %v1452
        %vm1483 = vcmp.eq.s32.totalorder %v377, %v1456
        %vm1484 = vcmp.eq.s32.totalorder %v377, %v1460
        %vm1485 = vcmp.eq.s32.totalorder %v378, %v1448
        %vm1486 = vcmp.eq.s32.totalorder %v378, %v1452
        %vm1487 = vcmp.eq.s32.totalorder %v378, %v1456
        %vm1488 = vcmp.eq.s32.totalorder %v378, %v1460
        %v1489 = vlaneseq
        %v1490 = vshrl.u32 %v1489, 7
        %v1491 = vsub.s32 5, %v1490
        %v1492 = vrot.slane %v905, %v1491
        %v1493 = vlaneseq
        %v1494 = vshrl.u32 %v1493, 7
        %v1495 = vsub.s32 5, %v1494
        %v1496 = vrot.slane %v906, %v1495
        %v1497 = vlaneseq
        %v1498 = vshrl.u32 %v1497, 7
        %v1499 = vsub.s32 5, %v1498
        %v1500 = vrot.slane %v907, %v1499
        %v1501 = vlaneseq
        %v1502 = vshrl.u32 %v1501, 7
        %v1503 = vsub.s32 5, %v1502
        %v1504 = vrot.slane %v908, %v1503
        %v1505 = vsel %vm1461, %v1492, 0.0
        %v1506 = vsel %vm1462, %v1496, 0.0
        %v1507 = vsel %vm1463, %v1500, 0.0
        %v1508 = vsel %vm1464, %v1504, 0.0
        %v1509 = vsel %vm1465, %v1492, 0.0
        %v1510 = vsel %vm1466, %v1496, 0.0
        %v1511 = vsel %vm1467, %v1500, 0.0
        %v1512 = vsel %vm1468, %v1504, 0.0
        %v1513 = vsel %vm1469, %v1492, 0.0
        %v1514 = vsel %vm1470, %v1496, 0.0
        %v1515 = vsel %vm1471, %v1500, 0.0
        %v1516 = vsel %vm1472, %v1504, 0.0
        %v1517 = vsel %vm1473, %v1492, 0.0
        %v1518 = vsel %vm1474, %v1496, 0.0
        %v1519 = vsel %vm1475, %v1500, 0.0
        %v1520 = vsel %vm1476, %v1504, 0.0
        %v1521 = vsel %vm1477, %v1492, 0.0
        %v1522 = vsel %vm1478, %v1496, 0.0
        %v1523 = vsel %vm1479, %v1500, 0.0
        %v1524 = vsel %vm1480, %v1504, 0.0
        %v1525 = vsel %vm1481, %v1492, 0.0
        %v1526 = vsel %vm1482, %v1496, 0.0
        %v1527 = vsel %vm1483, %v1500, 0.0
        %v1528 = vsel %vm1484, %v1504, 0.0
        %v1529 = vsel %vm1485, %v1492, 0.0
        %v1530 = vsel %vm1486, %v1496, 0.0
        %v1531 = vsel %vm1487, %v1500, 0.0
        %v1532 = vsel %vm1488, %v1504, 0.0
        %v1533 = vadd.f32 %v1417, %v1505
        %v1534 = vadd.f32 %v1418, %v1506
        %v1535 = vadd.f32 %v1419, %v1507
        %v1536 = vadd.f32 %v1420, %v1508
        %v1537 = vadd.f32 %v1421, %v1509
        %v1538 = vadd.f32 %v1422, %v1510
        %v1539 = vadd.f32 %v1423, %v1511
        %v1540 = vadd.f32 %v1424, %v1512
        %v1541 = vadd.f32 %v1425, %v1513
        %v1542 = vadd.f32 %v1426, %v1514
        %v1543 = vadd.f32 %v1427, %v1515
        %v1544 = vadd.f32 %v1428, %v1516
        %v1545 = vadd.f32 %v1429, %v1517
        %v1546 = vadd.f32 %v1430, %v1518
        %v1547 = vadd.f32 %v1431, %v1519
        %v1548 = vadd.f32 %v1432, %v1520
        %v1549 = vadd.f32 %v1433, %v1521
        %v1550 = vadd.f32 %v1434, %v1522
        %v1551 = vadd.f32 %v1435, %v1523
        %v1552 = vadd.f32 %v1436, %v1524
        %v1553 = vadd.f32 %v1437, %v1525
        %v1554 = vadd.f32 %v1438, %v1526
        %v1555 = vadd.f32 %v1439, %v1527
        %v1556 = vadd.f32 %v1440, %v1528
        %v1557 = vadd.f32 %v1441, %v1529
        %v1558 = vadd.f32 %v1442, %v1530
        %v1559 = vadd.f32 %v1443, %v1531
        %v1560 = vadd.f32 %v1444, %v1532
        %v1561 = vlaneseq
        %v1562 = vshrl.u32 %v1561, 7
        %v1563 = vsub.s32 6, %v1562
        %v1564 = vrot.slane %v381, %v1563
        %v1565 = vlaneseq
        %v1566 = vshrl.u32 %v1565, 7
        %v1567 = vsub.s32 6, %v1566
        %v1568 = vrot.slane %v382, %v1567
        %v1569 = vlaneseq
        %v1570 = vshrl.u32 %v1569, 7
        %v1571 = vsub.s32 6, %v1570
        %v1572 = vrot.slane %v383, %v1571
        %v1573 = vlaneseq
        %v1574 = vshrl.u32 %v1573, 7
        %v1575 = vsub.s32 6, %v1574
        %v1576 = vrot.slane %v384, %v1575
        %vm1577 = vcmp.eq.s32.totalorder %v372, %v1564
        %vm1578 = vcmp.eq.s32.totalorder %v372, %v1568
        %vm1579 = vcmp.eq.s32.totalorder %v372, %v1572
        %vm1580 = vcmp.eq.s32.totalorder %v372, %v1576
        %vm1581 = vcmp.eq.s32.totalorder %v373, %v1564
        %vm1582 = vcmp.eq.s32.totalorder %v373, %v1568
        %vm1583 = vcmp.eq.s32.totalorder %v373, %v1572
        %vm1584 = vcmp.eq.s32.totalorder %v373, %v1576
        %vm1585 = vcmp.eq.s32.totalorder %v374, %v1564
        %vm1586 = vcmp.eq.s32.totalorder %v374, %v1568
        %vm1587 = vcmp.eq.s32.totalorder %v374, %v1572
        %vm1588 = vcmp.eq.s32.totalorder %v374, %v1576
        %vm1589 = vcmp.eq.s32.totalorder %v375, %v1564
        %vm1590 = vcmp.eq.s32.totalorder %v375, %v1568
        %vm1591 = vcmp.eq.s32.totalorder %v375, %v1572
        %vm1592 = vcmp.eq.s32.totalorder %v375, %v1576
        %vm1593 = vcmp.eq.s32.totalorder %v376, %v1564
        %vm1594 = vcmp.eq.s32.totalorder %v376, %v1568
        %vm1595 = vcmp.eq.s32.totalorder %v376, %v1572
        %vm1596 = vcmp.eq.s32.totalorder %v376, %v1576
        %vm1597 = vcmp.eq.s32.totalorder %v377, %v1564
        %vm1598 = vcmp.eq.s32.totalorder %v377, %v1568
        %vm1599 = vcmp.eq.s32.totalorder %v377, %v1572
        %vm1600 = vcmp.eq.s32.totalorder %v377, %v1576
        %vm1601 = vcmp.eq.s32.totalorder %v378, %v1564
        %vm1602 = vcmp.eq.s32.totalorder %v378, %v1568
        %vm1603 = vcmp.eq.s32.totalorder %v378, %v1572
        %vm1604 = vcmp.eq.s32.totalorder %v378, %v1576
        %v1605 = vlaneseq
        %v1606 = vshrl.u32 %v1605, 7
        %v1607 = vsub.s32 6, %v1606
        %v1608 = vrot.slane %v905, %v1607
        %v1609 = vlaneseq
        %v1610 = vshrl.u32 %v1609, 7
        %v1611 = vsub.s32 6, %v1610
        %v1612 = vrot.slane %v906, %v1611
        %v1613 = vlaneseq
        %v1614 = vshrl.u32 %v1613, 7
        %v1615 = vsub.s32 6, %v1614
        %v1616 = vrot.slane %v907, %v1615
        %v1617 = vlaneseq
        %v1618 = vshrl.u32 %v1617, 7
        %v1619 = vsub.s32 6, %v1618
        %v1620 = vrot.slane %v908, %v1619
        %v1621 = vsel %vm1577, %v1608, 0.0
        %v1622 = vsel %vm1578, %v1612, 0.0
        %v1623 = vsel %vm1579, %v1616, 0.0
        %v1624 = vsel %vm1580, %v1620, 0.0
        %v1625 = vsel %vm1581, %v1608, 0.0
        %v1626 = vsel %vm1582, %v1612, 0.0
        %v1627 = vsel %vm1583, %v1616, 0.0
        %v1628 = vsel %vm1584, %v1620, 0.0
        %v1629 = vsel %vm1585, %v1608, 0.0
        %v1630 = vsel %vm1586, %v1612, 0.0
        %v1631 = vsel %vm1587, %v1616, 0.0
        %v1632 = vsel %vm1588, %v1620, 0.0
        %v1633 = vsel %vm1589, %v1608, 0.0
        %v1634 = vsel %vm1590, %v1612, 0.0
        %v1635 = vsel %vm1591, %v1616, 0.0
        %v1636 = vsel %vm1592, %v1620, 0.0
        %v1637 = vsel %vm1593, %v1608, 0.0
        %v1638 = vsel %vm1594, %v1612, 0.0
        %v1639 = vsel %vm1595, %v1616, 0.0
        %v1640 = vsel %vm1596, %v1620, 0.0
        %v1641 = vsel %vm1597, %v1608, 0.0
        %v1642 = vsel %vm1598, %v1612, 0.0
        %v1643 = vsel %vm1599, %v1616, 0.0
        %v1644 = vsel %vm1600, %v1620, 0.0
        %v1645 = vsel %vm1601, %v1608, 0.0
        %v1646 = vsel %vm1602, %v1612, 0.0
        %v1647 = vsel %vm1603, %v1616, 0.0
        %v1648 = vsel %vm1604, %v1620, 0.0
        %v1649 = vadd.f32 %v1533, %v1621
        %v1650 = vadd.f32 %v1534, %v1622
        %v1651 = vadd.f32 %v1535, %v1623
        %v1652 = vadd.f32 %v1536, %v1624
        %v1653 = vadd.f32 %v1537, %v1625
        %v1654 = vadd.f32 %v1538, %v1626
        %v1655 = vadd.f32 %v1539, %v1627
        %v1656 = vadd.f32 %v1540, %v1628
        %v1657 = vadd.f32 %v1541, %v1629
        %v1658 = vadd.f32 %v1542, %v1630
        %v1659 = vadd.f32 %v1543, %v1631
        %v1660 = vadd.f32 %v1544, %v1632
        %v1661 = vadd.f32 %v1545, %v1633
        %v1662 = vadd.f32 %v1546, %v1634
        %v1663 = vadd.f32 %v1547, %v1635
        %v1664 = vadd.f32 %v1548, %v1636
        %v1665 = vadd.f32 %v1549, %v1637
        %v1666 = vadd.f32 %v1550, %v1638
        %v1667 = vadd.f32 %v1551, %v1639
        %v1668 = vadd.f32 %v1552, %v1640
        %v1669 = vadd.f32 %v1553, %v1641
        %v1670 = vadd.f32 %v1554, %v1642
        %v1671 = vadd.f32 %v1555, %v1643
        %v1672 = vadd.f32 %v1556, %v1644
        %v1673 = vadd.f32 %v1557, %v1645
        %v1674 = vadd.f32 %v1558, %v1646
        %v1675 = vadd.f32 %v1559, %v1647
        %v1676 = vadd.f32 %v1560, %v1648
        %v1677 = vlaneseq
        %v1678 = vshrl.u32 %v1677, 7
        %v1679 = vsub.s32 7, %v1678
        %v1680 = vrot.slane %v381, %v1679
        %v1681 = vlaneseq
        %v1682 = vshrl.u32 %v1681, 7
        %v1683 = vsub.s32 7, %v1682
        %v1684 = vrot.slane %v382, %v1683
        %v1685 = vlaneseq
        %v1686 = vshrl.u32 %v1685, 7
        %v1687 = vsub.s32 7, %v1686
        %v1688 = vrot.slane %v383, %v1687
        %v1689 = vlaneseq
        %v1690 = vshrl.u32 %v1689, 7
        %v1691 = vsub.s32 7, %v1690
        %v1692 = vrot.slane %v384, %v1691
        %vm1693 = vcmp.eq.s32.totalorder %v372, %v1680
        %vm1694 = vcmp.eq.s32.totalorder %v372, %v1684
        %vm1695 = vcmp.eq.s32.totalorder %v372, %v1688
        %vm1696 = vcmp.eq.s32.totalorder %v372, %v1692
        %vm1697 = vcmp.eq.s32.totalorder %v373, %v1680
        %vm1698 = vcmp.eq.s32.totalorder %v373, %v1684
        %vm1699 = vcmp.eq.s32.totalorder %v373, %v1688
        %vm1700 = vcmp.eq.s32.totalorder %v373, %v1692
        %vm1701 = vcmp.eq.s32.totalorder %v374, %v1680
        %vm1702 = vcmp.eq.s32.totalorder %v374, %v1684
        %vm1703 = vcmp.eq.s32.totalorder %v374, %v1688
        %vm1704 = vcmp.eq.s32.totalorder %v374, %v1692
        %vm1705 = vcmp.eq.s32.totalorder %v375, %v1680
        %vm1706 = vcmp.eq.s32.totalorder %v375, %v1684
        %vm1707 = vcmp.eq.s32.totalorder %v375, %v1688
        %vm1708 = vcmp.eq.s32.totalorder %v375, %v1692
        %vm1709 = vcmp.eq.s32.totalorder %v376, %v1680
        %vm1710 = vcmp.eq.s32.totalorder %v376, %v1684
        %vm1711 = vcmp.eq.s32.totalorder %v376, %v1688
        %vm1712 = vcmp.eq.s32.totalorder %v376, %v1692
        %vm1713 = vcmp.eq.s32.totalorder %v377, %v1680
        %vm1714 = vcmp.eq.s32.totalorder %v377, %v1684
        %vm1715 = vcmp.eq.s32.totalorder %v377, %v1688
        %vm1716 = vcmp.eq.s32.totalorder %v377, %v1692
        %vm1717 = vcmp.eq.s32.totalorder %v378, %v1680
        %vm1718 = vcmp.eq.s32.totalorder %v378, %v1684
        %vm1719 = vcmp.eq.s32.totalorder %v378, %v1688
        %vm1720 = vcmp.eq.s32.totalorder %v378, %v1692
        %v1721 = vlaneseq
        %v1722 = vshrl.u32 %v1721, 7
        %v1723 = vsub.s32 7, %v1722
        %v1724 = vrot.slane %v905, %v1723
        %v1725 = vlaneseq
        %v1726 = vshrl.u32 %v1725, 7
        %v1727 = vsub.s32 7, %v1726
        %v1728 = vrot.slane %v906, %v1727
        %v1729 = vlaneseq
        %v1730 = vshrl.u32 %v1729, 7
        %v1731 = vsub.s32 7, %v1730
        %v1732 = vrot.slane %v907, %v1731
        %v1733 = vlaneseq
        %v1734 = vshrl.u32 %v1733, 7
        %v1735 = vsub.s32 7, %v1734
        %v1736 = vrot.slane %v908, %v1735
        %v1737 = vsel %vm1693, %v1724, 0.0
        %v1738 = vsel %vm1694, %v1728, 0.0
        %v1739 = vsel %vm1695, %v1732, 0.0
        %v1740 = vsel %vm1696, %v1736, 0.0
        %v1741 = vsel %vm1697, %v1724, 0.0
        %v1742 = vsel %vm1698, %v1728, 0.0
        %v1743 = vsel %vm1699, %v1732, 0.0
        %v1744 = vsel %vm1700, %v1736, 0.0
        %v1745 = vsel %vm1701, %v1724, 0.0
        %v1746 = vsel %vm1702, %v1728, 0.0
        %v1747 = vsel %vm1703, %v1732, 0.0
        %v1748 = vsel %vm1704, %v1736, 0.0
        %v1749 = vsel %vm1705, %v1724, 0.0
        %v1750 = vsel %vm1706, %v1728, 0.0
        %v1751 = vsel %vm1707, %v1732, 0.0
        %v1752 = vsel %vm1708, %v1736, 0.0
        %v1753 = vsel %vm1709, %v1724, 0.0
        %v1754 = vsel %vm1710, %v1728, 0.0
        %v1755 = vsel %vm1711, %v1732, 0.0
        %v1756 = vsel %vm1712, %v1736, 0.0
        %v1757 = vsel %vm1713, %v1724, 0.0
        %v1758 = vsel %vm1714, %v1728, 0.0
        %v1759 = vsel %vm1715, %v1732, 0.0
        %v1760 = vsel %vm1716, %v1736, 0.0
        %v1761 = vsel %vm1717, %v1724, 0.0
        %v1762 = vsel %vm1718, %v1728, 0.0
        %v1763 = vsel %vm1719, %v1732, 0.0
        %v1764 = vsel %vm1720, %v1736, 0.0
        %v1765 = vadd.f32 %v1649, %v1737
        %v1766 = vadd.f32 %v1650, %v1738
        %v1767 = vadd.f32 %v1651, %v1739
        %v1768 = vadd.f32 %v1652, %v1740
        %v1769 = vadd.f32 %v1653, %v1741
        %v1770 = vadd.f32 %v1654, %v1742
        %v1771 = vadd.f32 %v1655, %v1743
        %v1772 = vadd.f32 %v1656, %v1744
        %v1773 = vadd.f32 %v1657, %v1745
        %v1774 = vadd.f32 %v1658, %v1746
        %v1775 = vadd.f32 %v1659, %v1747
        %v1776 = vadd.f32 %v1660, %v1748
        %v1777 = vadd.f32 %v1661, %v1749
        %v1778 = vadd.f32 %v1662, %v1750
        %v1779 = vadd.f32 %v1663, %v1751
        %v1780 = vadd.f32 %v1664, %v1752
        %v1781 = vadd.f32 %v1665, %v1753
        %v1782 = vadd.f32 %v1666, %v1754
        %v1783 = vadd.f32 %v1667, %v1755
        %v1784 = vadd.f32 %v1668, %v1756
        %v1785 = vadd.f32 %v1669, %v1757
        %v1786 = vadd.f32 %v1670, %v1758
        %v1787 = vadd.f32 %v1671, %v1759
        %v1788 = vadd.f32 %v1672, %v1760
        %v1789 = vadd.f32 %v1673, %v1761
        %v1790 = vadd.f32 %v1674, %v1762
        %v1791 = vadd.f32 %v1675, %v1763
        %v1792 = vadd.f32 %v1676, %v1764
        %v1793 = vlaneseq
        %v1794 = vshrl.u32 %v1793, 7
        %v1795 = vsub.s32 0, %v1794
        %v1796 = vrot.slane %v385, %v1795
        %v1797 = vlaneseq
        %v1798 = vshrl.u32 %v1797, 7
        %v1799 = vsub.s32 0, %v1798
        %v1800 = vrot.slane %v386, %v1799
        %v1801 = vlaneseq
        %v1802 = vshrl.u32 %v1801, 7
        %v1803 = vsub.s32 0, %v1802
        %v1804 = vrot.slane %v387, %v1803
        %v1805 = vlaneseq
        %v1806 = vshrl.u32 %v1805, 7
        %v1807 = vsub.s32 0, %v1806
        %v1808 = vrot.slane %v388, %v1807
        %vm1809 = vcmp.eq.s32.totalorder %v372, %v1796
        %vm1810 = vcmp.eq.s32.totalorder %v372, %v1800
        %vm1811 = vcmp.eq.s32.totalorder %v372, %v1804
        %vm1812 = vcmp.eq.s32.totalorder %v372, %v1808
        %vm1813 = vcmp.eq.s32.totalorder %v373, %v1796
        %vm1814 = vcmp.eq.s32.totalorder %v373, %v1800
        %vm1815 = vcmp.eq.s32.totalorder %v373, %v1804
        %vm1816 = vcmp.eq.s32.totalorder %v373, %v1808
        %vm1817 = vcmp.eq.s32.totalorder %v374, %v1796
        %vm1818 = vcmp.eq.s32.totalorder %v374, %v1800
        %vm1819 = vcmp.eq.s32.totalorder %v374, %v1804
        %vm1820 = vcmp.eq.s32.totalorder %v374, %v1808
        %vm1821 = vcmp.eq.s32.totalorder %v375, %v1796
        %vm1822 = vcmp.eq.s32.totalorder %v375, %v1800
        %vm1823 = vcmp.eq.s32.totalorder %v375, %v1804
        %vm1824 = vcmp.eq.s32.totalorder %v375, %v1808
        %vm1825 = vcmp.eq.s32.totalorder %v376, %v1796
        %vm1826 = vcmp.eq.s32.totalorder %v376, %v1800
        %vm1827 = vcmp.eq.s32.totalorder %v376, %v1804
        %vm1828 = vcmp.eq.s32.totalorder %v376, %v1808
        %vm1829 = vcmp.eq.s32.totalorder %v377, %v1796
        %vm1830 = vcmp.eq.s32.totalorder %v377, %v1800
        %vm1831 = vcmp.eq.s32.totalorder %v377, %v1804
        %vm1832 = vcmp.eq.s32.totalorder %v377, %v1808
        %vm1833 = vcmp.eq.s32.totalorder %v378, %v1796
        %vm1834 = vcmp.eq.s32.totalorder %v378, %v1800
        %vm1835 = vcmp.eq.s32.totalorder %v378, %v1804
        %vm1836 = vcmp.eq.s32.totalorder %v378, %v1808
        %v1837 = vmul.f32 %v393, 0.13333334
        %v1838 = vmul.f32 %v394, 0.13333334
        %v1839 = vmul.f32 %v395, 0.13333334
        %v1840 = vmul.f32 %v396, 0.13333334
        %v1841 = vlaneseq
        %v1842 = vshrl.u32 %v1841, 7
        %v1843 = vsub.s32 0, %v1842
        %v1844 = vrot.slane %v1837, %v1843
        %v1845 = vlaneseq
        %v1846 = vshrl.u32 %v1845, 7
        %v1847 = vsub.s32 0, %v1846
        %v1848 = vrot.slane %v1838, %v1847
        %v1849 = vlaneseq
        %v1850 = vshrl.u32 %v1849, 7
        %v1851 = vsub.s32 0, %v1850
        %v1852 = vrot.slane %v1839, %v1851
        %v1853 = vlaneseq
        %v1854 = vshrl.u32 %v1853, 7
        %v1855 = vsub.s32 0, %v1854
        %v1856 = vrot.slane %v1840, %v1855
        %v1857 = vsel %vm1809, %v1844, 0.0
        %v1858 = vsel %vm1810, %v1848, 0.0
        %v1859 = vsel %vm1811, %v1852, 0.0
        %v1860 = vsel %vm1812, %v1856, 0.0
        %v1861 = vsel %vm1813, %v1844, 0.0
        %v1862 = vsel %vm1814, %v1848, 0.0
        %v1863 = vsel %vm1815, %v1852, 0.0
        %v1864 = vsel %vm1816, %v1856, 0.0
        %v1865 = vsel %vm1817, %v1844, 0.0
        %v1866 = vsel %vm1818, %v1848, 0.0
        %v1867 = vsel %vm1819, %v1852, 0.0
        %v1868 = vsel %vm1820, %v1856, 0.0
        %v1869 = vsel %vm1821, %v1844, 0.0
        %v1870 = vsel %vm1822, %v1848, 0.0
        %v1871 = vsel %vm1823, %v1852, 0.0
        %v1872 = vsel %vm1824, %v1856, 0.0
        %v1873 = vsel %vm1825, %v1844, 0.0
        %v1874 = vsel %vm1826, %v1848, 0.0
        %v1875 = vsel %vm1827, %v1852, 0.0
        %v1876 = vsel %vm1828, %v1856, 0.0
        %v1877 = vsel %vm1829, %v1844, 0.0
        %v1878 = vsel %vm1830, %v1848, 0.0
        %v1879 = vsel %vm1831, %v1852, 0.0
        %v1880 = vsel %vm1832, %v1856, 0.0
        %v1881 = vsel %vm1833, %v1844, 0.0
        %v1882 = vsel %vm1834, %v1848, 0.0
        %v1883 = vsel %vm1835, %v1852, 0.0
        %v1884 = vsel %vm1836, %v1856, 0.0
        %v1885 = vadd.f32 %v1765, %v1857
        %v1886 = vadd.f32 %v1766, %v1858
        %v1887 = vadd.f32 %v1767, %v1859
        %v1888 = vadd.f32 %v1768, %v1860
        %v1889 = vadd.f32 %v1769, %v1861
        %v1890 = vadd.f32 %v1770, %v1862
        %v1891 = vadd.f32 %v1771, %v1863
        %v1892 = vadd.f32 %v1772, %v1864
        %v1893 = vadd.f32 %v1773, %v1865
        %v1894 = vadd.f32 %v1774, %v1866
        %v1895 = vadd.f32 %v1775, %v1867
        %v1896 = vadd.f32 %v1776, %v1868
        %v1897 = vadd.f32 %v1777, %v1869
        %v1898 = vadd.f32 %v1778, %v1870
        %v1899 = vadd.f32 %v1779, %v1871
        %v1900 = vadd.f32 %v1780, %v1872
        %v1901 = vadd.f32 %v1781, %v1873
        %v1902 = vadd.f32 %v1782, %v1874
        %v1903 = vadd.f32 %v1783, %v1875
        %v1904 = vadd.f32 %v1784, %v1876
        %v1905 = vadd.f32 %v1785, %v1877
        %v1906 = vadd.f32 %v1786, %v1878
        %v1907 = vadd.f32 %v1787, %v1879
        %v1908 = vadd.f32 %v1788, %v1880
        %v1909 = vadd.f32 %v1789, %v1881
        %v1910 = vadd.f32 %v1790, %v1882
        %v1911 = vadd.f32 %v1791, %v1883
        %v1912 = vadd.f32 %v1792, %v1884
        %v1913 = vlaneseq
        %v1914 = vshrl.u32 %v1913, 7
        %v1915 = vsub.s32 1, %v1914
        %v1916 = vrot.slane %v385, %v1915
        %v1917 = vlaneseq
        %v1918 = vshrl.u32 %v1917, 7
        %v1919 = vsub.s32 1, %v1918
        %v1920 = vrot.slane %v386, %v1919
        %v1921 = vlaneseq
        %v1922 = vshrl.u32 %v1921, 7
        %v1923 = vsub.s32 1, %v1922
        %v1924 = vrot.slane %v387, %v1923
        %v1925 = vlaneseq
        %v1926 = vshrl.u32 %v1925, 7
        %v1927 = vsub.s32 1, %v1926
        %v1928 = vrot.slane %v388, %v1927
        %vm1929 = vcmp.eq.s32.totalorder %v372, %v1916
        %vm1930 = vcmp.eq.s32.totalorder %v372, %v1920
        %vm1931 = vcmp.eq.s32.totalorder %v372, %v1924
        %vm1932 = vcmp.eq.s32.totalorder %v372, %v1928
        %vm1933 = vcmp.eq.s32.totalorder %v373, %v1916
        %vm1934 = vcmp.eq.s32.totalorder %v373, %v1920
        %vm1935 = vcmp.eq.s32.totalorder %v373, %v1924
        %vm1936 = vcmp.eq.s32.totalorder %v373, %v1928
        %vm1937 = vcmp.eq.s32.totalorder %v374, %v1916
        %vm1938 = vcmp.eq.s32.totalorder %v374, %v1920
        %vm1939 = vcmp.eq.s32.totalorder %v374, %v1924
        %vm1940 = vcmp.eq.s32.totalorder %v374, %v1928
        %vm1941 = vcmp.eq.s32.totalorder %v375, %v1916
        %vm1942 = vcmp.eq.s32.totalorder %v375, %v1920
        %vm1943 = vcmp.eq.s32.totalorder %v375, %v1924
        %vm1944 = vcmp.eq.s32.totalorder %v375, %v1928
        %vm1945 = vcmp.eq.s32.totalorder %v376, %v1916
        %vm1946 = vcmp.eq.s32.totalorder %v376, %v1920
        %vm1947 = vcmp.eq.s32.totalorder %v376, %v1924
        %vm1948 = vcmp.eq.s32.totalorder %v376, %v1928
        %vm1949 = vcmp.eq.s32.totalorder %v377, %v1916
        %vm1950 = vcmp.eq.s32.totalorder %v377, %v1920
        %vm1951 = vcmp.eq.s32.totalorder %v377, %v1924
        %vm1952 = vcmp.eq.s32.totalorder %v377, %v1928
        %vm1953 = vcmp.eq.s32.totalorder %v378, %v1916
        %vm1954 = vcmp.eq.s32.totalorder %v378, %v1920
        %vm1955 = vcmp.eq.s32.totalorder %v378, %v1924
        %vm1956 = vcmp.eq.s32.totalorder %v378, %v1928
        %v1957 = vlaneseq
        %v1958 = vshrl.u32 %v1957, 7
        %v1959 = vsub.s32 1, %v1958
        %v1960 = vrot.slane %v1837, %v1959
        %v1961 = vlaneseq
        %v1962 = vshrl.u32 %v1961, 7
        %v1963 = vsub.s32 1, %v1962
        %v1964 = vrot.slane %v1838, %v1963
        %v1965 = vlaneseq
        %v1966 = vshrl.u32 %v1965, 7
        %v1967 = vsub.s32 1, %v1966
        %v1968 = vrot.slane %v1839, %v1967
        %v1969 = vlaneseq
        %v1970 = vshrl.u32 %v1969, 7
        %v1971 = vsub.s32 1, %v1970
        %v1972 = vrot.slane %v1840, %v1971
        %v1973 = vsel %vm1929, %v1960, 0.0
        %v1974 = vsel %vm1930, %v1964, 0.0
        %v1975 = vsel %vm1931, %v1968, 0.0
        %v1976 = vsel %vm1932, %v1972, 0.0
        %v1977 = vsel %vm1933, %v1960, 0.0
        %v1978 = vsel %vm1934, %v1964, 0.0
        %v1979 = vsel %vm1935, %v1968, 0.0
        %v1980 = vsel %vm1936, %v1972, 0.0
        %v1981 = vsel %vm1937, %v1960, 0.0
        %v1982 = vsel %vm1938, %v1964, 0.0
        %v1983 = vsel %vm1939, %v1968, 0.0
        %v1984 = vsel %vm1940, %v1972, 0.0
        %v1985 = vsel %vm1941, %v1960, 0.0
        %v1986 = vsel %vm1942, %v1964, 0.0
        %v1987 = vsel %vm1943, %v1968, 0.0
        %v1988 = vsel %vm1944, %v1972, 0.0
        %v1989 = vsel %vm1945, %v1960, 0.0
        %v1990 = vsel %vm1946, %v1964, 0.0
        %v1991 = vsel %vm1947, %v1968, 0.0
        %v1992 = vsel %vm1948, %v1972, 0.0
        %v1993 = vsel %vm1949, %v1960, 0.0
        %v1994 = vsel %vm1950, %v1964, 0.0
        %v1995 = vsel %vm1951, %v1968, 0.0
        %v1996 = vsel %vm1952, %v1972, 0.0
        %v1997 = vsel %vm1953, %v1960, 0.0
        %v1998 = vsel %vm1954, %v1964, 0.0
        %v1999 = vsel %vm1955, %v1968, 0.0
        %v2000 = vsel %vm1956, %v1972, 0.0
        %v2001 = vadd.f32 %v1885, %v1973
        %v2002 = vadd.f32 %v1886, %v1974
        %v2003 = vadd.f32 %v1887, %v1975
        %v2004 = vadd.f32 %v1888, %v1976
        %v2005 = vadd.f32 %v1889, %v1977
        %v2006 = vadd.f32 %v1890, %v1978
        %v2007 = vadd.f32 %v1891, %v1979
        %v2008 = vadd.f32 %v1892, %v1980
        %v2009 = vadd.f32 %v1893, %v1981
        %v2010 = vadd.f32 %v1894, %v1982
        %v2011 = vadd.f32 %v1895, %v1983
        %v2012 = vadd.f32 %v1896, %v1984
        %v2013 = vadd.f32 %v1897, %v1985
        %v2014 = vadd.f32 %v1898, %v1986
        %v2015 = vadd.f32 %v1899, %v1987
        %v2016 = vadd.f32 %v1900, %v1988
        %v2017 = vadd.f32 %v1901, %v1989
        %v2018 = vadd.f32 %v1902, %v1990
        %v2019 = vadd.f32 %v1903, %v1991
        %v2020 = vadd.f32 %v1904, %v1992
        %v2021 = vadd.f32 %v1905, %v1993
        %v2022 = vadd.f32 %v1906, %v1994
        %v2023 = vadd.f32 %v1907, %v1995
        %v2024 = vadd.f32 %v1908, %v1996
        %v2025 = vadd.f32 %v1909, %v1997
        %v2026 = vadd.f32 %v1910, %v1998
        %v2027 = vadd.f32 %v1911, %v1999
        %v2028 = vadd.f32 %v1912, %v2000
        %v2029 = vlaneseq
        %v2030 = vshrl.u32 %v2029, 7
        %v2031 = vsub.s32 2, %v2030
        %v2032 = vrot.slane %v385, %v2031
        %v2033 = vlaneseq
        %v2034 = vshrl.u32 %v2033, 7
        %v2035 = vsub.s32 2, %v2034
        %v2036 = vrot.slane %v386, %v2035
        %v2037 = vlaneseq
        %v2038 = vshrl.u32 %v2037, 7
        %v2039 = vsub.s32 2, %v2038
        %v2040 = vrot.slane %v387, %v2039
        %v2041 = vlaneseq
        %v2042 = vshrl.u32 %v2041, 7
        %v2043 = vsub.s32 2, %v2042
        %v2044 = vrot.slane %v388, %v2043
        %vm2045 = vcmp.eq.s32.totalorder %v372, %v2032
        %vm2046 = vcmp.eq.s32.totalorder %v372, %v2036
        %vm2047 = vcmp.eq.s32.totalorder %v372, %v2040
        %vm2048 = vcmp.eq.s32.totalorder %v372, %v2044
        %vm2049 = vcmp.eq.s32.totalorder %v373, %v2032
        %vm2050 = vcmp.eq.s32.totalorder %v373, %v2036
        %vm2051 = vcmp.eq.s32.totalorder %v373, %v2040
        %vm2052 = vcmp.eq.s32.totalorder %v373, %v2044
        %vm2053 = vcmp.eq.s32.totalorder %v374, %v2032
        %vm2054 = vcmp.eq.s32.totalorder %v374, %v2036
        %vm2055 = vcmp.eq.s32.totalorder %v374, %v2040
        %vm2056 = vcmp.eq.s32.totalorder %v374, %v2044
        %vm2057 = vcmp.eq.s32.totalorder %v375, %v2032
        %vm2058 = vcmp.eq.s32.totalorder %v375, %v2036
        %vm2059 = vcmp.eq.s32.totalorder %v375, %v2040
        %vm2060 = vcmp.eq.s32.totalorder %v375, %v2044
        %vm2061 = vcmp.eq.s32.totalorder %v376, %v2032
        %vm2062 = vcmp.eq.s32.totalorder %v376, %v2036
        %vm2063 = vcmp.eq.s32.totalorder %v376, %v2040
        %vm2064 = vcmp.eq.s32.totalorder %v376, %v2044
        %vm2065 = vcmp.eq.s32.totalorder %v377, %v2032
        %vm2066 = vcmp.eq.s32.totalorder %v377, %v2036
        %vm2067 = vcmp.eq.s32.totalorder %v377, %v2040
        %vm2068 = vcmp.eq.s32.totalorder %v377, %v2044
        %vm2069 = vcmp.eq.s32.totalorder %v378, %v2032
        %vm2070 = vcmp.eq.s32.totalorder %v378, %v2036
        %vm2071 = vcmp.eq.s32.totalorder %v378, %v2040
        %vm2072 = vcmp.eq.s32.totalorder %v378, %v2044
        %v2073 = vlaneseq
        %v2074 = vshrl.u32 %v2073, 7
        %v2075 = vsub.s32 2, %v2074
        %v2076 = vrot.slane %v1837, %v2075
        %v2077 = vlaneseq
        %v2078 = vshrl.u32 %v2077, 7
        %v2079 = vsub.s32 2, %v2078
        %v2080 = vrot.slane %v1838, %v2079
        %v2081 = vlaneseq
        %v2082 = vshrl.u32 %v2081, 7
        %v2083 = vsub.s32 2, %v2082
        %v2084 = vrot.slane %v1839, %v2083
        %v2085 = vlaneseq
        %v2086 = vshrl.u32 %v2085, 7
        %v2087 = vsub.s32 2, %v2086
        %v2088 = vrot.slane %v1840, %v2087
        %v2089 = vsel %vm2045, %v2076, 0.0
        %v2090 = vsel %vm2046, %v2080, 0.0
        %v2091 = vsel %vm2047, %v2084, 0.0
        %v2092 = vsel %vm2048, %v2088, 0.0
        %v2093 = vsel %vm2049, %v2076, 0.0
        %v2094 = vsel %vm2050, %v2080, 0.0
        %v2095 = vsel %vm2051, %v2084, 0.0
        %v2096 = vsel %vm2052, %v2088, 0.0
        %v2097 = vsel %vm2053, %v2076, 0.0
        %v2098 = vsel %vm2054, %v2080, 0.0
        %v2099 = vsel %vm2055, %v2084, 0.0
        %v2100 = vsel %vm2056, %v2088, 0.0
        %v2101 = vsel %vm2057, %v2076, 0.0
        %v2102 = vsel %vm2058, %v2080, 0.0
        %v2103 = vsel %vm2059, %v2084, 0.0
        %v2104 = vsel %vm2060, %v2088, 0.0
        %v2105 = vsel %vm2061, %v2076, 0.0
        %v2106 = vsel %vm2062, %v2080, 0.0
        %v2107 = vsel %vm2063, %v2084, 0.0
        %v2108 = vsel %vm2064, %v2088, 0.0
        %v2109 = vsel %vm2065, %v2076, 0.0
        %v2110 = vsel %vm2066, %v2080, 0.0
        %v2111 = vsel %vm2067, %v2084, 0.0
        %v2112 = vsel %vm2068, %v2088, 0.0
        %v2113 = vsel %vm2069, %v2076, 0.0
        %v2114 = vsel %vm2070, %v2080, 0.0
        %v2115 = vsel %vm2071, %v2084, 0.0
        %v2116 = vsel %vm2072, %v2088, 0.0
        %v2117 = vadd.f32 %v2001, %v2089
        %v2118 = vadd.f32 %v2002, %v2090
        %v2119 = vadd.f32 %v2003, %v2091
        %v2120 = vadd.f32 %v2004, %v2092
        %v2121 = vadd.f32 %v2005, %v2093
        %v2122 = vadd.f32 %v2006, %v2094
        %v2123 = vadd.f32 %v2007, %v2095
        %v2124 = vadd.f32 %v2008, %v2096
        %v2125 = vadd.f32 %v2009, %v2097
        %v2126 = vadd.f32 %v2010, %v2098
        %v2127 = vadd.f32 %v2011, %v2099
        %v2128 = vadd.f32 %v2012, %v2100
        %v2129 = vadd.f32 %v2013, %v2101
        %v2130 = vadd.f32 %v2014, %v2102
        %v2131 = vadd.f32 %v2015, %v2103
        %v2132 = vadd.f32 %v2016, %v2104
        %v2133 = vadd.f32 %v2017, %v2105
        %v2134 = vadd.f32 %v2018, %v2106
        %v2135 = vadd.f32 %v2019, %v2107
        %v2136 = vadd.f32 %v2020, %v2108
        %v2137 = vadd.f32 %v2021, %v2109
        %v2138 = vadd.f32 %v2022, %v2110
        %v2139 = vadd.f32 %v2023, %v2111
        %v2140 = vadd.f32 %v2024, %v2112
        %v2141 = vadd.f32 %v2025, %v2113
        %v2142 = vadd.f32 %v2026, %v2114
        %v2143 = vadd.f32 %v2027, %v2115
        %v2144 = vadd.f32 %v2028, %v2116
        %v2145 = vlaneseq
        %v2146 = vshrl.u32 %v2145, 7
        %v2147 = vsub.s32 3, %v2146
        %v2148 = vrot.slane %v385, %v2147
        %v2149 = vlaneseq
        %v2150 = vshrl.u32 %v2149, 7
        %v2151 = vsub.s32 3, %v2150
        %v2152 = vrot.slane %v386, %v2151
        %v2153 = vlaneseq
        %v2154 = vshrl.u32 %v2153, 7
        %v2155 = vsub.s32 3, %v2154
        %v2156 = vrot.slane %v387, %v2155
        %v2157 = vlaneseq
        %v2158 = vshrl.u32 %v2157, 7
        %v2159 = vsub.s32 3, %v2158
        %v2160 = vrot.slane %v388, %v2159
        %vm2161 = vcmp.eq.s32.totalorder %v372, %v2148
        %vm2162 = vcmp.eq.s32.totalorder %v372, %v2152
        %vm2163 = vcmp.eq.s32.totalorder %v372, %v2156
        %vm2164 = vcmp.eq.s32.totalorder %v372, %v2160
        %vm2165 = vcmp.eq.s32.totalorder %v373, %v2148
        %vm2166 = vcmp.eq.s32.totalorder %v373, %v2152
        %vm2167 = vcmp.eq.s32.totalorder %v373, %v2156
        %vm2168 = vcmp.eq.s32.totalorder %v373, %v2160
        %vm2169 = vcmp.eq.s32.totalorder %v374, %v2148
        %vm2170 = vcmp.eq.s32.totalorder %v374, %v2152
        %vm2171 = vcmp.eq.s32.totalorder %v374, %v2156
        %vm2172 = vcmp.eq.s32.totalorder %v374, %v2160
        %vm2173 = vcmp.eq.s32.totalorder %v375, %v2148
        %vm2174 = vcmp.eq.s32.totalorder %v375, %v2152
        %vm2175 = vcmp.eq.s32.totalorder %v375, %v2156
        %vm2176 = vcmp.eq.s32.totalorder %v375, %v2160
        %vm2177 = vcmp.eq.s32.totalorder %v376, %v2148
        %vm2178 = vcmp.eq.s32.totalorder %v376, %v2152
        %vm2179 = vcmp.eq.s32.totalorder %v376, %v2156
        %vm2180 = vcmp.eq.s32.totalorder %v376, %v2160
        %vm2181 = vcmp.eq.s32.totalorder %v377, %v2148
        %vm2182 = vcmp.eq.s32.totalorder %v377, %v2152
        %vm2183 = vcmp.eq.s32.totalorder %v377, %v2156
        %vm2184 = vcmp.eq.s32.totalorder %v377, %v2160
        %vm2185 = vcmp.eq.s32.totalorder %v378, %v2148
        %vm2186 = vcmp.eq.s32.totalorder %v378, %v2152
        %vm2187 = vcmp.eq.s32.totalorder %v378, %v2156
        %vm2188 = vcmp.eq.s32.totalorder %v378, %v2160
        %v2189 = vlaneseq
        %v2190 = vshrl.u32 %v2189, 7
        %v2191 = vsub.s32 3, %v2190
        %v2192 = vrot.slane %v1837, %v2191
        %v2193 = vlaneseq
        %v2194 = vshrl.u32 %v2193, 7
        %v2195 = vsub.s32 3, %v2194
        %v2196 = vrot.slane %v1838, %v2195
        %v2197 = vlaneseq
        %v2198 = vshrl.u32 %v2197, 7
        %v2199 = vsub.s32 3, %v2198
        %v2200 = vrot.slane %v1839, %v2199
        %v2201 = vlaneseq
        %v2202 = vshrl.u32 %v2201, 7
        %v2203 = vsub.s32 3, %v2202
        %v2204 = vrot.slane %v1840, %v2203
        %v2205 = vsel %vm2161, %v2192, 0.0
        %v2206 = vsel %vm2162, %v2196, 0.0
        %v2207 = vsel %vm2163, %v2200, 0.0
        %v2208 = vsel %vm2164, %v2204, 0.0
        %v2209 = vsel %vm2165, %v2192, 0.0
        %v2210 = vsel %vm2166, %v2196, 0.0
        %v2211 = vsel %vm2167, %v2200, 0.0
        %v2212 = vsel %vm2168, %v2204, 0.0
        %v2213 = vsel %vm2169, %v2192, 0.0
        %v2214 = vsel %vm2170, %v2196, 0.0
        %v2215 = vsel %vm2171, %v2200, 0.0
        %v2216 = vsel %vm2172, %v2204, 0.0
        %v2217 = vsel %vm2173, %v2192, 0.0
        %v2218 = vsel %vm2174, %v2196, 0.0
        %v2219 = vsel %vm2175, %v2200, 0.0
        %v2220 = vsel %vm2176, %v2204, 0.0
        %v2221 = vsel %vm2177, %v2192, 0.0
        %v2222 = vsel %vm2178, %v2196, 0.0
        %v2223 = vsel %vm2179, %v2200, 0.0
        %v2224 = vsel %vm2180, %v2204, 0.0
        %v2225 = vsel %vm2181, %v2192, 0.0
        %v2226 = vsel %vm2182, %v2196, 0.0
        %v2227 = vsel %vm2183, %v2200, 0.0
        %v2228 = vsel %vm2184, %v2204, 0.0
        %v2229 = vsel %vm2185, %v2192, 0.0
        %v2230 = vsel %vm2186, %v2196, 0.0
        %v2231 = vsel %vm2187, %v2200, 0.0
        %v2232 = vsel %vm2188, %v2204, 0.0
        %v2233 = vadd.f32 %v2117, %v2205
        %v2234 = vadd.f32 %v2118, %v2206
        %v2235 = vadd.f32 %v2119, %v2207
        %v2236 = vadd.f32 %v2120, %v2208
        %v2237 = vadd.f32 %v2121, %v2209
        %v2238 = vadd.f32 %v2122, %v2210
        %v2239 = vadd.f32 %v2123, %v2211
        %v2240 = vadd.f32 %v2124, %v2212
        %v2241 = vadd.f32 %v2125, %v2213
        %v2242 = vadd.f32 %v2126, %v2214
        %v2243 = vadd.f32 %v2127, %v2215
        %v2244 = vadd.f32 %v2128, %v2216
        %v2245 = vadd.f32 %v2129, %v2217
        %v2246 = vadd.f32 %v2130, %v2218
        %v2247 = vadd.f32 %v2131, %v2219
        %v2248 = vadd.f32 %v2132, %v2220
        %v2249 = vadd.f32 %v2133, %v2221
        %v2250 = vadd.f32 %v2134, %v2222
        %v2251 = vadd.f32 %v2135, %v2223
        %v2252 = vadd.f32 %v2136, %v2224
        %v2253 = vadd.f32 %v2137, %v2225
        %v2254 = vadd.f32 %v2138, %v2226
        %v2255 = vadd.f32 %v2139, %v2227
        %v2256 = vadd.f32 %v2140, %v2228
        %v2257 = vadd.f32 %v2141, %v2229
        %v2258 = vadd.f32 %v2142, %v2230
        %v2259 = vadd.f32 %v2143, %v2231
        %v2260 = vadd.f32 %v2144, %v2232
        %v2261 = vld [vmem:[%s1] sm:$0xff]
        %v2262 = vld [vmem:[%s1 + $0x8] sm:$0xff]
        %v2263 = vld [vmem:[%s1 + $0x10] sm:$0xff]
        %v2264 = vld [vmem:[%s1 + $0x18] sm:$0xff]
        %vm2265 = vcmask 457728
        %v2267 = vsel %vm2265, %v2261, 0
        %v2270 = vsel %vm2265, %v2262, 0
        %v2273 = vsel %vm2265, %v2263, 0
        %v2276 = vsel %vm2265, %v2264, 0
        %2278 = vmatprep.subr.mxu0 %v2234
        %2279 = vmatpush1.msra.mxu0 %v2233
        %2280 = vmatprep.subr.mxu0 %v2238
        %2281 = vmatpush1.msra.mxu0 %v2237
        %2282 = vmatprep.subr.mxu0 %v2242
        %2283 = vmatpush1.msra.mxu0 %v2241
        %2284 = vmatprep.subr.mxu0 %v2246
        %2285 = vmatpush1.msra.mxu0 %v2245
        %2286 = vmatprep.subr.mxu0 %v2250
        %2287 = vmatpush1.msra.mxu0 %v2249
        %2288 = vmatprep.subr.mxu0 %v2254
        %2289 = vmatpush1.msra.mxu0 %v2253
        %2290 = vmatprep.subr.mxu0 %v2258
        %2291 = vmatpush1.msra.mxu0 %v2257
        %2292 = vmatprep.subr.mxu0 0.0
        %2293 = vmatpush1.msra.mxu0 0.0
        %2294 = vmatprep.subr.mxu0 0.0
        %2295 = vmatpush1.msra.mxu0 0.0
        %2296 = vmatprep.subr.mxu0 0.0
        %2297 = vmatpush1.msra.mxu0 0.0
        %2298 = vmatprep.subr.mxu0 0.0
        %2299 = vmatpush1.msra.mxu0 0.0
        %2300 = vmatprep.subr.mxu0 0.0
        %2301 = vmatpush1.msra.mxu0 0.0
        %2302 = vmatprep.subr.mxu0 0.0
        %2303 = vmatpush1.msra.mxu0 0.0
        %2304 = vmatprep.subr.mxu0 0.0
        %2305 = vmatpush1.msra.mxu0 0.0
        %2306 = vmatprep.subr.mxu0 0.0
        %2307 = vmatpush1.msra.mxu0 0.0
        %2308 = vmatprep.subr.mxu0 0.0
        %2309 = vmatpush1.msra.mxu0 0.0
        %2310 = vmatprep.subr.mxu0 0.0
        %2311 = vmatpush1.msra.mxu0 0.0
        %2312 = vmatprep.subr.mxu0 0.0
        %2313 = vmatpush1.msra.mxu0 0.0
        %2314 = vmatprep.subr.mxu0 0.0
        %2315 = vmatpush1.msra.mxu0 0.0
        %2316 = vmatprep.subr.mxu0 0.0
        %2317 = vmatpush1.msra.mxu0 0.0
        %2318 = vmatprep.subr.mxu0 0.0
        %2319 = vmatpush1.msra.mxu0 0.0
        %2320 = vmatprep.subr.mxu0 0.0
        %2321 = vmatpush1.msra.mxu0 0.0
        %2322 = vmatprep.subr.mxu0 0.0
        %2323 = vmatpush1.msra.mxu0 0.0
        %2324 = vmatprep.subr.mxu0 0.0
        %2325 = vmatpush1.msra.mxu0 0.0
        %2326 = vmatprep.subr.mxu0 0.0
        %2327 = vmatpush1.msra.mxu0 0.0
        %2328 = vmatprep.subr.mxu0 0.0
        %2329 = vmatpush1.msra.mxu0 0.0
        %2330 = vmatprep.subr.mxu0 0.0
        %2331 = vmatpush1.msra.mxu0 0.0
        %2332 = vmatprep.subr.mxu0 0.0
        %2333 = vmatpush1.msra.mxu0 0.0
        %2334 = vmatprep.subr.mxu0 0.0
        %2335 = vmatpush1.msra.mxu0 0.0
        %2336 = vmatprep.subr.mxu0 0.0
        %2337 = vmatpush1.msra.mxu0 0.0
        %2338 = vmatprep.subr.mxu0 0.0
        %2339 = vmatpush1.msra.mxu0 0.0
        %2340 = vmatprep.subr.mxu0 0.0
        %2341 = vmatpush1.msra.mxu0 0.0
        %2342 = vmatprep.mubr.f32.mxu0 0.0
        %2343 = vmatmul.mubr.f32.gmra.mrb[0].mxu0 %v2267
        %v2344 = vpop.f32.mrb[0].mxu0
        %v2345 = vadd.f32 0.0, %v2344
        %v2346 = vpop.f32.mrb[0].mxu0
        %v2347 = vadd.f32 0.0, %v2346
        %2348 = vmatprep.mubr.f32.mxu0 0.0
        %2349 = vmatmul.mubr.f32.gmra.mrb[0].mxu0 %v2270
        %v2350 = vpop.f32.mrb[0].mxu0
        %v2351 = vadd.f32 0.0, %v2350
        %v2352 = vpop.f32.mrb[0].mxu0
        %v2353 = vadd.f32 0.0, %v2352
        %2354 = vmatprep.mubr.f32.mxu0 0.0
        %2355 = vmatmul.mubr.f32.gmra.mrb[0].mxu0 %v2273
        %v2356 = vpop.f32.mrb[0].mxu0
        %v2357 = vadd.f32 0.0, %v2356
        %v2358 = vpop.f32.mrb[0].mxu0
        %v2359 = vadd.f32 0.0, %v2358
        %2360 = vmatprep.mubr.f32.mxu0 0.0
        %2361 = vmatmul.mubr.f32.gmra.mrb[0].mxu0 %v2276
        %v2362 = vpop.f32.mrb[0].mxu0
        %v2363 = vadd.f32 0.0, %v2362
        %v2364 = vpop.f32.mrb[0].mxu0
        %v2365 = vadd.f32 0.0, %v2364
        %2366 = vdwg.mxu0
        %2367 = vmatprep.subr.mxu0 %v2236
        %2368 = vmatpush1.msra.mxu0 %v2235
        %2369 = vmatprep.subr.mxu0 %v2240
        %2370 = vmatpush1.msra.mxu0 %v2239
        %2371 = vmatprep.subr.mxu0 %v2244
        %2372 = vmatpush1.msra.mxu0 %v2243
        %2373 = vmatprep.subr.mxu0 %v2248
        %2374 = vmatpush1.msra.mxu0 %v2247
        %2375 = vmatprep.subr.mxu0 %v2252
        %2376 = vmatpush1.msra.mxu0 %v2251
        %2377 = vmatprep.subr.mxu0 %v2256
        %2378 = vmatpush1.msra.mxu0 %v2255
        %2379 = vmatprep.subr.mxu0 %v2260
        %2380 = vmatpush1.msra.mxu0 %v2259
        %2381 = vmatprep.subr.mxu0 0.0
        %2382 = vmatpush1.msra.mxu0 0.0
        %2383 = vmatprep.subr.mxu0 0.0
        %2384 = vmatpush1.msra.mxu0 0.0
        %2385 = vmatprep.subr.mxu0 0.0
        %2386 = vmatpush1.msra.mxu0 0.0
        %2387 = vmatprep.subr.mxu0 0.0
        %2388 = vmatpush1.msra.mxu0 0.0
        %2389 = vmatprep.subr.mxu0 0.0
        %2390 = vmatpush1.msra.mxu0 0.0
        %2391 = vmatprep.subr.mxu0 0.0
        %2392 = vmatpush1.msra.mxu0 0.0
        %2393 = vmatprep.subr.mxu0 0.0
        %2394 = vmatpush1.msra.mxu0 0.0
        %2395 = vmatprep.subr.mxu0 0.0
        %2396 = vmatpush1.msra.mxu0 0.0
        %2397 = vmatprep.subr.mxu0 0.0
        %2398 = vmatpush1.msra.mxu0 0.0
        %2399 = vmatprep.subr.mxu0 0.0
        %2400 = vmatpush1.msra.mxu0 0.0
        %2401 = vmatprep.subr.mxu0 0.0
        %2402 = vmatpush1.msra.mxu0 0.0
        %2403 = vmatprep.subr.mxu0 0.0
        %2404 = vmatpush1.msra.mxu0 0.0
        %2405 = vmatprep.subr.mxu0 0.0
        %2406 = vmatpush1.msra.mxu0 0.0
        %2407 = vmatprep.subr.mxu0 0.0
        %2408 = vmatpush1.msra.mxu0 0.0
        %2409 = vmatprep.subr.mxu0 0.0
        %2410 = vmatpush1.msra.mxu0 0.0
        %2411 = vmatprep.subr.mxu0 0.0
        %2412 = vmatpush1.msra.mxu0 0.0
        %2413 = vmatprep.subr.mxu0 0.0
        %2414 = vmatpush1.msra.mxu0 0.0
        %2415 = vmatprep.subr.mxu0 0.0
        %2416 = vmatpush1.msra.mxu0 0.0
        %2417 = vmatprep.subr.mxu0 0.0
        %2418 = vmatpush1.msra.mxu0 0.0
        %2419 = vmatprep.subr.mxu0 0.0
        %2420 = vmatpush1.msra.mxu0 0.0
        %2421 = vmatprep.subr.mxu0 0.0
        %2422 = vmatpush1.msra.mxu0 0.0
        %2423 = vmatprep.subr.mxu0 0.0
        %2424 = vmatpush1.msra.mxu0 0.0
        %2425 = vmatprep.subr.mxu0 0.0
        %2426 = vmatpush1.msra.mxu0 0.0
        %2427 = vmatprep.subr.mxu0 0.0
        %2428 = vmatpush1.msra.mxu0 0.0
        %2429 = vmatprep.subr.mxu0 0.0
        %2430 = vmatpush1.msra.mxu0 0.0
        %2431 = vmatprep.mubr.f32.mxu0 0.0
        %2432 = vmatmul.mubr.f32.gmra.mrb[0].mxu0 %v2267
        %v2433 = vpop.f32.mrb[0].mxu0
        %v2434 = vadd.f32 0.0, %v2433
        %v2435 = vpop.f32.mrb[0].mxu0
        %v2436 = vadd.f32 0.0, %v2435
        %2437 = vmatprep.mubr.f32.mxu0 0.0
        %2438 = vmatmul.mubr.f32.gmra.mrb[0].mxu0 %v2270
        %v2439 = vpop.f32.mrb[0].mxu0
        %v2440 = vadd.f32 0.0, %v2439
        %v2441 = vpop.f32.mrb[0].mxu0
        %v2442 = vadd.f32 0.0, %v2441
        %2443 = vmatprep.mubr.f32.mxu0 0.0
        %2444 = vmatmul.mubr.f32.gmra.mrb[0].mxu0 %v2273
        %v2445 = vpop.f32.mrb[0].mxu0
        %v2446 = vadd.f32 0.0, %v2445
        %v2447 = vpop.f32.mrb[0].mxu0
        %v2448 = vadd.f32 0.0, %v2447
        %2449 = vmatprep.mubr.f32.mxu0 0.0
        %2450 = vmatmul.mubr.f32.gmra.mrb[0].mxu0 %v2276
        %v2451 = vpop.f32.mrb[0].mxu0
        %v2452 = vadd.f32 0.0, %v2451
        %v2453 = vpop.f32.mrb[0].mxu0
        %v2454 = vadd.f32 0.0, %v2453
        %2455 = vdwg.mxu0
        %v2456 = vld [vmem:[%s0] sm:$0xff]
        %v2457 = vld [vmem:[%s0 + $0x8] sm:$0xff]
        %v2458 = vld [vmem:[%s0 + $0x10] sm:$0xff]
        %v2459 = vld [vmem:[%s0 + $0x18] sm:$0xff]
        %v2460 = vld [vmem:[%s0 + $0x20] sm:$0xff]
        %v2461 = vld [vmem:[%s0 + $0x28] sm:$0xff]
        %v2462 = vld [vmem:[%s0 + $0x30] sm:$0xff]
        %vm2463 = vcmask 261120
        %v2465 = vsel %vm2463, %v2456, 0
        %v2468 = vsel %vm2463, %v2457, 0
        %v2471 = vsel %vm2463, %v2458, 0
        %v2474 = vsel %vm2463, %v2459, 0
        %v2477 = vsel %vm2463, %v2460, 0
        %v2480 = vsel %vm2463, %v2461, 0
        %v2483 = vsel %vm2463, %v2462, 0
        %2485 = vmatprep.subr.mxu0 %v2347
        %2486 = vmatpush1.msra.mxu0 %v2345
        %2487 = vmatprep.subr.mxu0 %v2353
        %2488 = vmatpush1.msra.mxu0 %v2351
        %2489 = vmatprep.subr.mxu0 %v2359
        %2490 = vmatpush1.msra.mxu0 %v2357
        %2491 = vmatprep.subr.mxu0 %v2365
        %2492 = vmatpush1.msra.mxu0 %v2363
        %2493 = vmatprep.subr.mxu0 0.0
        %2494 = vmatpush1.msra.mxu0 0.0
        %2495 = vmatprep.subr.mxu0 0.0
        %2496 = vmatpush1.msra.mxu0 0.0
        %2497 = vmatprep.subr.mxu0 0.0
        %2498 = vmatpush1.msra.mxu0 0.0
        %2499 = vmatprep.subr.mxu0 0.0
        %2500 = vmatpush1.msra.mxu0 0.0
        %2501 = vmatprep.subr.mxu0 0.0
        %2502 = vmatpush1.msra.mxu0 0.0
        %2503 = vmatprep.subr.mxu0 0.0
        %2504 = vmatpush1.msra.mxu0 0.0
        %2505 = vmatprep.subr.mxu0 0.0
        %2506 = vmatpush1.msra.mxu0 0.0
        %2507 = vmatprep.subr.mxu0 0.0
        %2508 = vmatpush1.msra.mxu0 0.0
        %2509 = vmatprep.subr.mxu0 0.0
        %2510 = vmatpush1.msra.mxu0 0.0
        %2511 = vmatprep.subr.mxu0 0.0
        %2512 = vmatpush1.msra.mxu0 0.0
        %2513 = vmatprep.subr.mxu0 0.0
        %2514 = vmatpush1.msra.mxu0 0.0
        %2515 = vmatprep.subr.mxu0 0.0
        %2516 = vmatpush1.msra.mxu0 0.0
        %2517 = vmatprep.subr.mxu0 0.0
        %2518 = vmatpush1.msra.mxu0 0.0
        %2519 = vmatprep.subr.mxu0 0.0
        %2520 = vmatpush1.msra.mxu0 0.0
        %2521 = vmatprep.subr.mxu0 0.0
        %2522 = vmatpush1.msra.mxu0 0.0
        %2523 = vmatprep.subr.mxu0 0.0
        %2524 = vmatpush1.msra.mxu0 0.0
        %2525 = vmatprep.subr.mxu0 0.0
        %2526 = vmatpush1.msra.mxu0 0.0
        %2527 = vmatprep.subr.mxu0 0.0
        %2528 = vmatpush1.msra.mxu0 0.0
        %2529 = vmatprep.subr.mxu0 0.0
        %2530 = vmatpush1.msra.mxu0 0.0
        %2531 = vmatprep.subr.mxu0 0.0
        %2532 = vmatpush1.msra.mxu0 0.0
        %2533 = vmatprep.subr.mxu0 0.0
        %2534 = vmatpush1.msra.mxu0 0.0
        %2535 = vmatprep.subr.mxu0 0.0
        %2536 = vmatpush1.msra.mxu0 0.0
        %2537 = vmatprep.subr.mxu0 0.0
        %2538 = vmatpush1.msra.mxu0 0.0
        %2539 = vmatprep.subr.mxu0 0.0
        %2540 = vmatpush1.msra.mxu0 0.0
        %2541 = vmatprep.subr.mxu0 0.0
        %2542 = vmatpush1.msra.mxu0 0.0
        %2543 = vmatprep.subr.mxu0 0.0
        %2544 = vmatpush1.msra.mxu0 0.0
        %2545 = vmatprep.subr.mxu0 0.0
        %2546 = vmatpush1.msra.mxu0 0.0
        %2547 = vmatprep.subr.mxu0 0.0
        %2548 = vmatpush1.msra.mxu0 0.0
        %2549 = vmatprep.mubr.f32.mxu0 0.0
        %2550 = vmatmul.mubr.f32.gmra.mrb[0].mxu0 %v2465
        %v2551 = vpop.f32.mrb[0].mxu0
        %v2552 = vadd.f32 0.0, %v2551
        %v2553 = vpop.f32.mrb[0].mxu0
        %v2554 = vadd.f32 0.0, %v2553
        %2555 = vmatprep.mubr.f32.mxu0 0.0
        %2556 = vmatmul.mubr.f32.gmra.mrb[0].mxu0 %v2468
        %v2557 = vpop.f32.mrb[0].mxu0
        %v2558 = vadd.f32 0.0, %v2557
        %v2559 = vpop.f32.mrb[0].mxu0
        %v2560 = vadd.f32 0.0, %v2559
        %2561 = vmatprep.mubr.f32.mxu0 0.0
        %2562 = vmatmul.mubr.f32.gmra.mrb[0].mxu0 %v2471
        %v2563 = vpop.f32.mrb[0].mxu0
        %v2564 = vadd.f32 0.0, %v2563
        %v2565 = vpop.f32.mrb[0].mxu0
        %v2566 = vadd.f32 0.0, %v2565
        %2567 = vmatprep.mubr.f32.mxu0 0.0
        %2568 = vmatmul.mubr.f32.gmra.mrb[0].mxu0 %v2474
        %v2569 = vpop.f32.mrb[0].mxu0
        %v2570 = vadd.f32 0.0, %v2569
        %v2571 = vpop.f32.mrb[0].mxu0
        %v2572 = vadd.f32 0.0, %v2571
        %2573 = vmatprep.mubr.f32.mxu0 0.0
        %2574 = vmatmul.mubr.f32.gmra.mrb[0].mxu0 %v2477
        %v2575 = vpop.f32.mrb[0].mxu0
        %v2576 = vadd.f32 0.0, %v2575
        %v2577 = vpop.f32.mrb[0].mxu0
        %v2578 = vadd.f32 0.0, %v2577
        %2579 = vmatprep.mubr.f32.mxu0 0.0
        %2580 = vmatmul.mubr.f32.gmra.mrb[0].mxu0 %v2480
        %v2581 = vpop.f32.mrb[0].mxu0
        %v2582 = vadd.f32 0.0, %v2581
        %v2583 = vpop.f32.mrb[0].mxu0
        %v2584 = vadd.f32 0.0, %v2583
        %2585 = vmatprep.mubr.f32.mxu0 0.0
        %2586 = vmatmul.mubr.f32.gmra.mrb[0].mxu0 %v2483
        %v2587 = vpop.f32.mrb[0].mxu0
        %v2588 = vadd.f32 0.0, %v2587
        %v2589 = vpop.f32.mrb[0].mxu0
        %v2590 = vadd.f32 0.0, %v2589
        %2591 = vdwg.mxu0
        %2592 = vmatprep.subr.mxu0 %v2436
        %2593 = vmatpush1.msra.mxu0 %v2434
        %2594 = vmatprep.subr.mxu0 %v2442
        %2595 = vmatpush1.msra.mxu0 %v2440
        %2596 = vmatprep.subr.mxu0 %v2448
        %2597 = vmatpush1.msra.mxu0 %v2446
        %2598 = vmatprep.subr.mxu0 %v2454
        %2599 = vmatpush1.msra.mxu0 %v2452
        %2600 = vmatprep.subr.mxu0 0.0
        %2601 = vmatpush1.msra.mxu0 0.0
        %2602 = vmatprep.subr.mxu0 0.0
        %2603 = vmatpush1.msra.mxu0 0.0
        %2604 = vmatprep.subr.mxu0 0.0
        %2605 = vmatpush1.msra.mxu0 0.0
        %2606 = vmatprep.subr.mxu0 0.0
        %2607 = vmatpush1.msra.mxu0 0.0
        %2608 = vmatprep.subr.mxu0 0.0
        %2609 = vmatpush1.msra.mxu0 0.0
        %2610 = vmatprep.subr.mxu0 0.0
        %2611 = vmatpush1.msra.mxu0 0.0
        %2612 = vmatprep.subr.mxu0 0.0
        %2613 = vmatpush1.msra.mxu0 0.0
        %2614 = vmatprep.subr.mxu0 0.0
        %2615 = vmatpush1.msra.mxu0 0.0
        %2616 = vmatprep.subr.mxu0 0.0
        %2617 = vmatpush1.msra.mxu0 0.0
        %2618 = vmatprep.subr.mxu0 0.0
        %2619 = vmatpush1.msra.mxu0 0.0
        %2620 = vmatprep.subr.mxu0 0.0
        %2621 = vmatpush1.msra.mxu0 0.0
        %2622 = vmatprep.subr.mxu0 0.0
        %2623 = vmatpush1.msra.mxu0 0.0
        %2624 = vmatprep.subr.mxu0 0.0
        %2625 = vmatpush1.msra.mxu0 0.0
        %2626 = vmatprep.subr.mxu0 0.0
        %2627 = vmatpush1.msra.mxu0 0.0
        %2628 = vmatprep.subr.mxu0 0.0
        %2629 = vmatpush1.msra.mxu0 0.0
        %2630 = vmatprep.subr.mxu0 0.0
        %2631 = vmatpush1.msra.mxu0 0.0
        %2632 = vmatprep.subr.mxu0 0.0
        %2633 = vmatpush1.msra.mxu0 0.0
        %2634 = vmatprep.subr.mxu0 0.0
        %2635 = vmatpush1.msra.mxu0 0.0
        %2636 = vmatprep.subr.mxu0 0.0
        %2637 = vmatpush1.msra.mxu0 0.0
        %2638 = vmatprep.subr.mxu0 0.0
        %2639 = vmatpush1.msra.mxu0 0.0
        %2640 = vmatprep.subr.mxu0 0.0
        %2641 = vmatpush1.msra.mxu0 0.0
        %2642 = vmatprep.subr.mxu0 0.0
        %2643 = vmatpush1.msra.mxu0 0.0
        %2644 = vmatprep.subr.mxu0 0.0
        %2645 = vmatpush1.msra.mxu0 0.0
        %2646 = vmatprep.subr.mxu0 0.0
        %2647 = vmatpush1.msra.mxu0 0.0
        %2648 = vmatprep.subr.mxu0 0.0
        %2649 = vmatpush1.msra.mxu0 0.0
        %2650 = vmatprep.subr.mxu0 0.0
        %2651 = vmatpush1.msra.mxu0 0.0
        %2652 = vmatprep.subr.mxu0 0.0
        %2653 = vmatpush1.msra.mxu0 0.0
        %2654 = vmatprep.subr.mxu0 0.0
        %2655 = vmatpush1.msra.mxu0 0.0
        %2656 = vmatprep.mubr.f32.mxu0 0.0
        %2657 = vmatmul.mubr.f32.gmra.mrb[0].mxu0 %v2465
        %v2658 = vpop.f32.mrb[0].mxu0
        %v2659 = vadd.f32 0.0, %v2658
        %v2660 = vpop.f32.mrb[0].mxu0
        %v2661 = vadd.f32 0.0, %v2660
        %2662 = vmatprep.mubr.f32.mxu0 0.0
        %2663 = vmatmul.mubr.f32.gmra.mrb[0].mxu0 %v2468
        %v2664 = vpop.f32.mrb[0].mxu0
        %v2665 = vadd.f32 0.0, %v2664
        %v2666 = vpop.f32.mrb[0].mxu0
        %v2667 = vadd.f32 0.0, %v2666
        %2668 = vmatprep.mubr.f32.mxu0 0.0
        %2669 = vmatmul.mubr.f32.gmra.mrb[0].mxu0 %v2471
        %v2670 = vpop.f32.mrb[0].mxu0
        %v2671 = vadd.f32 0.0, %v2670
        %v2672 = vpop.f32.mrb[0].mxu0
        %v2673 = vadd.f32 0.0, %v2672
        %2674 = vmatprep.mubr.f32.mxu0 0.0
        %2675 = vmatmul.mubr.f32.gmra.mrb[0].mxu0 %v2474
        %v2676 = vpop.f32.mrb[0].mxu0
        %v2677 = vadd.f32 0.0, %v2676
        %v2678 = vpop.f32.mrb[0].mxu0
        %v2679 = vadd.f32 0.0, %v2678
        %2680 = vmatprep.mubr.f32.mxu0 0.0
        %2681 = vmatmul.mubr.f32.gmra.mrb[0].mxu0 %v2477
        %v2682 = vpop.f32.mrb[0].mxu0
        %v2683 = vadd.f32 0.0, %v2682
        %v2684 = vpop.f32.mrb[0].mxu0
        %v2685 = vadd.f32 0.0, %v2684
        %2686 = vmatprep.mubr.f32.mxu0 0.0
        %2687 = vmatmul.mubr.f32.gmra.mrb[0].mxu0 %v2480
        %v2688 = vpop.f32.mrb[0].mxu0
        %v2689 = vadd.f32 0.0, %v2688
        %v2690 = vpop.f32.mrb[0].mxu0
        %v2691 = vadd.f32 0.0, %v2690
        %2692 = vmatprep.mubr.f32.mxu0 0.0
        %2693 = vmatmul.mubr.f32.gmra.mrb[0].mxu0 %v2483
        %v2694 = vpop.f32.mrb[0].mxu0
        %v2695 = vadd.f32 0.0, %v2694
        %v2696 = vpop.f32.mrb[0].mxu0
        %v2697 = vadd.f32 0.0, %v2696
        %2698 = vdwg.mxu0
        %v2699 = vld [vmem:[%s368] sm:$0xff]
        %v2700 = vld [vmem:[%s368 + $0x8] sm:$0xff]
        %v2701 = vld [vmem:[%s368 + $0x10] sm:$0xff]
        %v2702 = vld [vmem:[%s368 + $0x18] sm:$0xff]
        %v2703 = vlaneseq
        %v2704 = vshrl.u32 %v2703, 7
        %v2705 = vsub.s32 0, %v2704
        %v2706 = vrot.slane %v2699, %v2705
        %v2707 = vlaneseq
        %v2708 = vshrl.u32 %v2707, 7
        %v2709 = vsub.s32 0, %v2708
        %v2710 = vrot.slane %v2700, %v2709
        %v2711 = vlaneseq
        %v2712 = vshrl.u32 %v2711, 7
        %v2713 = vsub.s32 0, %v2712
        %v2714 = vrot.slane %v2701, %v2713
        %v2715 = vlaneseq
        %v2716 = vshrl.u32 %v2715, 7
        %v2717 = vsub.s32 0, %v2716
        %v2718 = vrot.slane %v2702, %v2717
        %vm2719 = vcmp.eq.s32.totalorder %v372, %v2706
        %vm2720 = vcmp.eq.s32.totalorder %v372, %v2710
        %vm2721 = vcmp.eq.s32.totalorder %v372, %v2714
        %vm2722 = vcmp.eq.s32.totalorder %v372, %v2718
        %vm2723 = vcmp.eq.s32.totalorder %v373, %v2706
        %vm2724 = vcmp.eq.s32.totalorder %v373, %v2710
        %vm2725 = vcmp.eq.s32.totalorder %v373, %v2714
        %vm2726 = vcmp.eq.s32.totalorder %v373, %v2718
        %vm2727 = vcmp.eq.s32.totalorder %v374, %v2706
        %vm2728 = vcmp.eq.s32.totalorder %v374, %v2710
        %vm2729 = vcmp.eq.s32.totalorder %v374, %v2714
        %vm2730 = vcmp.eq.s32.totalorder %v374, %v2718
        %vm2731 = vcmp.eq.s32.totalorder %v375, %v2706
        %vm2732 = vcmp.eq.s32.totalorder %v375, %v2710
        %vm2733 = vcmp.eq.s32.totalorder %v375, %v2714
        %vm2734 = vcmp.eq.s32.totalorder %v375, %v2718
        %vm2735 = vcmp.eq.s32.totalorder %v376, %v2706
        %vm2736 = vcmp.eq.s32.totalorder %v376, %v2710
        %vm2737 = vcmp.eq.s32.totalorder %v376, %v2714
        %vm2738 = vcmp.eq.s32.totalorder %v376, %v2718
        %vm2739 = vcmp.eq.s32.totalorder %v377, %v2706
        %vm2740 = vcmp.eq.s32.totalorder %v377, %v2710
        %vm2741 = vcmp.eq.s32.totalorder %v377, %v2714
        %vm2742 = vcmp.eq.s32.totalorder %v377, %v2718
        %vm2743 = vcmp.eq.s32.totalorder %v378, %v2706
        %vm2744 = vcmp.eq.s32.totalorder %v378, %v2710
        %vm2745 = vcmp.eq.s32.totalorder %v378, %v2714
        %vm2746 = vcmp.eq.s32.totalorder %v378, %v2718
        %v2747 = vsel %vm2719, %v2552, 0.0
        %v2748 = vsel %vm2720, %v2554, 0.0
        %v2749 = vsel %vm2721, %v2659, 0.0
        %v2750 = vsel %vm2722, %v2661, 0.0
        %v2751 = vsel %vm2723, %v2558, 0.0
        %v2752 = vsel %vm2724, %v2560, 0.0
        %v2753 = vsel %vm2725, %v2665, 0.0
        %v2754 = vsel %vm2726, %v2667, 0.0
        %v2755 = vsel %vm2727, %v2564, 0.0
        %v2756 = vsel %vm2728, %v2566, 0.0
        %v2757 = vsel %vm2729, %v2671, 0.0
        %v2758 = vsel %vm2730, %v2673, 0.0
        %v2759 = vsel %vm2731, %v2570, 0.0
        %v2760 = vsel %vm2732, %v2572, 0.0
        %v2761 = vsel %vm2733, %v2677, 0.0
        %v2762 = vsel %vm2734, %v2679, 0.0
        %v2763 = vsel %vm2735, %v2576, 0.0
        %v2764 = vsel %vm2736, %v2578, 0.0
        %v2765 = vsel %vm2737, %v2683, 0.0
        %v2766 = vsel %vm2738, %v2685, 0.0
        %v2767 = vsel %vm2739, %v2582, 0.0
        %v2768 = vsel %vm2740, %v2584, 0.0
        %v2769 = vsel %vm2741, %v2689, 0.0
        %v2770 = vsel %vm2742, %v2691, 0.0
        %v2771 = vsel %vm2743, %v2588, 0.0
        %v2772 = vsel %vm2744, %v2590, 0.0
        %v2773 = vsel %vm2745, %v2695, 0.0
        %v2774 = vsel %vm2746, %v2697, 0.0
        %v2775 = vadd.f32 %v2747, %v2751
        %v2776 = vadd.f32 %v2775, %v2755
        %v2777 = vadd.f32 %v2776, %v2759
        %v2778 = vadd.f32 %v2777, %v2763
        %v2779 = vadd.f32 %v2778, %v2767
        %v2780 = vadd.f32 %v2779, %v2771
        %v2781 = vrot.slane %v2780, 4
        %v2782 = vadd.f32 %v2780, %v2781
        %v2783 = vrot.slane %v2782, 2
        %v2784 = vadd.f32 %v2782, %v2783
        %v2785 = vrot.slane %v2784, 1
        %v2786 = vadd.f32 %v2784, %v2785
        %v2787 = vadd.f32 %v2748, %v2752
        %v2788 = vadd.f32 %v2787, %v2756
        %v2789 = vadd.f32 %v2788, %v2760
        %v2790 = vadd.f32 %v2789, %v2764
        %v2791 = vadd.f32 %v2790, %v2768
        %v2792 = vadd.f32 %v2791, %v2772
        %v2793 = vrot.slane %v2792, 4
        %v2794 = vadd.f32 %v2792, %v2793
        %v2795 = vrot.slane %v2794, 2
        %v2796 = vadd.f32 %v2794, %v2795
        %v2797 = vrot.slane %v2796, 1
        %v2798 = vadd.f32 %v2796, %v2797
        %v2799 = vadd.f32 %v2749, %v2753
        %v2800 = vadd.f32 %v2799, %v2757
        %v2801 = vadd.f32 %v2800, %v2761
        %v2802 = vadd.f32 %v2801, %v2765
        %v2803 = vadd.f32 %v2802, %v2769
        %v2804 = vadd.f32 %v2803, %v2773
        %v2805 = vrot.slane %v2804, 4
        %v2806 = vadd.f32 %v2804, %v2805
        %v2807 = vrot.slane %v2806, 2
        %v2808 = vadd.f32 %v2806, %v2807
        %v2809 = vrot.slane %v2808, 1
        %v2810 = vadd.f32 %v2808, %v2809
        %v2811 = vadd.f32 %v2750, %v2754
        %v2812 = vadd.f32 %v2811, %v2758
        %v2813 = vadd.f32 %v2812, %v2762
        %v2814 = vadd.f32 %v2813, %v2766
        %v2815 = vadd.f32 %v2814, %v2770
        %v2816 = vadd.f32 %v2815, %v2774
        %v2817 = vrot.slane %v2816, 4
        %v2818 = vadd.f32 %v2816, %v2817
        %v2819 = vrot.slane %v2818, 2
        %v2820 = vadd.f32 %v2818, %v2819
        %v2821 = vrot.slane %v2820, 1
        %v2822 = vadd.f32 %v2820, %v2821
        %v2823 = vlaneseq
        %v2824 = vshrl.u32 %v2823, 7
        %v2825 = vsub.s32 1, %v2824
        %v2826 = vrot.slane %v2699, %v2825
        %v2827 = vlaneseq
        %v2828 = vshrl.u32 %v2827, 7
        %v2829 = vsub.s32 1, %v2828
        %v2830 = vrot.slane %v2700, %v2829
        %v2831 = vlaneseq
        %v2832 = vshrl.u32 %v2831, 7
        %v2833 = vsub.s32 1, %v2832
        %v2834 = vrot.slane %v2701, %v2833
        %v2835 = vlaneseq
        %v2836 = vshrl.u32 %v2835, 7
        %v2837 = vsub.s32 1, %v2836
        %v2838 = vrot.slane %v2702, %v2837
        %vm2839 = vcmp.eq.s32.totalorder %v372, %v2826
        %vm2840 = vcmp.eq.s32.totalorder %v372, %v2830
        %vm2841 = vcmp.eq.s32.totalorder %v372, %v2834
        %vm2842 = vcmp.eq.s32.totalorder %v372, %v2838
        %vm2843 = vcmp.eq.s32.totalorder %v373, %v2826
        %vm2844 = vcmp.eq.s32.totalorder %v373, %v2830
        %vm2845 = vcmp.eq.s32.totalorder %v373, %v2834
        %vm2846 = vcmp.eq.s32.totalorder %v373, %v2838
        %vm2847 = vcmp.eq.s32.totalorder %v374, %v2826
        %vm2848 = vcmp.eq.s32.totalorder %v374, %v2830
        %vm2849 = vcmp.eq.s32.totalorder %v374, %v2834
        %vm2850 = vcmp.eq.s32.totalorder %v374, %v2838
        %vm2851 = vcmp.eq.s32.totalorder %v375, %v2826
        %vm2852 = vcmp.eq.s32.totalorder %v375, %v2830
        %vm2853 = vcmp.eq.s32.totalorder %v375, %v2834
        %vm2854 = vcmp.eq.s32.totalorder %v375, %v2838
        %vm2855 = vcmp.eq.s32.totalorder %v376, %v2826
        %vm2856 = vcmp.eq.s32.totalorder %v376, %v2830
        %vm2857 = vcmp.eq.s32.totalorder %v376, %v2834
        %vm2858 = vcmp.eq.s32.totalorder %v376, %v2838
        %vm2859 = vcmp.eq.s32.totalorder %v377, %v2826
        %vm2860 = vcmp.eq.s32.totalorder %v377, %v2830
        %vm2861 = vcmp.eq.s32.totalorder %v377, %v2834
        %vm2862 = vcmp.eq.s32.totalorder %v377, %v2838
        %vm2863 = vcmp.eq.s32.totalorder %v378, %v2826
        %vm2864 = vcmp.eq.s32.totalorder %v378, %v2830
        %vm2865 = vcmp.eq.s32.totalorder %v378, %v2834
        %vm2866 = vcmp.eq.s32.totalorder %v378, %v2838
        %v2867 = vsel %vm2839, %v2552, 0.0
        %v2868 = vsel %vm2840, %v2554, 0.0
        %v2869 = vsel %vm2841, %v2659, 0.0
        %v2870 = vsel %vm2842, %v2661, 0.0
        %v2871 = vsel %vm2843, %v2558, 0.0
        %v2872 = vsel %vm2844, %v2560, 0.0
        %v2873 = vsel %vm2845, %v2665, 0.0
        %v2874 = vsel %vm2846, %v2667, 0.0
        %v2875 = vsel %vm2847, %v2564, 0.0
        %v2876 = vsel %vm2848, %v2566, 0.0
        %v2877 = vsel %vm2849, %v2671, 0.0
        %v2878 = vsel %vm2850, %v2673, 0.0
        %v2879 = vsel %vm2851, %v2570, 0.0
        %v2880 = vsel %vm2852, %v2572, 0.0
        %v2881 = vsel %vm2853, %v2677, 0.0
        %v2882 = vsel %vm2854, %v2679, 0.0
        %v2883 = vsel %vm2855, %v2576, 0.0
        %v2884 = vsel %vm2856, %v2578, 0.0
        %v2885 = vsel %vm2857, %v2683, 0.0
        %v2886 = vsel %vm2858, %v2685, 0.0
        %v2887 = vsel %vm2859, %v2582, 0.0
        %v2888 = vsel %vm2860, %v2584, 0.0
        %v2889 = vsel %vm2861, %v2689, 0.0
        %v2890 = vsel %vm2862, %v2691, 0.0
        %v2891 = vsel %vm2863, %v2588, 0.0
        %v2892 = vsel %vm2864, %v2590, 0.0
        %v2893 = vsel %vm2865, %v2695, 0.0
        %v2894 = vsel %vm2866, %v2697, 0.0
        %v2895 = vadd.f32 %v2867, %v2871
        %v2896 = vadd.f32 %v2895, %v2875
        %v2897 = vadd.f32 %v2896, %v2879
        %v2898 = vadd.f32 %v2897, %v2883
        %v2899 = vadd.f32 %v2898, %v2887
        %v2900 = vadd.f32 %v2899, %v2891
        %v2901 = vrot.slane %v2900, 4
        %v2902 = vadd.f32 %v2900, %v2901
        %v2903 = vrot.slane %v2902, 2
        %v2904 = vadd.f32 %v2902, %v2903
        %v2905 = vrot.slane %v2904, 1
        %v2906 = vadd.f32 %v2904, %v2905
        %v2907 = vadd.f32 %v2868, %v2872
        %v2908 = vadd.f32 %v2907, %v2876
        %v2909 = vadd.f32 %v2908, %v2880
        %v2910 = vadd.f32 %v2909, %v2884
        %v2911 = vadd.f32 %v2910, %v2888
        %v2912 = vadd.f32 %v2911, %v2892
        %v2913 = vrot.slane %v2912, 4
        %v2914 = vadd.f32 %v2912, %v2913
        %v2915 = vrot.slane %v2914, 2
        %v2916 = vadd.f32 %v2914, %v2915
        %v2917 = vrot.slane %v2916, 1
        %v2918 = vadd.f32 %v2916, %v2917
        %v2919 = vadd.f32 %v2869, %v2873
        %v2920 = vadd.f32 %v2919, %v2877
        %v2921 = vadd.f32 %v2920, %v2881
        %v2922 = vadd.f32 %v2921, %v2885
        %v2923 = vadd.f32 %v2922, %v2889
        %v2924 = vadd.f32 %v2923, %v2893
        %v2925 = vrot.slane %v2924, 4
        %v2926 = vadd.f32 %v2924, %v2925
        %v2927 = vrot.slane %v2926, 2
        %v2928 = vadd.f32 %v2926, %v2927
        %v2929 = vrot.slane %v2928, 1
        %v2930 = vadd.f32 %v2928, %v2929
        %v2931 = vadd.f32 %v2870, %v2874
        %v2932 = vadd.f32 %v2931, %v2878
        %v2933 = vadd.f32 %v2932, %v2882
        %v2934 = vadd.f32 %v2933, %v2886
        %v2935 = vadd.f32 %v2934, %v2890
        %v2936 = vadd.f32 %v2935, %v2894
        %v2937 = vrot.slane %v2936, 4
        %v2938 = vadd.f32 %v2936, %v2937
        %v2939 = vrot.slane %v2938, 2
        %v2940 = vadd.f32 %v2938, %v2939
        %v2941 = vrot.slane %v2940, 1
        %v2942 = vadd.f32 %v2940, %v2941
        %v2943 = vlaneseq
        %v2944 = vshrl.u32 %v2943, 7
        %v2945 = vsub.s32 2, %v2944
        %v2946 = vrot.slane %v2699, %v2945
        %v2947 = vlaneseq
        %v2948 = vshrl.u32 %v2947, 7
        %v2949 = vsub.s32 2, %v2948
        %v2950 = vrot.slane %v2700, %v2949
        %v2951 = vlaneseq
        %v2952 = vshrl.u32 %v2951, 7
        %v2953 = vsub.s32 2, %v2952
        %v2954 = vrot.slane %v2701, %v2953
        %v2955 = vlaneseq
        %v2956 = vshrl.u32 %v2955, 7
        %v2957 = vsub.s32 2, %v2956
        %v2958 = vrot.slane %v2702, %v2957
        %vm2959 = vcmp.eq.s32.totalorder %v372, %v2946
        %vm2960 = vcmp.eq.s32.totalorder %v372, %v2950
        %vm2961 = vcmp.eq.s32.totalorder %v372, %v2954
        %vm2962 = vcmp.eq.s32.totalorder %v372, %v2958
        %vm2963 = vcmp.eq.s32.totalorder %v373, %v2946
        %vm2964 = vcmp.eq.s32.totalorder %v373, %v2950
        %vm2965 = vcmp.eq.s32.totalorder %v373, %v2954
        %vm2966 = vcmp.eq.s32.totalorder %v373, %v2958
        %vm2967 = vcmp.eq.s32.totalorder %v374, %v2946
        %vm2968 = vcmp.eq.s32.totalorder %v374, %v2950
        %vm2969 = vcmp.eq.s32.totalorder %v374, %v2954
        %vm2970 = vcmp.eq.s32.totalorder %v374, %v2958
        %vm2971 = vcmp.eq.s32.totalorder %v375, %v2946
        %vm2972 = vcmp.eq.s32.totalorder %v375, %v2950
        %vm2973 = vcmp.eq.s32.totalorder %v375, %v2954
        %vm2974 = vcmp.eq.s32.totalorder %v375, %v2958
        %vm2975 = vcmp.eq.s32.totalorder %v376, %v2946
        %vm2976 = vcmp.eq.s32.totalorder %v376, %v2950
        %vm2977 = vcmp.eq.s32.totalorder %v376, %v2954
        %vm2978 = vcmp.eq.s32.totalorder %v376, %v2958
        %vm2979 = vcmp.eq.s32.totalorder %v377, %v2946
        %vm2980 = vcmp.eq.s32.totalorder %v377, %v2950
        %vm2981 = vcmp.eq.s32.totalorder %v377, %v2954
        %vm2982 = vcmp.eq.s32.totalorder %v377, %v2958
        %vm2983 = vcmp.eq.s32.totalorder %v378, %v2946
        %vm2984 = vcmp.eq.s32.totalorder %v378, %v2950
        %vm2985 = vcmp.eq.s32.totalorder %v378, %v2954
        %vm2986 = vcmp.eq.s32.totalorder %v378, %v2958
        %v2987 = vsel %vm2959, %v2552, 0.0
        %v2988 = vsel %vm2960, %v2554, 0.0
        %v2989 = vsel %vm2961, %v2659, 0.0
        %v2990 = vsel %vm2962, %v2661, 0.0
        %v2991 = vsel %vm2963, %v2558, 0.0
        %v2992 = vsel %vm2964, %v2560, 0.0
        %v2993 = vsel %vm2965, %v2665, 0.0
        %v2994 = vsel %vm2966, %v2667, 0.0
        %v2995 = vsel %vm2967, %v2564, 0.0
        %v2996 = vsel %vm2968, %v2566, 0.0
        %v2997 = vsel %vm2969, %v2671, 0.0
        %v2998 = vsel %vm2970, %v2673, 0.0
        %v2999 = vsel %vm2971, %v2570, 0.0
        %v3000 = vsel %vm2972, %v2572, 0.0
        %v3001 = vsel %vm2973, %v2677, 0.0
        %v3002 = vsel %vm2974, %v2679, 0.0
        %v3003 = vsel %vm2975, %v2576, 0.0
        %v3004 = vsel %vm2976, %v2578, 0.0
        %v3005 = vsel %vm2977, %v2683, 0.0
        %v3006 = vsel %vm2978, %v2685, 0.0
        %v3007 = vsel %vm2979, %v2582, 0.0
        %v3008 = vsel %vm2980, %v2584, 0.0
        %v3009 = vsel %vm2981, %v2689, 0.0
        %v3010 = vsel %vm2982, %v2691, 0.0
        %v3011 = vsel %vm2983, %v2588, 0.0
        %v3012 = vsel %vm2984, %v2590, 0.0
        %v3013 = vsel %vm2985, %v2695, 0.0
        %v3014 = vsel %vm2986, %v2697, 0.0
        %v3015 = vadd.f32 %v2987, %v2991
        %v3016 = vadd.f32 %v3015, %v2995
        %v3017 = vadd.f32 %v3016, %v2999
        %v3018 = vadd.f32 %v3017, %v3003
        %v3019 = vadd.f32 %v3018, %v3007
        %v3020 = vadd.f32 %v3019, %v3011
        %v3021 = vrot.slane %v3020, 4
        %v3022 = vadd.f32 %v3020, %v3021
        %v3023 = vrot.slane %v3022, 2
        %v3024 = vadd.f32 %v3022, %v3023
        %v3025 = vrot.slane %v3024, 1
        %v3026 = vadd.f32 %v3024, %v3025
        %v3027 = vadd.f32 %v2988, %v2992
        %v3028 = vadd.f32 %v3027, %v2996
        %v3029 = vadd.f32 %v3028, %v3000
        %v3030 = vadd.f32 %v3029, %v3004
        %v3031 = vadd.f32 %v3030, %v3008
        %v3032 = vadd.f32 %v3031, %v3012
        %v3033 = vrot.slane %v3032, 4
        %v3034 = vadd.f32 %v3032, %v3033
        %v3035 = vrot.slane %v3034, 2
        %v3036 = vadd.f32 %v3034, %v3035
        %v3037 = vrot.slane %v3036, 1
        %v3038 = vadd.f32 %v3036, %v3037
        %v3039 = vadd.f32 %v2989, %v2993
        %v3040 = vadd.f32 %v3039, %v2997
        %v3041 = vadd.f32 %v3040, %v3001
        %v3042 = vadd.f32 %v3041, %v3005
        %v3043 = vadd.f32 %v3042, %v3009
        %v3044 = vadd.f32 %v3043, %v3013
        %v3045 = vrot.slane %v3044, 4
        %v3046 = vadd.f32 %v3044, %v3045
        %v3047 = vrot.slane %v3046, 2
        %v3048 = vadd.f32 %v3046, %v3047
        %v3049 = vrot.slane %v3048, 1
        %v3050 = vadd.f32 %v3048, %v3049
        %v3051 = vadd.f32 %v2990, %v2994
        %v3052 = vadd.f32 %v3051, %v2998
        %v3053 = vadd.f32 %v3052, %v3002
        %v3054 = vadd.f32 %v3053, %v3006
        %v3055 = vadd.f32 %v3054, %v3010
        %v3056 = vadd.f32 %v3055, %v3014
        %v3057 = vrot.slane %v3056, 4
        %v3058 = vadd.f32 %v3056, %v3057
        %v3059 = vrot.slane %v3058, 2
        %v3060 = vadd.f32 %v3058, %v3059
        %v3061 = vrot.slane %v3060, 1
        %v3062 = vadd.f32 %v3060, %v3061
        %v3063 = vlaneseq
        %v3064 = vshrl.u32 %v3063, 7
        %v3065 = vsub.s32 3, %v3064
        %v3066 = vrot.slane %v2699, %v3065
        %v3067 = vlaneseq
        %v3068 = vshrl.u32 %v3067, 7
        %v3069 = vsub.s32 3, %v3068
        %v3070 = vrot.slane %v2700, %v3069
        %v3071 = vlaneseq
        %v3072 = vshrl.u32 %v3071, 7
        %v3073 = vsub.s32 3, %v3072
        %v3074 = vrot.slane %v2701, %v3073
        %v3075 = vlaneseq
        %v3076 = vshrl.u32 %v3075, 7
        %v3077 = vsub.s32 3, %v3076
        %v3078 = vrot.slane %v2702, %v3077
        %vm3079 = vcmp.eq.s32.totalorder %v372, %v3066
        %vm3080 = vcmp.eq.s32.totalorder %v372, %v3070
        %vm3081 = vcmp.eq.s32.totalorder %v372, %v3074
        %vm3082 = vcmp.eq.s32.totalorder %v372, %v3078
        %vm3083 = vcmp.eq.s32.totalorder %v373, %v3066
        %vm3084 = vcmp.eq.s32.totalorder %v373, %v3070
        %vm3085 = vcmp.eq.s32.totalorder %v373, %v3074
        %vm3086 = vcmp.eq.s32.totalorder %v373, %v3078
        %vm3087 = vcmp.eq.s32.totalorder %v374, %v3066
        %vm3088 = vcmp.eq.s32.totalorder %v374, %v3070
        %vm3089 = vcmp.eq.s32.totalorder %v374, %v3074
        %vm3090 = vcmp.eq.s32.totalorder %v374, %v3078
        %vm3091 = vcmp.eq.s32.totalorder %v375, %v3066
        %vm3092 = vcmp.eq.s32.totalorder %v375, %v3070
        %vm3093 = vcmp.eq.s32.totalorder %v375, %v3074
        %vm3094 = vcmp.eq.s32.totalorder %v375, %v3078
        %vm3095 = vcmp.eq.s32.totalorder %v376, %v3066
        %vm3096 = vcmp.eq.s32.totalorder %v376, %v3070
        %vm3097 = vcmp.eq.s32.totalorder %v376, %v3074
        %vm3098 = vcmp.eq.s32.totalorder %v376, %v3078
        %vm3099 = vcmp.eq.s32.totalorder %v377, %v3066
        %vm3100 = vcmp.eq.s32.totalorder %v377, %v3070
        %vm3101 = vcmp.eq.s32.totalorder %v377, %v3074
        %vm3102 = vcmp.eq.s32.totalorder %v377, %v3078
        %vm3103 = vcmp.eq.s32.totalorder %v378, %v3066
        %vm3104 = vcmp.eq.s32.totalorder %v378, %v3070
        %vm3105 = vcmp.eq.s32.totalorder %v378, %v3074
        %vm3106 = vcmp.eq.s32.totalorder %v378, %v3078
        %v3107 = vsel %vm3079, %v2552, 0.0
        %v3108 = vsel %vm3080, %v2554, 0.0
        %v3109 = vsel %vm3081, %v2659, 0.0
        %v3110 = vsel %vm3082, %v2661, 0.0
        %v3111 = vsel %vm3083, %v2558, 0.0
        %v3112 = vsel %vm3084, %v2560, 0.0
        %v3113 = vsel %vm3085, %v2665, 0.0
        %v3114 = vsel %vm3086, %v2667, 0.0
        %v3115 = vsel %vm3087, %v2564, 0.0
        %v3116 = vsel %vm3088, %v2566, 0.0
        %v3117 = vsel %vm3089, %v2671, 0.0
        %v3118 = vsel %vm3090, %v2673, 0.0
        %v3119 = vsel %vm3091, %v2570, 0.0
        %v3120 = vsel %vm3092, %v2572, 0.0
        %v3121 = vsel %vm3093, %v2677, 0.0
        %v3122 = vsel %vm3094, %v2679, 0.0
        %v3123 = vsel %vm3095, %v2576, 0.0
        %v3124 = vsel %vm3096, %v2578, 0.0
        %v3125 = vsel %vm3097, %v2683, 0.0
        %v3126 = vsel %vm3098, %v2685, 0.0
        %v3127 = vsel %vm3099, %v2582, 0.0
        %v3128 = vsel %vm3100, %v2584, 0.0
        %v3129 = vsel %vm3101, %v2689, 0.0
        %v3130 = vsel %vm3102, %v2691, 0.0
        %v3131 = vsel %vm3103, %v2588, 0.0
        %v3132 = vsel %vm3104, %v2590, 0.0
        %v3133 = vsel %vm3105, %v2695, 0.0
        %v3134 = vsel %vm3106, %v2697, 0.0
        %v3135 = vadd.f32 %v3107, %v3111
        %v3136 = vadd.f32 %v3135, %v3115
        %v3137 = vadd.f32 %v3136, %v3119
        %v3138 = vadd.f32 %v3137, %v3123
        %v3139 = vadd.f32 %v3138, %v3127
        %v3140 = vadd.f32 %v3139, %v3131
        %v3141 = vrot.slane %v3140, 4
        %v3142 = vadd.f32 %v3140, %v3141
        %v3143 = vrot.slane %v3142, 2
        %v3144 = vadd.f32 %v3142, %v3143
        %v3145 = vrot.slane %v3144, 1
        %v3146 = vadd.f32 %v3144, %v3145
        %v3147 = vadd.f32 %v3108, %v3112
        %v3148 = vadd.f32 %v3147, %v3116
        %v3149 = vadd.f32 %v3148, %v3120
        %v3150 = vadd.f32 %v3149, %v3124
        %v3151 = vadd.f32 %v3150, %v3128
        %v3152 = vadd.f32 %v3151, %v3132
        %v3153 = vrot.slane %v3152, 4
        %v3154 = vadd.f32 %v3152, %v3153
        %v3155 = vrot.slane %v3154, 2
        %v3156 = vadd.f32 %v3154, %v3155
        %v3157 = vrot.slane %v3156, 1
        %v3158 = vadd.f32 %v3156, %v3157
        %v3159 = vadd.f32 %v3109, %v3113
        %v3160 = vadd.f32 %v3159, %v3117
        %v3161 = vadd.f32 %v3160, %v3121
        %v3162 = vadd.f32 %v3161, %v3125
        %v3163 = vadd.f32 %v3162, %v3129
        %v3164 = vadd.f32 %v3163, %v3133
        %v3165 = vrot.slane %v3164, 4
        %v3166 = vadd.f32 %v3164, %v3165
        %v3167 = vrot.slane %v3166, 2
        %v3168 = vadd.f32 %v3166, %v3167
        %v3169 = vrot.slane %v3168, 1
        %v3170 = vadd.f32 %v3168, %v3169
        %v3171 = vadd.f32 %v3110, %v3114
        %v3172 = vadd.f32 %v3171, %v3118
        %v3173 = vadd.f32 %v3172, %v3122
        %v3174 = vadd.f32 %v3173, %v3126
        %v3175 = vadd.f32 %v3174, %v3130
        %v3176 = vadd.f32 %v3175, %v3134
        %v3177 = vrot.slane %v3176, 4
        %v3178 = vadd.f32 %v3176, %v3177
        %v3179 = vrot.slane %v3178, 2
        %v3180 = vadd.f32 %v3178, %v3179
        %v3181 = vrot.slane %v3180, 1
        %v3182 = vadd.f32 %v3180, %v3181
        %v3183 = vlaneseq
        %v3184 = vshrl.u32 %v3183, 7
        %v3185 = vsub.s32 4, %v3184
        %v3186 = vrot.slane %v2699, %v3185
        %v3187 = vlaneseq
        %v3188 = vshrl.u32 %v3187, 7
        %v3189 = vsub.s32 4, %v3188
        %v3190 = vrot.slane %v2700, %v3189
        %v3191 = vlaneseq
        %v3192 = vshrl.u32 %v3191, 7
        %v3193 = vsub.s32 4, %v3192
        %v3194 = vrot.slane %v2701, %v3193
        %v3195 = vlaneseq
        %v3196 = vshrl.u32 %v3195, 7
        %v3197 = vsub.s32 4, %v3196
        %v3198 = vrot.slane %v2702, %v3197
        %vm3199 = vcmp.eq.s32.totalorder %v372, %v3186
        %vm3200 = vcmp.eq.s32.totalorder %v372, %v3190
        %vm3201 = vcmp.eq.s32.totalorder %v372, %v3194
        %vm3202 = vcmp.eq.s32.totalorder %v372, %v3198
        %vm3203 = vcmp.eq.s32.totalorder %v373, %v3186
        %vm3204 = vcmp.eq.s32.totalorder %v373, %v3190
        %vm3205 = vcmp.eq.s32.totalorder %v373, %v3194
        %vm3206 = vcmp.eq.s32.totalorder %v373, %v3198
        %vm3207 = vcmp.eq.s32.totalorder %v374, %v3186
        %vm3208 = vcmp.eq.s32.totalorder %v374, %v3190
        %vm3209 = vcmp.eq.s32.totalorder %v374, %v3194
        %vm3210 = vcmp.eq.s32.totalorder %v374, %v3198
        %vm3211 = vcmp.eq.s32.totalorder %v375, %v3186
        %vm3212 = vcmp.eq.s32.totalorder %v375, %v3190
        %vm3213 = vcmp.eq.s32.totalorder %v375, %v3194
        %vm3214 = vcmp.eq.s32.totalorder %v375, %v3198
        %vm3215 = vcmp.eq.s32.totalorder %v376, %v3186
        %vm3216 = vcmp.eq.s32.totalorder %v376, %v3190
        %vm3217 = vcmp.eq.s32.totalorder %v376, %v3194
        %vm3218 = vcmp.eq.s32.totalorder %v376, %v3198
        %vm3219 = vcmp.eq.s32.totalorder %v377, %v3186
        %vm3220 = vcmp.eq.s32.totalorder %v377, %v3190
        %vm3221 = vcmp.eq.s32.totalorder %v377, %v3194
        %vm3222 = vcmp.eq.s32.totalorder %v377, %v3198
        %vm3223 = vcmp.eq.s32.totalorder %v378, %v3186
        %vm3224 = vcmp.eq.s32.totalorder %v378, %v3190
        %vm3225 = vcmp.eq.s32.totalorder %v378, %v3194
        %vm3226 = vcmp.eq.s32.totalorder %v378, %v3198
        %v3227 = vsel %vm3199, %v2552, 0.0
        %v3228 = vsel %vm3200, %v2554, 0.0
        %v3229 = vsel %vm3201, %v2659, 0.0
        %v3230 = vsel %vm3202, %v2661, 0.0
        %v3231 = vsel %vm3203, %v2558, 0.0
        %v3232 = vsel %vm3204, %v2560, 0.0
        %v3233 = vsel %vm3205, %v2665, 0.0
        %v3234 = vsel %vm3206, %v2667, 0.0
        %v3235 = vsel %vm3207, %v2564, 0.0
        %v3236 = vsel %vm3208, %v2566, 0.0
        %v3237 = vsel %vm3209, %v2671, 0.0
        %v3238 = vsel %vm3210, %v2673, 0.0
        %v3239 = vsel %vm3211, %v2570, 0.0
        %v3240 = vsel %vm3212, %v2572, 0.0
        %v3241 = vsel %vm3213, %v2677, 0.0
        %v3242 = vsel %vm3214, %v2679, 0.0
        %v3243 = vsel %vm3215, %v2576, 0.0
        %v3244 = vsel %vm3216, %v2578, 0.0
        %v3245 = vsel %vm3217, %v2683, 0.0
        %v3246 = vsel %vm3218, %v2685, 0.0
        %v3247 = vsel %vm3219, %v2582, 0.0
        %v3248 = vsel %vm3220, %v2584, 0.0
        %v3249 = vsel %vm3221, %v2689, 0.0
        %v3250 = vsel %vm3222, %v2691, 0.0
        %v3251 = vsel %vm3223, %v2588, 0.0
        %v3252 = vsel %vm3224, %v2590, 0.0
        %v3253 = vsel %vm3225, %v2695, 0.0
        %v3254 = vsel %vm3226, %v2697, 0.0
        %v3255 = vadd.f32 %v3227, %v3231
        %v3256 = vadd.f32 %v3255, %v3235
        %v3257 = vadd.f32 %v3256, %v3239
        %v3258 = vadd.f32 %v3257, %v3243
        %v3259 = vadd.f32 %v3258, %v3247
        %v3260 = vadd.f32 %v3259, %v3251
        %v3261 = vrot.slane %v3260, 4
        %v3262 = vadd.f32 %v3260, %v3261
        %v3263 = vrot.slane %v3262, 2
        %v3264 = vadd.f32 %v3262, %v3263
        %v3265 = vrot.slane %v3264, 1
        %v3266 = vadd.f32 %v3264, %v3265
        %v3267 = vadd.f32 %v3228, %v3232
        %v3268 = vadd.f32 %v3267, %v3236
        %v3269 = vadd.f32 %v3268, %v3240
        %v3270 = vadd.f32 %v3269, %v3244
        %v3271 = vadd.f32 %v3270, %v3248
        %v3272 = vadd.f32 %v3271, %v3252
        %v3273 = vrot.slane %v3272, 4
        %v3274 = vadd.f32 %v3272, %v3273
        %v3275 = vrot.slane %v3274, 2
        %v3276 = vadd.f32 %v3274, %v3275
        %v3277 = vrot.slane %v3276, 1
        %v3278 = vadd.f32 %v3276, %v3277
        %v3279 = vadd.f32 %v3229, %v3233
        %v3280 = vadd.f32 %v3279, %v3237
        %v3281 = vadd.f32 %v3280, %v3241
        %v3282 = vadd.f32 %v3281, %v3245
        %v3283 = vadd.f32 %v3282, %v3249
        %v3284 = vadd.f32 %v3283, %v3253
        %v3285 = vrot.slane %v3284, 4
        %v3286 = vadd.f32 %v3284, %v3285
        %v3287 = vrot.slane %v3286, 2
        %v3288 = vadd.f32 %v3286, %v3287
        %v3289 = vrot.slane %v3288, 1
        %v3290 = vadd.f32 %v3288, %v3289
        %v3291 = vadd.f32 %v3230, %v3234
        %v3292 = vadd.f32 %v3291, %v3238
        %v3293 = vadd.f32 %v3292, %v3242
        %v3294 = vadd.f32 %v3293, %v3246
        %v3295 = vadd.f32 %v3294, %v3250
        %v3296 = vadd.f32 %v3295, %v3254
        %v3297 = vrot.slane %v3296, 4
        %v3298 = vadd.f32 %v3296, %v3297
        %v3299 = vrot.slane %v3298, 2
        %v3300 = vadd.f32 %v3298, %v3299
        %v3301 = vrot.slane %v3300, 1
        %v3302 = vadd.f32 %v3300, %v3301
        %v3303 = vlaneseq
        %v3304 = vshrl.u32 %v3303, 7
        %v3305 = vsub.s32 5, %v3304
        %v3306 = vrot.slane %v2699, %v3305
        %v3307 = vlaneseq
        %v3308 = vshrl.u32 %v3307, 7
        %v3309 = vsub.s32 5, %v3308
        %v3310 = vrot.slane %v2700, %v3309
        %v3311 = vlaneseq
        %v3312 = vshrl.u32 %v3311, 7
        %v3313 = vsub.s32 5, %v3312
        %v3314 = vrot.slane %v2701, %v3313
        %v3315 = vlaneseq
        %v3316 = vshrl.u32 %v3315, 7
        %v3317 = vsub.s32 5, %v3316
        %v3318 = vrot.slane %v2702, %v3317
        %vm3319 = vcmp.eq.s32.totalorder %v372, %v3306
        %vm3320 = vcmp.eq.s32.totalorder %v372, %v3310
        %vm3321 = vcmp.eq.s32.totalorder %v372, %v3314
        %vm3322 = vcmp.eq.s32.totalorder %v372, %v3318
        %vm3323 = vcmp.eq.s32.totalorder %v373, %v3306
        %vm3324 = vcmp.eq.s32.totalorder %v373, %v3310
        %vm3325 = vcmp.eq.s32.totalorder %v373, %v3314
        %vm3326 = vcmp.eq.s32.totalorder %v373, %v3318
        %vm3327 = vcmp.eq.s32.totalorder %v374, %v3306
        %vm3328 = vcmp.eq.s32.totalorder %v374, %v3310
        %vm3329 = vcmp.eq.s32.totalorder %v374, %v3314
        %vm3330 = vcmp.eq.s32.totalorder %v374, %v3318
        %vm3331 = vcmp.eq.s32.totalorder %v375, %v3306
        %vm3332 = vcmp.eq.s32.totalorder %v375, %v3310
        %vm3333 = vcmp.eq.s32.totalorder %v375, %v3314
        %vm3334 = vcmp.eq.s32.totalorder %v375, %v3318
        %vm3335 = vcmp.eq.s32.totalorder %v376, %v3306
        %vm3336 = vcmp.eq.s32.totalorder %v376, %v3310
        %vm3337 = vcmp.eq.s32.totalorder %v376, %v3314
        %vm3338 = vcmp.eq.s32.totalorder %v376, %v3318
        %vm3339 = vcmp.eq.s32.totalorder %v377, %v3306
        %vm3340 = vcmp.eq.s32.totalorder %v377, %v3310
        %vm3341 = vcmp.eq.s32.totalorder %v377, %v3314
        %vm3342 = vcmp.eq.s32.totalorder %v377, %v3318
        %vm3343 = vcmp.eq.s32.totalorder %v378, %v3306
        %vm3344 = vcmp.eq.s32.totalorder %v378, %v3310
        %vm3345 = vcmp.eq.s32.totalorder %v378, %v3314
        %vm3346 = vcmp.eq.s32.totalorder %v378, %v3318
        %v3347 = vsel %vm3319, %v2552, 0.0
        %v3348 = vsel %vm3320, %v2554, 0.0
        %v3349 = vsel %vm3321, %v2659, 0.0
        %v3350 = vsel %vm3322, %v2661, 0.0
        %v3351 = vsel %vm3323, %v2558, 0.0
        %v3352 = vsel %vm3324, %v2560, 0.0
        %v3353 = vsel %vm3325, %v2665, 0.0
        %v3354 = vsel %vm3326, %v2667, 0.0
        %v3355 = vsel %vm3327, %v2564, 0.0
        %v3356 = vsel %vm3328, %v2566, 0.0
        %v3357 = vsel %vm3329, %v2671, 0.0
        %v3358 = vsel %vm3330, %v2673, 0.0
        %v3359 = vsel %vm3331, %v2570, 0.0
        %v3360 = vsel %vm3332, %v2572, 0.0
        %v3361 = vsel %vm3333, %v2677, 0.0
        %v3362 = vsel %vm3334, %v2679, 0.0
        %v3363 = vsel %vm3335, %v2576, 0.0
        %v3364 = vsel %vm3336, %v2578, 0.0
        %v3365 = vsel %vm3337, %v2683, 0.0
        %v3366 = vsel %vm3338, %v2685, 0.0
        %v3367 = vsel %vm3339, %v2582, 0.0
        %v3368 = vsel %vm3340, %v2584, 0.0
        %v3369 = vsel %vm3341, %v2689, 0.0
        %v3370 = vsel %vm3342, %v2691, 0.0
        %v3371 = vsel %vm3343, %v2588, 0.0
        %v3372 = vsel %vm3344, %v2590, 0.0
        %v3373 = vsel %vm3345, %v2695, 0.0
        %v3374 = vsel %vm3346, %v2697, 0.0
        %v3375 = vadd.f32 %v3347, %v3351
        %v3376 = vadd.f32 %v3375, %v3355
        %v3377 = vadd.f32 %v3376, %v3359
        %v3378 = vadd.f32 %v3377, %v3363
        %v3379 = vadd.f32 %v3378, %v3367
        %v3380 = vadd.f32 %v3379, %v3371
        %v3381 = vrot.slane %v3380, 4
        %v3382 = vadd.f32 %v3380, %v3381
        %v3383 = vrot.slane %v3382, 2
        %v3384 = vadd.f32 %v3382, %v3383
        %v3385 = vrot.slane %v3384, 1
        %v3386 = vadd.f32 %v3384, %v3385
        %v3387 = vadd.f32 %v3348, %v3352
        %v3388 = vadd.f32 %v3387, %v3356
        %v3389 = vadd.f32 %v3388, %v3360
        %v3390 = vadd.f32 %v3389, %v3364
        %v3391 = vadd.f32 %v3390, %v3368
        %v3392 = vadd.f32 %v3391, %v3372
        %v3393 = vrot.slane %v3392, 4
        %v3394 = vadd.f32 %v3392, %v3393
        %v3395 = vrot.slane %v3394, 2
        %v3396 = vadd.f32 %v3394, %v3395
        %v3397 = vrot.slane %v3396, 1
        %v3398 = vadd.f32 %v3396, %v3397
        %v3399 = vadd.f32 %v3349, %v3353
        %v3400 = vadd.f32 %v3399, %v3357
        %v3401 = vadd.f32 %v3400, %v3361
        %v3402 = vadd.f32 %v3401, %v3365
        %v3403 = vadd.f32 %v3402, %v3369
        %v3404 = vadd.f32 %v3403, %v3373
        %v3405 = vrot.slane %v3404, 4
        %v3406 = vadd.f32 %v3404, %v3405
        %v3407 = vrot.slane %v3406, 2
        %v3408 = vadd.f32 %v3406, %v3407
        %v3409 = vrot.slane %v3408, 1
        %v3410 = vadd.f32 %v3408, %v3409
        %v3411 = vadd.f32 %v3350, %v3354
        %v3412 = vadd.f32 %v3411, %v3358
        %v3413 = vadd.f32 %v3412, %v3362
        %v3414 = vadd.f32 %v3413, %v3366
        %v3415 = vadd.f32 %v3414, %v3370
        %v3416 = vadd.f32 %v3415, %v3374
        %v3417 = vrot.slane %v3416, 4
        %v3418 = vadd.f32 %v3416, %v3417
        %v3419 = vrot.slane %v3418, 2
        %v3420 = vadd.f32 %v3418, %v3419
        %v3421 = vrot.slane %v3420, 1
        %v3422 = vadd.f32 %v3420, %v3421
        %v3423 = vlaneseq
        %v3424 = vshrl.u32 %v3423, 7
        %v3425 = vsub.s32 6, %v3424
        %v3426 = vrot.slane %v2699, %v3425
        %v3427 = vlaneseq
        %v3428 = vshrl.u32 %v3427, 7
        %v3429 = vsub.s32 6, %v3428
        %v3430 = vrot.slane %v2700, %v3429
        %v3431 = vlaneseq
        %v3432 = vshrl.u32 %v3431, 7
        %v3433 = vsub.s32 6, %v3432
        %v3434 = vrot.slane %v2701, %v3433
        %v3435 = vlaneseq
        %v3436 = vshrl.u32 %v3435, 7
        %v3437 = vsub.s32 6, %v3436
        %v3438 = vrot.slane %v2702, %v3437
        %vm3439 = vcmp.eq.s32.totalorder %v372, %v3426
        %vm3440 = vcmp.eq.s32.totalorder %v372, %v3430
        %vm3441 = vcmp.eq.s32.totalorder %v372, %v3434
        %vm3442 = vcmp.eq.s32.totalorder %v372, %v3438
        %vm3443 = vcmp.eq.s32.totalorder %v373, %v3426
        %vm3444 = vcmp.eq.s32.totalorder %v373, %v3430
        %vm3445 = vcmp.eq.s32.totalorder %v373, %v3434
        %vm3446 = vcmp.eq.s32.totalorder %v373, %v3438
        %vm3447 = vcmp.eq.s32.totalorder %v374, %v3426
        %vm3448 = vcmp.eq.s32.totalorder %v374, %v3430
        %vm3449 = vcmp.eq.s32.totalorder %v374, %v3434
        %vm3450 = vcmp.eq.s32.totalorder %v374, %v3438
        %vm3451 = vcmp.eq.s32.totalorder %v375, %v3426
        %vm3452 = vcmp.eq.s32.totalorder %v375, %v3430
        %vm3453 = vcmp.eq.s32.totalorder %v375, %v3434
        %vm3454 = vcmp.eq.s32.totalorder %v375, %v3438
        %vm3455 = vcmp.eq.s32.totalorder %v376, %v3426
        %vm3456 = vcmp.eq.s32.totalorder %v376, %v3430
        %vm3457 = vcmp.eq.s32.totalorder %v376, %v3434
        %vm3458 = vcmp.eq.s32.totalorder %v376, %v3438
        %vm3459 = vcmp.eq.s32.totalorder %v377, %v3426
        %vm3460 = vcmp.eq.s32.totalorder %v377, %v3430
        %vm3461 = vcmp.eq.s32.totalorder %v377, %v3434
        %vm3462 = vcmp.eq.s32.totalorder %v377, %v3438
        %vm3463 = vcmp.eq.s32.totalorder %v378, %v3426
        %vm3464 = vcmp.eq.s32.totalorder %v378, %v3430
        %vm3465 = vcmp.eq.s32.totalorder %v378, %v3434
        %vm3466 = vcmp.eq.s32.totalorder %v378, %v3438
        %v3467 = vsel %vm3439, %v2552, 0.0
        %v3468 = vsel %vm3440, %v2554, 0.0
        %v3469 = vsel %vm3441, %v2659, 0.0
        %v3470 = vsel %vm3442, %v2661, 0.0
        %v3471 = vsel %vm3443, %v2558, 0.0
        %v3472 = vsel %vm3444, %v2560, 0.0
        %v3473 = vsel %vm3445, %v2665, 0.0
        %v3474 = vsel %vm3446, %v2667, 0.0
        %v3475 = vsel %vm3447, %v2564, 0.0
        %v3476 = vsel %vm3448, %v2566, 0.0
        %v3477 = vsel %vm3449, %v2671, 0.0
        %v3478 = vsel %vm3450, %v2673, 0.0
        %v3479 = vsel %vm3451, %v2570, 0.0
        %v3480 = vsel %vm3452, %v2572, 0.0
        %v3481 = vsel %vm3453, %v2677, 0.0
        %v3482 = vsel %vm3454, %v2679, 0.0
        %v3483 = vsel %vm3455, %v2576, 0.0
        %v3484 = vsel %vm3456, %v2578, 0.0
        %v3485 = vsel %vm3457, %v2683, 0.0
        %v3486 = vsel %vm3458, %v2685, 0.0
        %v3487 = vsel %vm3459, %v2582, 0.0
        %v3488 = vsel %vm3460, %v2584, 0.0
        %v3489 = vsel %vm3461, %v2689, 0.0
        %v3490 = vsel %vm3462, %v2691, 0.0
        %v3491 = vsel %vm3463, %v2588, 0.0
        %v3492 = vsel %vm3464, %v2590, 0.0
        %v3493 = vsel %vm3465, %v2695, 0.0
        %v3494 = vsel %vm3466, %v2697, 0.0
        %v3495 = vadd.f32 %v3467, %v3471
        %v3496 = vadd.f32 %v3495, %v3475
        %v3497 = vadd.f32 %v3496, %v3479
        %v3498 = vadd.f32 %v3497, %v3483
        %v3499 = vadd.f32 %v3498, %v3487
        %v3500 = vadd.f32 %v3499, %v3491
        %v3501 = vrot.slane %v3500, 4
        %v3502 = vadd.f32 %v3500, %v3501
        %v3503 = vrot.slane %v3502, 2
        %v3504 = vadd.f32 %v3502, %v3503
        %v3505 = vrot.slane %v3504, 1
        %v3506 = vadd.f32 %v3504, %v3505
        %v3507 = vadd.f32 %v3468, %v3472
        %v3508 = vadd.f32 %v3507, %v3476
        %v3509 = vadd.f32 %v3508, %v3480
        %v3510 = vadd.f32 %v3509, %v3484
        %v3511 = vadd.f32 %v3510, %v3488
        %v3512 = vadd.f32 %v3511, %v3492
        %v3513 = vrot.slane %v3512, 4
        %v3514 = vadd.f32 %v3512, %v3513
        %v3515 = vrot.slane %v3514, 2
        %v3516 = vadd.f32 %v3514, %v3515
        %v3517 = vrot.slane %v3516, 1
        %v3518 = vadd.f32 %v3516, %v3517
        %v3519 = vadd.f32 %v3469, %v3473
        %v3520 = vadd.f32 %v3519, %v3477
        %v3521 = vadd.f32 %v3520, %v3481
        %v3522 = vadd.f32 %v3521, %v3485
        %v3523 = vadd.f32 %v3522, %v3489
        %v3524 = vadd.f32 %v3523, %v3493
        %v3525 = vrot.slane %v3524, 4
        %v3526 = vadd.f32 %v3524, %v3525
        %v3527 = vrot.slane %v3526, 2
        %v3528 = vadd.f32 %v3526, %v3527
        %v3529 = vrot.slane %v3528, 1
        %v3530 = vadd.f32 %v3528, %v3529
        %v3531 = vadd.f32 %v3470, %v3474
        %v3532 = vadd.f32 %v3531, %v3478
        %v3533 = vadd.f32 %v3532, %v3482
        %v3534 = vadd.f32 %v3533, %v3486
        %v3535 = vadd.f32 %v3534, %v3490
        %v3536 = vadd.f32 %v3535, %v3494
        %v3537 = vrot.slane %v3536, 4
        %v3538 = vadd.f32 %v3536, %v3537
        %v3539 = vrot.slane %v3538, 2
        %v3540 = vadd.f32 %v3538, %v3539
        %v3541 = vrot.slane %v3540, 1
        %v3542 = vadd.f32 %v3540, %v3541
        %v3543 = vlaneseq
        %v3544 = vshrl.u32 %v3543, 7
        %v3545 = vsub.s32 7, %v3544
        %v3546 = vrot.slane %v2699, %v3545
        %v3547 = vlaneseq
        %v3548 = vshrl.u32 %v3547, 7
        %v3549 = vsub.s32 7, %v3548
        %v3550 = vrot.slane %v2700, %v3549
        %v3551 = vlaneseq
        %v3552 = vshrl.u32 %v3551, 7
        %v3553 = vsub.s32 7, %v3552
        %v3554 = vrot.slane %v2701, %v3553
        %v3555 = vlaneseq
        %v3556 = vshrl.u32 %v3555, 7
        %v3557 = vsub.s32 7, %v3556
        %v3558 = vrot.slane %v2702, %v3557
        %vm3559 = vcmp.eq.s32.totalorder %v372, %v3546
        %vm3560 = vcmp.eq.s32.totalorder %v372, %v3550
        %vm3561 = vcmp.eq.s32.totalorder %v372, %v3554
        %vm3562 = vcmp.eq.s32.totalorder %v372, %v3558
        %vm3563 = vcmp.eq.s32.totalorder %v373, %v3546
        %vm3564 = vcmp.eq.s32.totalorder %v373, %v3550
        %vm3565 = vcmp.eq.s32.totalorder %v373, %v3554
        %vm3566 = vcmp.eq.s32.totalorder %v373, %v3558
        %vm3567 = vcmp.eq.s32.totalorder %v374, %v3546
        %vm3568 = vcmp.eq.s32.totalorder %v374, %v3550
        %vm3569 = vcmp.eq.s32.totalorder %v374, %v3554
        %vm3570 = vcmp.eq.s32.totalorder %v374, %v3558
        %vm3571 = vcmp.eq.s32.totalorder %v375, %v3546
        %vm3572 = vcmp.eq.s32.totalorder %v375, %v3550
        %vm3573 = vcmp.eq.s32.totalorder %v375, %v3554
        %vm3574 = vcmp.eq.s32.totalorder %v375, %v3558
        %vm3575 = vcmp.eq.s32.totalorder %v376, %v3546
        %vm3576 = vcmp.eq.s32.totalorder %v376, %v3550
        %vm3577 = vcmp.eq.s32.totalorder %v376, %v3554
        %vm3578 = vcmp.eq.s32.totalorder %v376, %v3558
        %vm3579 = vcmp.eq.s32.totalorder %v377, %v3546
        %vm3580 = vcmp.eq.s32.totalorder %v377, %v3550
        %vm3581 = vcmp.eq.s32.totalorder %v377, %v3554
        %vm3582 = vcmp.eq.s32.totalorder %v377, %v3558
        %vm3583 = vcmp.eq.s32.totalorder %v378, %v3546
        %vm3584 = vcmp.eq.s32.totalorder %v378, %v3550
        %vm3585 = vcmp.eq.s32.totalorder %v378, %v3554
        %vm3586 = vcmp.eq.s32.totalorder %v378, %v3558
        %v3587 = vsel %vm3559, %v2552, 0.0
        %v3588 = vsel %vm3560, %v2554, 0.0
        %v3589 = vsel %vm3561, %v2659, 0.0
        %v3590 = vsel %vm3562, %v2661, 0.0
        %v3591 = vsel %vm3563, %v2558, 0.0
        %v3592 = vsel %vm3564, %v2560, 0.0
        %v3593 = vsel %vm3565, %v2665, 0.0
        %v3594 = vsel %vm3566, %v2667, 0.0
        %v3595 = vsel %vm3567, %v2564, 0.0
        %v3596 = vsel %vm3568, %v2566, 0.0
        %v3597 = vsel %vm3569, %v2671, 0.0
        %v3598 = vsel %vm3570, %v2673, 0.0
        %v3599 = vsel %vm3571, %v2570, 0.0
        %v3600 = vsel %vm3572, %v2572, 0.0
        %v3601 = vsel %vm3573, %v2677, 0.0
        %v3602 = vsel %vm3574, %v2679, 0.0
        %v3603 = vsel %vm3575, %v2576, 0.0
        %v3604 = vsel %vm3576, %v2578, 0.0
        %v3605 = vsel %vm3577, %v2683, 0.0
        %v3606 = vsel %vm3578, %v2685, 0.0
        %v3607 = vsel %vm3579, %v2582, 0.0
        %v3608 = vsel %vm3580, %v2584, 0.0
        %v3609 = vsel %vm3581, %v2689, 0.0
        %v3610 = vsel %vm3582, %v2691, 0.0
        %v3611 = vsel %vm3583, %v2588, 0.0
        %v3612 = vsel %vm3584, %v2590, 0.0
        %v3613 = vsel %vm3585, %v2695, 0.0
        %v3614 = vsel %vm3586, %v2697, 0.0
        %v3615 = vadd.f32 %v3587, %v3591
        %v3616 = vadd.f32 %v3615, %v3595
        %v3617 = vadd.f32 %v3616, %v3599
        %v3618 = vadd.f32 %v3617, %v3603
        %v3619 = vadd.f32 %v3618, %v3607
        %v3620 = vadd.f32 %v3619, %v3611
        %v3621 = vrot.slane %v3620, 4
        %v3622 = vadd.f32 %v3620, %v3621
        %v3623 = vrot.slane %v3622, 2
        %v3624 = vadd.f32 %v3622, %v3623
        %v3625 = vrot.slane %v3624, 1
        %v3626 = vadd.f32 %v3624, %v3625
        %v3627 = vadd.f32 %v3588, %v3592
        %v3628 = vadd.f32 %v3627, %v3596
        %v3629 = vadd.f32 %v3628, %v3600
        %v3630 = vadd.f32 %v3629, %v3604
        %v3631 = vadd.f32 %v3630, %v3608
        %v3632 = vadd.f32 %v3631, %v3612
        %v3633 = vrot.slane %v3632, 4
        %v3634 = vadd.f32 %v3632, %v3633
        %v3635 = vrot.slane %v3634, 2
        %v3636 = vadd.f32 %v3634, %v3635
        %v3637 = vrot.slane %v3636, 1
        %v3638 = vadd.f32 %v3636, %v3637
        %v3639 = vadd.f32 %v3589, %v3593
        %v3640 = vadd.f32 %v3639, %v3597
        %v3641 = vadd.f32 %v3640, %v3601
        %v3642 = vadd.f32 %v3641, %v3605
        %v3643 = vadd.f32 %v3642, %v3609
        %v3644 = vadd.f32 %v3643, %v3613
        %v3645 = vrot.slane %v3644, 4
        %v3646 = vadd.f32 %v3644, %v3645
        %v3647 = vrot.slane %v3646, 2
        %v3648 = vadd.f32 %v3646, %v3647
        %v3649 = vrot.slane %v3648, 1
        %v3650 = vadd.f32 %v3648, %v3649
        %v3651 = vadd.f32 %v3590, %v3594
        %v3652 = vadd.f32 %v3651, %v3598
        %v3653 = vadd.f32 %v3652, %v3602
        %v3654 = vadd.f32 %v3653, %v3606
        %v3655 = vadd.f32 %v3654, %v3610
        %v3656 = vadd.f32 %v3655, %v3614
        %v3657 = vrot.slane %v3656, 4
        %v3658 = vadd.f32 %v3656, %v3657
        %v3659 = vrot.slane %v3658, 2
        %v3660 = vadd.f32 %v3658, %v3659
        %v3661 = vrot.slane %v3660, 1
        %v3662 = vadd.f32 %v3660, %v3661
        %vm3663 = vcmask 1040384
        %v3664 = vsel %vm3663, %v2786, %v2906
        %v3665 = vsel %vm3663, %v2798, %v2918
        %v3666 = vsel %vm3663, %v2810, %v2930
        %v3667 = vsel %vm3663, %v2822, %v2942
        %vm3668 = vcmask 1041408
        %v3669 = vsel %vm3668, %v3664, %v3026
        %v3670 = vsel %vm3668, %v3665, %v3038
        %v3671 = vsel %vm3668, %v3666, %v3050
        %v3672 = vsel %vm3668, %v3667, %v3062
        %vm3673 = vcmask 1042432
        %v3674 = vsel %vm3673, %v3669, %v3146
        %v3675 = vsel %vm3673, %v3670, %v3158
        %v3676 = vsel %vm3673, %v3671, %v3170
        %v3677 = vsel %vm3673, %v3672, %v3182
        %vm3678 = vcmask 1043456
        %v3679 = vsel %vm3678, %v3674, %v3266
        %v3680 = vsel %vm3678, %v3675, %v3278
        %v3681 = vsel %vm3678, %v3676, %v3290
        %v3682 = vsel %vm3678, %v3677, %v3302
        %vm3683 = vcmask 1044480
        %v3684 = vsel %vm3683, %v3679, %v3386
        %v3685 = vsel %vm3683, %v3680, %v3398
        %v3686 = vsel %vm3683, %v3681, %v3410
        %v3687 = vsel %vm3683, %v3682, %v3422
        %vm3688 = vcmask 1045504
        %v3689 = vsel %vm3688, %v3684, %v3506
        %v3690 = vsel %vm3688, %v3685, %v3518
        %v3691 = vsel %vm3688, %v3686, %v3530
        %v3692 = vsel %vm3688, %v3687, %v3542
        %vm3693 = vcmask 1046528
        %v3694 = vsel %vm3693, %v3689, %v3626
        %v3695 = vsel %vm3693, %v3690, %v3638
        %v3696 = vsel %vm3693, %v3691, %v3650
        %v3697 = vsel %vm3693, %v3692, %v3662
        %v3698 = vrot.slane %v3694, 4
        %v3699 = vmax.f32 %v3694, %v3698
        %v3700 = vrot.slane %v3699, 2
        %v3701 = vmax.f32 %v3699, %v3700
        %v3702 = vrot.slane %v3701, 1
        %v3703 = vmax.f32 %v3701, %v3702
        %v3704 = vrot.slane %v3695, 4
        %v3705 = vmax.f32 %v3695, %v3704
        %v3706 = vrot.slane %v3705, 2
        %v3707 = vmax.f32 %v3705, %v3706
        %v3708 = vrot.slane %v3707, 1
        %v3709 = vmax.f32 %v3707, %v3708
        %v3710 = vrot.slane %v3696, 4
        %v3711 = vmax.f32 %v3696, %v3710
        %v3712 = vrot.slane %v3711, 2
        %v3713 = vmax.f32 %v3711, %v3712
        %v3714 = vrot.slane %v3713, 1
        %v3715 = vmax.f32 %v3713, %v3714
        %v3716 = vrot.slane %v3697, 4
        %v3717 = vmax.f32 %v3697, %v3716
        %v3718 = vrot.slane %v3717, 2
        %v3719 = vmax.f32 %v3717, %v3718
        %v3720 = vrot.slane %v3719, 1
        %v3721 = vmax.f32 %v3719, %v3720
        %v3722 = vsub.f32 %v3694, %v3703
        %v3723 = vsub.f32 %v3695, %v3709
        %v3724 = vsub.f32 %v3696, %v3715
        %v3725 = vsub.f32 %v3697, %v3721
        %v3726 = vmul.f32 %v3722, 1.442695
        %v3727 = vpow.pop %v3726
        %v3728 = vmul.f32 %v3723, 1.442695
        %v3729 = vpow.pop %v3728
        %v3730 = vmul.f32 %v3724, 1.442695
        %v3731 = vpow.pop %v3730
        %v3732 = vmul.f32 %v3725, 1.442695
        %v3733 = vpow.pop %v3732
        %v3734 = vrot.slane %v3727, 4
        %v3735 = vadd.f32 %v3727, %v3734
        %v3736 = vrot.slane %v3735, 2
        %v3737 = vadd.f32 %v3735, %v3736
        %v3738 = vrot.slane %v3737, 1
        %v3739 = vadd.f32 %v3737, %v3738
        %v3740 = vrot.slane %v3729, 4
        %v3741 = vadd.f32 %v3729, %v3740
        %v3742 = vrot.slane %v3741, 2
        %v3743 = vadd.f32 %v3741, %v3742
        %v3744 = vrot.slane %v3743, 1
        %v3745 = vadd.f32 %v3743, %v3744
        %v3746 = vrot.slane %v3731, 4
        %v3747 = vadd.f32 %v3731, %v3746
        %v3748 = vrot.slane %v3747, 2
        %v3749 = vadd.f32 %v3747, %v3748
        %v3750 = vrot.slane %v3749, 1
        %v3751 = vadd.f32 %v3749, %v3750
        %v3752 = vrot.slane %v3733, 4
        %v3753 = vadd.f32 %v3733, %v3752
        %v3754 = vrot.slane %v3753, 2
        %v3755 = vadd.f32 %v3753, %v3754
        %v3756 = vrot.slane %v3755, 1
        %v3757 = vadd.f32 %v3755, %v3756
        %v3758 = vrcp.pop %v3739
        %v3759 = vrcp.pop %v3745
        %v3760 = vrcp.pop %v3751
        %v3761 = vrcp.pop %v3757
        %v3762 = vmul.f32 %v3727, %v3758
        %v3763 = vmul.f32 %v3729, %v3759
        %v3764 = vmul.f32 %v3731, %v3760
        %v3765 = vmul.f32 %v3733, %v3761
        %3766 = vst [vmem:[%s360] sm:$0xff] %v3762
        %3767 = vst [vmem:[%s360 + $0x8] sm:$0xff] %v3763
        %3768 = vst [vmem:[%s360 + $0x10] sm:$0xff] %v3764
        %3769 = vst [vmem:[%s360 + $0x18] sm:$0xff] %v3765
        %s3770 = sand.u32 %s180, 1
        %s3771 = scalar_lea.sflag [#allocation4], %s3770
        %s3772 = sand.u32 %s180, 1
        %s3773 = smul.addr %s3772, 32
        %s3774 = scalar_lea.vmem [#allocation8], %s3773
        // Predicated region
        $region57: #{tpu_custom_call.1} parent=43 // pred_check
          %p3775 = pneg %p190
        $region58: #{tpu_custom_call.1} parent=43 // pred_check_branch
          %3777 = sbr.rel (%p3775) target = $region60
        $region59: #{tpu_custom_call.1} parent=43 // pred_region
          %s3778 = smul.u32 4, %s26
          %s3780 = ssub.s32 512, 512
          %3781 = vsyncadd %s3771, %s3780
          %s3782 = smul.addr %s3778, 128
          %s3783 = scalar_lea.hbm %s6, %s3782
          %s3785 = sshll.u32 %s3774, 4
          %s3786 = int_to_ptr.vmem [resolvable:$true] %s3785
          %3788 = dma.vmem_to_hbm [thread:$0]  %s3786, 512, %s3783, %s3771
        $region60: #{tpu_custom_call.1} parent=43 // pred_fallthru
          _
      $region44: #{tpu_custom_call.1} parent=5 // pred_fallthru
        _
      %p3789 = scmp.le.s32.totalorder 2, %s21
      // Predicated region
      $region61: #{tpu_custom_call.1} parent=5 // pred_check
        %p3790 = pneg %p3789
      $region62: #{tpu_custom_call.1} parent=5 // pred_check_branch
        %3792 = sbr.rel (%p3790) target = $region64
      $region63: #{tpu_custom_call.1} parent=5 // pred_region
        %s3793 = ssub.s32 %s21, 2
        // Predicated region
        $region65: #{tpu_custom_call.1} parent=63 // pred_check
          %p3794 = pneg %p196
        $region66: #{tpu_custom_call.1} parent=63 // pred_check_branch
          %3796 = sbr.rel (%p3794) target = $region68
        $region67: #{tpu_custom_call.1} parent=63 // pred_region
          %s3797 = sand.u32 %s181, 1
          %s3798 = scalar_lea.sflag [#allocation4], %s3797
          %s3799 = sand.u32 %s181, 1
          %s3800 = smul.addr %s3799, 32
          %s3801 = scalar_lea.vmem [#allocation8], %s3800
          %3802 = dma.done %s3798, 512
        $region68: #{tpu_custom_call.1} parent=63 // pred_fallthru
          _
      $region64: #{tpu_custom_call.1} parent=5 // pred_fallthru
        _
    $region6: #{tpu_custom_call.1} parent=1 // loop_footer
      %s25 = sadd.s32 1, %s21
    $region7: #{tpu_custom_call.1} parent=1 // loop_footer_branch
      %20 = sbr.rel target = $region3
    $region8: #{tpu_custom_call.1} parent=1 // loop_exit
      _
    %3803 = vsyncpa [#allocation3], 1
    %s3804 = scalar_lea.sflag [#allocation3], 1
    %3805 = vsyncpa %s3804, 1
    %3806 = vsyncpa [#allocation6], 1
    %s3807 = scalar_lea.sflag [#allocation6], 1
    %3808 = vsyncpa %s3807, 1
    %3809 = vsyncpa [#allocation4], 1
    %s3810 = scalar_lea.sflag [#allocation4], 1
    %3811 = vsyncpa %s3810, 1

</llo_original>
